<compile_context>
chip_gen: v5e
topology: v5e:2x2
jax: 0.10.0
libtpu: 0.0.40
codegen_flags: <defaults>
</compile_context>

<pallas_src>
import functools
import math

import jax
import jax.numpy as jnp
from jax.experimental import pallas as pl
from jax.experimental.pallas import tpu as pltpu


# ----------------------------- config (small) -------------------------------
B = 2            # batch
L = 8            # sequence length
H = 32           # hidden size
NHEADS = 4
HEAD_DIM = H // NHEADS
INTER = 64       # FFN intermediate size
VOCAB = 128
N_LAYERS = 2
ATT_HID = 512    # head: nn.Linear(hidden, 512)
TARGET = 1       # CFG.target_size
LN_EPS = 1e-7
INIT_STD = 0.02
OUT_LANES = 128  # lane-padded kernel output width
LANE_BLK = 128   # Q/K/V/O output-column block stride inside watt

# packed-parameter layout:
#   watt (N_LAYERS+1, H+2, 4*LANE_BLK) bf16
#     slot li < N_LAYERS : rows 0:H = [wq|wk|wv|wo] at lane blocks 0/128/256/384
#                          row  H   = [bq|bk|bv|b_o] at the same lane blocks
#     slot N_LAYERS      : rows 0:H = aw1 ; row H = ab1 ; row H+1 = aw2
#   wffn (N_LAYERS, H+INTER, INTER) bf16 : rows 0:H = wf1 ; rows H: = wf2 (lanes 0:H)
#   slab (VOCAB + 4 + 6*N_LAYERS, 128) f32
#     rows 0:VOCAB   embedding table (lanes 0:H)
#     row VOCAB+0/1  embedding LayerNorm gamma / beta
#     row VOCAB+2/3  fc weight row / fc bias (lane 0)
#     per layer li, base = VOCAB + 4 + 6*li:
#       +0 ln1g, +1 ln1b, +2 ln2g, +3 ln2b, +4 bf2 (0:H), +5 bf1 (0:INTER)
SLAB_ROWS = VOCAB + 4 + 6 * N_LAYERS


# ------------------------------ kernel helpers ------------------------------
def _layernorm(x, g, b):
    mean = jnp.mean(x, axis=-1, keepdims=True)
    var = jnp.mean((x - mean) ** 2, axis=-1, keepdims=True)
    return (x - mean) * jax.lax.rsqrt(var + LN_EPS) * g + b


def _gelu(x):
    # tanh approximation of GELU
    c = math.sqrt(2.0 / math.pi)
    return 0.5 * x * (1.0 + jnp.tanh(c * (x + 0.044715 * x * x * x)))


# ----------------------------- fused forward kernel --------------------------
def pppm_fused_kernel(ids_ref, mask_ref, watt_ref, wffn_ref, slab_ref, out_ref,
                      *, nheads, head_dim, vocab):
    b, l = mask_ref.shape
    n_layers = watt_ref.shape[0] - 1
    h = nheads * head_dim
    inter = wffn_ref.shape[2]
    bl = b * l
    bh = b * nheads
    blk = LANE_BLK

    # ---- embedding gather as a one-hot matmul (one MXU pass, no gather op) ---
    # TODO(synk): a real 250k vocab needs a DMA / scalar-prefetch gather; the
    #             one-hot matmul only works for this toy 128-entry table.
    ids = ids_ref[...]                                               # (BL, 1) i32
    onehot = (ids == jax.lax.broadcasted_iota(jnp.int32, (bl, vocab), 1)
              ).astype(jnp.float32)                                  # (BL, VOCAB)
    x = jnp.dot(onehot, slab_ref[0:vocab, 0:h],
                preferred_element_type=jnp.float32)                  # (BL, H)
    x = _layernorm(x, slab_ref[vocab:vocab + 1, 0:h],
                   slab_ref[vocab + 1:vocab + 2, 0:h])

    # additive attention-score mask, materialized ONCE for all layers / heads
    mask = mask_ref[...]                                             # (B, L)
    neg = (1.0 - mask) * (-1e9)                                      # (B, L)
    neg_h = jnp.broadcast_to(neg[:, None, None, :],
                             (b, nheads, l, l)).reshape(bh, l, l)    # (B*NH, L, L)
    scale = 1.0 / math.sqrt(head_dim)

    def split_heads(t):  # (B, L, H) -> (B*NH, L, D): heads folded onto batch
        parts = [t[:, :, i * head_dim:(i + 1) * head_dim] for i in range(nheads)]
        return jnp.stack(parts, axis=1).reshape(bh, l, head_dim)

    # ---- statically unrolled encoder layers; x stays (BL, H) in VMEM --------
    for li in range(n_layers):
        base = vocab + 4 + 6 * li
        w_att = watt_ref[li]                                         # (H+2, 512) bf16

        # fused QKV: 128-lane-aligned output blocks + one bias-row add
        x_bf = x.astype(jnp.bfloat16)
        qkv = (jnp.dot(x_bf, w_att[0:h, 0:3 * blk],
                       preferred_element_type=jnp.float32)
               + w_att[h:h + 1, 0:3 * blk])                          # (BL, 384)
        q3 = qkv[:, 0:h].reshape(b, l, h)
        k3 = qkv[:, blk:blk + h].reshape(b, l, h)
        v3 = qkv[:, 2 * blk:2 * blk + h].reshape(b, l, h)

        # all heads at once: single score mul-reduce + single softmax chain
        qh, kh, vh = split_heads(q3), split_heads(k3), split_heads(v3)
        s = jnp.sum(qh[:, :, None, :] * kh[:, None, :, :], axis=-1) * scale
        s = s + neg_h
        s = s - jnp.max(s, axis=-1, keepdims=True)
        p = jnp.exp(s)
        p = p * pl.reciprocal(jnp.sum(p, axis=-1, keepdims=True), approx=True)
        ctx_h = jnp.sum(p[:, :, :, None] * vh[:, None, :, :], axis=2)  # (B*NH,L,D)
        ctx4 = ctx_h.reshape(b, nheads, l, head_dim)
        ctx = jnp.concatenate([ctx4[:, i] for i in range(nheads)],
                              axis=-1).reshape(bl, h)                # (BL, H)

        attn_out = (jnp.dot(ctx.astype(jnp.bfloat16), w_att[0:h, 3 * blk:3 * blk + h],
                            preferred_element_type=jnp.float32)
                    + w_att[h:h + 1, 3 * blk:3 * blk + h])
        x1 = _layernorm(x + attn_out,
                        slab_ref[base:base + 1, 0:h],
                        slab_ref[base + 1:base + 2, 0:h])

        w_ffn = wffn_ref[li]                                         # (H+INTER, INTER)
        ff = (jnp.dot(x1.astype(jnp.bfloat16), w_ffn[0:h, :],
                      preferred_element_type=jnp.float32)
              + slab_ref[base + 5:base + 6, 0:inter])
        ff = _gelu(ff)
        ff = (jnp.dot(ff.astype(jnp.bfloat16), w_ffn[h:h + inter, 0:h],
                      preferred_element_type=jnp.float32)
              + slab_ref[base + 4:base + 5, 0:h])
        x = _layernorm(x1 + ff,
                       slab_ref[base + 2:base + 3, 0:h],
                       slab_ref[base + 3:base + 4, 0:h])

    # ---- attention-pooling head + fc (fused) ---------------------------------
    # NOTE: like the reference PyTorch module, the pooling softmax is NOT masked.
    w_head = watt_ref[n_layers]                                      # (H+2, 512)
    sattn = jnp.tanh(jnp.dot(x.astype(jnp.bfloat16), w_head[0:h, :],
                             preferred_element_type=jnp.float32)
                     + w_head[h:h + 1, :])                           # (BL, 512)
    # Linear(512, 1) as a broadcast-multiply-reduce; its bias cancels in the
    # softmax so it is omitted.
    logits = jnp.sum(sattn.reshape(b, l, -1) * w_head[h + 1:h + 2, :],
                     axis=-1)                                        # (B, L)
    logits = logits - jnp.max(logits, axis=-1, keepdims=True)
    e = jnp.exp(logits)
    wgt = e * pl.reciprocal(jnp.sum(e, axis=-1, keepdims=True), approx=True)

    feature = jnp.sum(wgt[:, :, None] * x.reshape(b, l, h), axis=1)  # (B, H)
    out = (jnp.sum(feature * slab_ref[vocab + 2:vocab + 3, 0:h],
                   axis=-1, keepdims=True)
           + slab_ref[vocab + 3:vocab + 4, 0:1])                     # (B, 1)

    # lane-padded store (result lives in lane 0); avoids a 1-wide masked vst
    lane = jax.lax.broadcasted_iota(jnp.int32, out_ref.shape, 1)
    out_ref[...] = jnp.where(lane == 0, out, 0.0)


# --------------------------------- wrapper -----------------------------------
def pppm_forward(token_type_ids, attention_mask, params):
    ids = token_type_ids.reshape(B * L, 1).astype(jnp.int32)
    mask = attention_mask.astype(jnp.float32)
    vmem = pl.BlockSpec(memory_space=pltpu.MemorySpace.VMEM)
    kernel = functools.partial(pppm_fused_kernel,
                               nheads=NHEADS, head_dim=HEAD_DIM, vocab=VOCAB)
    out = pl.pallas_call(
        kernel,
        out_shape=jax.ShapeDtypeStruct((B, OUT_LANES), jnp.float32),
        in_specs=[vmem] * 5,
        out_specs=vmem,
    )(ids, mask, params['watt'], params['wffn'], params['slab'])
    return out[:, :TARGET]                                           # (B, 1)


# ------------------------------ parameter setup -------------------------------
def make_params(key):
    def normal(key, shape):
        return jax.random.normal(key, shape, jnp.float32) * INIT_STD

    keys = iter(jax.random.split(key, 64))

    # ---- slab (f32): embedding + LayerNorms + FFN biases + fc ---------------
    slab = jnp.zeros((SLAB_ROWS, 128), jnp.float32)
    emb = normal(next(keys), (VOCAB, H))
    slab = slab.at[0:VOCAB, 0:H].set(emb)
    slab = slab.at[VOCAB + 0, 0:H].set(1.0)                 # emb LN gamma
    fcw = normal(next(keys), (H, TARGET))[:, 0]              # fc weight row
    slab = slab.at[VOCAB + 2, 0:H].set(fcw)                  # fc bias stays 0
    for li in range(N_LAYERS):
        base = VOCAB + 4 + 6 * li
        slab = slab.at[base + 0, 0:H].set(1.0)               # ln1 gamma
        slab = slab.at[base + 2, 0:H].set(1.0)               # ln2 gamma
        # ln betas / bf1 / bf2 stay zero

    # ---- watt (bf16): attention weights + bias row; last slot = pooling head -
    watt = jnp.zeros((N_LAYERS + 1, H + 2, 4 * LANE_BLK), jnp.float32)
    for li in range(N_LAYERS):
        wq = normal(next(keys), (H, H))
        wk = normal(next(keys), (H, H))
        wv = normal(next(keys), (H, H))
        wo = normal(next(keys), (H, H))
        watt = watt.at[li, 0:H, 0 * LANE_BLK:0 * LANE_BLK + H].set(wq)
        watt = watt.at[li, 0:H, 1 * LANE_BLK:1 * LANE_BLK + H].set(wk)
        watt = watt.at[li, 0:H, 2 * LANE_BLK:2 * LANE_BLK + H].set(wv)
        watt = watt.at[li, 0:H, 3 * LANE_BLK:3 * LANE_BLK + H].set(wo)
        # bias row (row H) stays zero (bq|bk|bv|b_o)
    aw1 = normal(next(keys), (H, ATT_HID))                   # Linear(H, 512)
    aw2 = normal(next(keys), (ATT_HID, TARGET))[:, 0]        # Linear(512, 1) weight
    watt = watt.at[N_LAYERS, 0:H, :].set(aw1)
    watt = watt.at[N_LAYERS, H + 1, :].set(aw2)              # row H (ab1) stays 0
    watt = watt.astype(jnp.bfloat16)

    # ---- wffn (bf16): wf1 / wf2 stacked along rows ---------------------------
    wffn = jnp.zeros((N_LAYERS, H + INTER, INTER), jnp.float32)
    for li in range(N_LAYERS):
        wf1 = normal(next(keys), (H, INTER))
        wf2 = normal(next(keys), (INTER, H))
        wffn = wffn.at[li, 0:H, :].set(wf1)
        wffn = wffn.at[li, H:H + INTER, 0:H].set(wf2)
    wffn = wffn.astype(jnp.bfloat16)

    return {'slab': slab, 'watt': watt, 'wffn': wffn}


# ----------------------------------- main -------------------------------------
if __name__ == "__main__":
    key = jax.random.PRNGKey(0)
    k_ids, k_params = jax.random.split(key)

    token_type_ids = jax.random.randint(k_ids, (B, L), 0, VOCAB, jnp.int32)
    attention_mask = jnp.ones((B, L), jnp.float32)
    attention_mask = attention_mask.at[1, L - 2:].set(0.0)   # some padding

    params = make_params(k_params)

    out = pppm_forward(token_type_ids, attention_mask, params)
    out = jax.block_until_ready(out)
    assert out.shape == (B, TARGET) and out.dtype == jnp.float32
    print("KERNEL_OK")
</pallas_src>

<mosaic_0001>
module attributes {stable_mosaic.version = 11 : i64} {
  func.func @pppm_fused_kernel(%arg0: memref<16x1xi32, #tpu.memory_space<vmem>>, %arg1: memref<2x8xf32, #tpu.memory_space<vmem>>, %arg2: memref<3x34x512xbf16, #tpu.memory_space<vmem>>, %arg3: memref<2x96x64xbf16, #tpu.memory_space<vmem>>, %arg4: memref<144x128xf32, #tpu.memory_space<vmem>>, %arg5: memref<2x128xf32, #tpu.memory_space<vmem>>) attributes {dimension_semantics = [], scalar_prefetch = 0 : i64, scratch_operands = 0 : i64, tpu.core_type = #tpu.core_type<tc>} {
    %c0 = arith.constant 0 : index
    %c0_0 = arith.constant 0 : index
    %0 = vector.load %arg0[%c0, %c0_0] : memref<16x1xi32, #tpu.memory_space<vmem>>, vector<16x1xi32>
    %1 = tpu.iota {dimensions = array<i32: 1>} : vector<16x128xi32>
    %2 = vector.broadcast %0 : vector<16x1xi32> to vector<16x128xi32>
    %3 = arith.cmpi eq, %2, %1 : vector<16x128xi32>
    %4 = arith.extui %3 : vector<16x128xi1> to vector<16x128xi32>
    %5 = arith.sitofp %4 : vector<16x128xi32> to vector<16x128xf32>
    %c0_1 = arith.constant 0 : index
    %c0_2 = arith.constant 0 : index
    %6 = vector.load %arg4[%c0_1, %c0_2] : memref<144x128xf32, #tpu.memory_space<vmem>>, vector<128x32xf32>
    %cst = arith.constant dense<0.000000e+00> : vector<16x32xf32>
    %7 = tpu.matmul %5, %6, %cst {dimension_numbers = #tpu.dot_dimension_numbers<[1], [0], [0], [1], [0, 0, 1, 1], [], []>} : vector<16x128xf32>, vector<128x32xf32>, vector<16x32xf32> -> vector<16x32xf32>
    %c128 = arith.constant 128 : index
    %c0_3 = arith.constant 0 : index
    %8 = vector.load %arg4[%c128, %c0_3] : memref<144x128xf32, #tpu.memory_space<vmem>>, vector<1x32xf32>
    %c129 = arith.constant 129 : index
    %c0_4 = arith.constant 0 : index
    %9 = vector.load %arg4[%c129, %c0_4] : memref<144x128xf32, #tpu.memory_space<vmem>>, vector<1x32xf32>
    %cst_5 = arith.constant dense<0.000000e+00> : vector<16xf32>
    %10 = vector.multi_reduction <add>, %7, %cst_5 [1] : vector<16x32xf32> to vector<16xf32>
    %11 = vector.shape_cast %10 : vector<16xf32> to vector<16x1xf32>
    %cst_6 = arith.constant 3.200000e+01 : f32
    %12 = vector.broadcast %cst_6 : f32 to vector<16x1xf32>
    %13 = arith.divf %11, %12 : vector<16x1xf32>
    %14 = vector.broadcast %13 : vector<16x1xf32> to vector<16x32xf32>
    %15 = arith.subf %7, %14 : vector<16x32xf32>
    %16 = arith.mulf %15, %15 : vector<16x32xf32>
    %cst_7 = arith.constant dense<0.000000e+00> : vector<16xf32>
    %17 = vector.multi_reduction <add>, %16, %cst_7 [1] : vector<16x32xf32> to vector<16xf32>
    %18 = vector.shape_cast %17 : vector<16xf32> to vector<16x1xf32>
    %cst_8 = arith.constant 3.200000e+01 : f32
    %19 = vector.broadcast %cst_8 : f32 to vector<16x1xf32>
    %20 = arith.divf %18, %19 : vector<16x1xf32>
    %21 = vector.broadcast %13 : vector<16x1xf32> to vector<16x32xf32>
    %22 = arith.subf %7, %21 : vector<16x32xf32>
    %cst_9 = arith.constant 1.000000e-07 : f32
    %23 = vector.broadcast %cst_9 : f32 to vector<16x1xf32>
    %24 = arith.addf %20, %23 : vector<16x1xf32>
    %25 = math.rsqrt %24 : vector<16x1xf32>
    %26 = vector.broadcast %25 : vector<16x1xf32> to vector<16x32xf32>
    %27 = arith.mulf %22, %26 : vector<16x32xf32>
    %28 = vector.broadcast %8 : vector<1x32xf32> to vector<16x32xf32>
    %29 = arith.mulf %27, %28 : vector<16x32xf32>
    %30 = vector.broadcast %9 : vector<1x32xf32> to vector<16x32xf32>
    %31 = arith.addf %29, %30 : vector<16x32xf32>
    %c0_10 = arith.constant 0 : index
    %c0_11 = arith.constant 0 : index
    %32 = vector.load %arg1[%c0_10, %c0_11] : memref<2x8xf32, #tpu.memory_space<vmem>>, vector<2x8xf32>
    %cst_12 = arith.constant 1.000000e+00 : f32
    %33 = vector.broadcast %cst_12 : f32 to vector<2x8xf32>
    %34 = arith.subf %33, %32 : vector<2x8xf32>
    %cst_13 = arith.constant -1.000000e+09 : f32
    %35 = vector.broadcast %cst_13 : f32 to vector<2x8xf32>
    %36 = arith.mulf %34, %35 : vector<2x8xf32>
    %37 = vector.shape_cast %36 : vector<2x8xf32> to vector<2x1x1x8xf32>
    %38 = vector.shape_cast %37 : vector<2x1x1x8xf32> to vector<2x1x1x8xf32>
    %39 = vector.broadcast %38 : vector<2x1x1x8xf32> to vector<2x4x8x8xf32>
    %40 = vector.shape_cast %39 : vector<2x4x8x8xf32> to vector<8x8x8xf32>
    %c0_14 = arith.constant 0 : index
    %c0_15 = arith.constant 0 : index
    %c0_16 = arith.constant 0 : index
    %41 = vector.load %arg2[%c0_14, %c0_15, %c0_16] : memref<3x34x512xbf16, #tpu.memory_space<vmem>>, vector<1x34x512xbf16>
    %42 = vector.shape_cast %41 : vector<1x34x512xbf16> to vector<34x512xbf16>
    %43 = arith.truncf %31 : vector<16x32xf32> to vector<16x32xbf16>
    %44 = vector.extract_strided_slice %42 {offsets = [0, 0], sizes = [32, 384], strides = [1, 1]} : vector<34x512xbf16> to vector<32x384xbf16>
    %cst_17 = arith.constant dense<0.000000e+00> : vector<16x384xf32>
    %45 = tpu.matmul %43, %44, %cst_17 {dimension_numbers = #tpu.dot_dimension_numbers<[1], [0], [0], [1], [0, 0, 1, 1], [], []>} : vector<16x32xbf16>, vector<32x384xbf16>, vector<16x384xf32> -> vector<16x384xf32>
    %46 = vector.extract_strided_slice %42 {offsets = [32, 0], sizes = [1, 384], strides = [1, 1]} : vector<34x512xbf16> to vector<1x384xbf16>
    %47 = arith.extf %46 : vector<1x384xbf16> to vector<1x384xf32>
    %48 = vector.broadcast %47 : vector<1x384xf32> to vector<16x384xf32>
    %49 = arith.addf %45, %48 : vector<16x384xf32>
    %50 = vector.extract_strided_slice %49 {offsets = [0, 0], sizes = [16, 32], strides = [1, 1]} : vector<16x384xf32> to vector<16x32xf32>
    %51 = vector.shape_cast %50 : vector<16x32xf32> to vector<2x8x32xf32>
    %52 = vector.extract_strided_slice %49 {offsets = [0, 128], sizes = [16, 32], strides = [1, 1]} : vector<16x384xf32> to vector<16x32xf32>
    %53 = vector.shape_cast %52 : vector<16x32xf32> to vector<2x8x32xf32>
    %54 = vector.extract_strided_slice %49 {offsets = [0, 256], sizes = [16, 32], strides = [1, 1]} : vector<16x384xf32> to vector<16x32xf32>
    %55 = vector.shape_cast %54 : vector<16x32xf32> to vector<2x8x32xf32>
    %56 = vector.extract_strided_slice %51 {offsets = [0, 0, 0], sizes = [2, 8, 8], strides = [1, 1, 1]} : vector<2x8x32xf32> to vector<2x8x8xf32>
    %57 = vector.extract_strided_slice %51 {offsets = [0, 0, 8], sizes = [2, 8, 8], strides = [1, 1, 1]} : vector<2x8x32xf32> to vector<2x8x8xf32>
    %58 = vector.extract_strided_slice %51 {offsets = [0, 0, 16], sizes = [2, 8, 8], strides = [1, 1, 1]} : vector<2x8x32xf32> to vector<2x8x8xf32>
    %59 = vector.extract_strided_slice %51 {offsets = [0, 0, 24], sizes = [2, 8, 8], strides = [1, 1, 1]} : vector<2x8x32xf32> to vector<2x8x8xf32>
    %60 = vector.shape_cast %56 : vector<2x8x8xf32> to vector<2x1x8x8xf32>
    %61 = vector.shape_cast %57 : vector<2x8x8xf32> to vector<2x1x8x8xf32>
    %62 = vector.shape_cast %58 : vector<2x8x8xf32> to vector<2x1x8x8xf32>
    %63 = vector.shape_cast %59 : vector<2x8x8xf32> to vector<2x1x8x8xf32>
    %64 = tpu.concatenate %60, %61, %62, %63 in 1 : vector<2x1x8x8xf32>, vector<2x1x8x8xf32>, vector<2x1x8x8xf32>, vector<2x1x8x8xf32> -> vector<2x4x8x8xf32>
    %65 = vector.shape_cast %64 : vector<2x4x8x8xf32> to vector<8x8x8xf32>
    %66 = vector.extract_strided_slice %53 {offsets = [0, 0, 0], sizes = [2, 8, 8], strides = [1, 1, 1]} : vector<2x8x32xf32> to vector<2x8x8xf32>
    %67 = vector.extract_strided_slice %53 {offsets = [0, 0, 8], sizes = [2, 8, 8], strides = [1, 1, 1]} : vector<2x8x32xf32> to vector<2x8x8xf32>
    %68 = vector.extract_strided_slice %53 {offsets = [0, 0, 16], sizes = [2, 8, 8], strides = [1, 1, 1]} : vector<2x8x32xf32> to vector<2x8x8xf32>
    %69 = vector.extract_strided_slice %53 {offsets = [0, 0, 24], sizes = [2, 8, 8], strides = [1, 1, 1]} : vector<2x8x32xf32> to vector<2x8x8xf32>
    %70 = vector.shape_cast %66 : vector<2x8x8xf32> to vector<2x1x8x8xf32>
    %71 = vector.shape_cast %67 : vector<2x8x8xf32> to vector<2x1x8x8xf32>
    %72 = vector.shape_cast %68 : vector<2x8x8xf32> to vector<2x1x8x8xf32>
    %73 = vector.shape_cast %69 : vector<2x8x8xf32> to vector<2x1x8x8xf32>
    %74 = tpu.concatenate %70, %71, %72, %73 in 1 : vector<2x1x8x8xf32>, vector<2x1x8x8xf32>, vector<2x1x8x8xf32>, vector<2x1x8x8xf32> -> vector<2x4x8x8xf32>
    %75 = vector.shape_cast %74 : vector<2x4x8x8xf32> to vector<8x8x8xf32>
    %76 = vector.extract_strided_slice %55 {offsets = [0, 0, 0], sizes = [2, 8, 8], strides = [1, 1, 1]} : vector<2x8x32xf32> to vector<2x8x8xf32>
    %77 = vector.extract_strided_slice %55 {offsets = [0, 0, 8], sizes = [2, 8, 8], strides = [1, 1, 1]} : vector<2x8x32xf32> to vector<2x8x8xf32>
    %78 = vector.extract_strided_slice %55 {offsets = [0, 0, 16], sizes = [2, 8, 8], strides = [1, 1, 1]} : vector<2x8x32xf32> to vector<2x8x8xf32>
    %79 = vector.extract_strided_slice %55 {offsets = [0, 0, 24], sizes = [2, 8, 8], strides = [1, 1, 1]} : vector<2x8x32xf32> to vector<2x8x8xf32>
    %80 = vector.shape_cast %76 : vector<2x8x8xf32> to vector<2x1x8x8xf32>
    %81 = vector.shape_cast %77 : vector<2x8x8xf32> to vector<2x1x8x8xf32>
    %82 = vector.shape_cast %78 : vector<2x8x8xf32> to vector<2x1x8x8xf32>
    %83 = vector.shape_cast %79 : vector<2x8x8xf32> to vector<2x1x8x8xf32>
    %84 = tpu.concatenate %80, %81, %82, %83 in 1 : vector<2x1x8x8xf32>, vector<2x1x8x8xf32>, vector<2x1x8x8xf32>, vector<2x1x8x8xf32> -> vector<2x4x8x8xf32>
    %85 = vector.shape_cast %84 : vector<2x4x8x8xf32> to vector<8x8x8xf32>
    %86 = vector.shape_cast %65 : vector<8x8x8xf32> to vector<8x8x1x8xf32>
    %87 = vector.shape_cast %75 : vector<8x8x8xf32> to vector<8x1x8x8xf32>
    %88 = vector.broadcast %86 : vector<8x8x1x8xf32> to vector<8x8x8x8xf32>
    %89 = vector.broadcast %87 : vector<8x1x8x8xf32> to vector<8x8x8x8xf32>
    %90 = arith.mulf %88, %89 : vector<8x8x8x8xf32>
    %cst_18 = arith.constant dense<0.000000e+00> : vector<8x8x8xf32>
    %91 = vector.multi_reduction <add>, %90, %cst_18 [3] : vector<8x8x8x8xf32> to vector<8x8x8xf32>
    %cst_19 = arith.constant 0.353553385 : f32
    %92 = vector.broadcast %cst_19 : f32 to vector<8x8x8xf32>
    %93 = arith.mulf %91, %92 : vector<8x8x8xf32>
    %94 = arith.addf %93, %40 : vector<8x8x8xf32>
    %cst_20 = arith.constant dense<0xFF800000> : vector<8x8xf32>
    %95 = vector.multi_reduction <maximumf>, %94, %cst_20 [2] : vector<8x8x8xf32> to vector<8x8xf32>
    %96 = vector.shape_cast %95 : vector<8x8xf32> to vector<8x8x1xf32>
    %97 = vector.broadcast %96 : vector<8x8x1xf32> to vector<8x8x8xf32>
    %98 = arith.subf %94, %97 : vector<8x8x8xf32>
    %99 = math.exp %98 : vector<8x8x8xf32>
    %cst_21 = arith.constant dense<0.000000e+00> : vector<8x8xf32>
    %100 = vector.multi_reduction <add>, %99, %cst_21 [2] : vector<8x8x8xf32> to vector<8x8xf32>
    %101 = vector.shape_cast %100 : vector<8x8xf32> to vector<8x8x1xf32>
    %102 = tpu.reciprocal %101 {approx = true} : vector<8x8x1xf32> -> vector<8x8x1xf32>
    %103 = vector.broadcast %102 : vector<8x8x1xf32> to vector<8x8x8xf32>
    %104 = arith.mulf %99, %103 : vector<8x8x8xf32>
    %105 = vector.shape_cast %104 : vector<8x8x8xf32> to vector<8x8x8x1xf32>
    %106 = vector.shape_cast %85 : vector<8x8x8xf32> to vector<8x1x8x8xf32>
    %107 = vector.broadcast %105 : vector<8x8x8x1xf32> to vector<8x8x8x8xf32>
    %108 = vector.broadcast %106 : vector<8x1x8x8xf32> to vector<8x8x8x8xf32>
    %109 = arith.mulf %107, %108 : vector<8x8x8x8xf32>
    %cst_22 = arith.constant dense<0.000000e+00> : vector<8x8x8xf32>
    %110 = vector.multi_reduction <add>, %109, %cst_22 [2] : vector<8x8x8x8xf32> to vector<8x8x8xf32>
    %111 = vector.shape_cast %110 : vector<8x8x8xf32> to vector<2x4x8x8xf32>
    %112 = vector.extract_strided_slice %111 {offsets = [0, 0, 0, 0], sizes = [2, 1, 8, 8], strides = [1, 1, 1, 1]} : vector<2x4x8x8xf32> to vector<2x1x8x8xf32>
    %113 = vector.shape_cast %112 : vector<2x1x8x8xf32> to vector<2x8x8xf32>
    %114 = vector.extract_strided_slice %111 {offsets = [0, 1, 0, 0], sizes = [2, 1, 8, 8], strides = [1, 1, 1, 1]} : vector<2x4x8x8xf32> to vector<2x1x8x8xf32>
    %115 = vector.shape_cast %114 : vector<2x1x8x8xf32> to vector<2x8x8xf32>
    %116 = vector.extract_strided_slice %111 {offsets = [0, 2, 0, 0], sizes = [2, 1, 8, 8], strides = [1, 1, 1, 1]} : vector<2x4x8x8xf32> to vector<2x1x8x8xf32>
    %117 = vector.shape_cast %116 : vector<2x1x8x8xf32> to vector<2x8x8xf32>
    %118 = vector.extract_strided_slice %111 {offsets = [0, 3, 0, 0], sizes = [2, 1, 8, 8], strides = [1, 1, 1, 1]} : vector<2x4x8x8xf32> to vector<2x1x8x8xf32>
    %119 = vector.shape_cast %118 : vector<2x1x8x8xf32> to vector<2x8x8xf32>
    %120 = tpu.concatenate %113, %115, %117, %119 in 2 : vector<2x8x8xf32>, vector<2x8x8xf32>, vector<2x8x8xf32>, vector<2x8x8xf32> -> vector<2x8x32xf32>
    %121 = vector.shape_cast %120 : vector<2x8x32xf32> to vector<16x32xf32>
    %122 = arith.truncf %121 : vector<16x32xf32> to vector<16x32xbf16>
    %123 = vector.extract_strided_slice %42 {offsets = [0, 384], sizes = [32, 32], strides = [1, 1]} : vector<34x512xbf16> to vector<32x32xbf16>
    %cst_23 = arith.constant dense<0.000000e+00> : vector<16x32xf32>
    %124 = tpu.matmul %122, %123, %cst_23 {dimension_numbers = #tpu.dot_dimension_numbers<[1], [0], [0], [1], [0, 0, 1, 1], [], []>} : vector<16x32xbf16>, vector<32x32xbf16>, vector<16x32xf32> -> vector<16x32xf32>
    %125 = vector.extract_strided_slice %42 {offsets = [32, 384], sizes = [1, 32], strides = [1, 1]} : vector<34x512xbf16> to vector<1x32xbf16>
    %126 = arith.extf %125 : vector<1x32xbf16> to vector<1x32xf32>
    %127 = vector.broadcast %126 : vector<1x32xf32> to vector<16x32xf32>
    %128 = arith.addf %124, %127 : vector<16x32xf32>
    %129 = arith.addf %31, %128 : vector<16x32xf32>
    %c132 = arith.constant 132 : index
    %c0_24 = arith.constant 0 : index
    %130 = vector.load %arg4[%c132, %c0_24] : memref<144x128xf32, #tpu.memory_space<vmem>>, vector<1x32xf32>
    %c133 = arith.constant 133 : index
    %c0_25 = arith.constant 0 : index
    %131 = vector.load %arg4[%c133, %c0_25] : memref<144x128xf32, #tpu.memory_space<vmem>>, vector<1x32xf32>
    %cst_26 = arith.constant dense<0.000000e+00> : vector<16xf32>
    %132 = vector.multi_reduction <add>, %129, %cst_26 [1] : vector<16x32xf32> to vector<16xf32>
    %133 = vector.shape_cast %132 : vector<16xf32> to vector<16x1xf32>
    %cst_27 = arith.constant 3.200000e+01 : f32
    %134 = vector.broadcast %cst_27 : f32 to vector<16x1xf32>
    %135 = arith.divf %133, %134 : vector<16x1xf32>
    %136 = vector.broadcast %135 : vector<16x1xf32> to vector<16x32xf32>
    %137 = arith.subf %129, %136 : vector<16x32xf32>
    %138 = arith.mulf %137, %137 : vector<16x32xf32>
    %cst_28 = arith.constant dense<0.000000e+00> : vector<16xf32>
    %139 = vector.multi_reduction <add>, %138, %cst_28 [1] : vector<16x32xf32> to vector<16xf32>
    %140 = vector.shape_cast %139 : vector<16xf32> to vector<16x1xf32>
    %cst_29 = arith.constant 3.200000e+01 : f32
    %141 = vector.broadcast %cst_29 : f32 to vector<16x1xf32>
    %142 = arith.divf %140, %141 : vector<16x1xf32>
    %143 = vector.broadcast %135 : vector<16x1xf32> to vector<16x32xf32>
    %144 = arith.subf %129, %143 : vector<16x32xf32>
    %cst_30 = arith.constant 1.000000e-07 : f32
    %145 = vector.broadcast %cst_30 : f32 to vector<16x1xf32>
    %146 = arith.addf %142, %145 : vector<16x1xf32>
    %147 = math.rsqrt %146 : vector<16x1xf32>
    %148 = vector.broadcast %147 : vector<16x1xf32> to vector<16x32xf32>
    %149 = arith.mulf %144, %148 : vector<16x32xf32>
    %150 = vector.broadcast %130 : vector<1x32xf32> to vector<16x32xf32>
    %151 = arith.mulf %149, %150 : vector<16x32xf32>
    %152 = vector.broadcast %131 : vector<1x32xf32> to vector<16x32xf32>
    %153 = arith.addf %151, %152 : vector<16x32xf32>
    %c0_31 = arith.constant 0 : index
    %c0_32 = arith.constant 0 : index
    %c0_33 = arith.constant 0 : index
    %154 = vector.load %arg3[%c0_31, %c0_32, %c0_33] : memref<2x96x64xbf16, #tpu.memory_space<vmem>>, vector<1x96x64xbf16>
    %155 = vector.shape_cast %154 : vector<1x96x64xbf16> to vector<96x64xbf16>
    %156 = arith.truncf %153 : vector<16x32xf32> to vector<16x32xbf16>
    %157 = vector.extract_strided_slice %155 {offsets = [0, 0], sizes = [32, 64], strides = [1, 1]} : vector<96x64xbf16> to vector<32x64xbf16>
    %cst_34 = arith.constant dense<0.000000e+00> : vector<16x64xf32>
    %158 = tpu.matmul %156, %157, %cst_34 {dimension_numbers = #tpu.dot_dimension_numbers<[1], [0], [0], [1], [0, 0, 1, 1], [], []>} : vector<16x32xbf16>, vector<32x64xbf16>, vector<16x64xf32> -> vector<16x64xf32>
    %c137 = arith.constant 137 : index
    %c0_35 = arith.constant 0 : index
    %159 = vector.load %arg4[%c137, %c0_35] : memref<144x128xf32, #tpu.memory_space<vmem>>, vector<1x64xf32>
    %160 = vector.broadcast %159 : vector<1x64xf32> to vector<16x64xf32>
    %161 = arith.addf %158, %160 : vector<16x64xf32>
    %cst_36 = arith.constant 5.000000e-01 : f32
    %162 = vector.broadcast %cst_36 : f32 to vector<16x64xf32>
    %163 = arith.mulf %162, %161 : vector<16x64xf32>
    %cst_37 = arith.constant 4.471500e-02 : f32
    %164 = vector.broadcast %cst_37 : f32 to vector<16x64xf32>
    %165 = arith.mulf %164, %161 : vector<16x64xf32>
    %166 = arith.mulf %165, %161 : vector<16x64xf32>
    %167 = arith.mulf %166, %161 : vector<16x64xf32>
    %168 = arith.addf %161, %167 : vector<16x64xf32>
    %cst_38 = arith.constant 0.797884583 : f32
    %169 = vector.broadcast %cst_38 : f32 to vector<16x64xf32>
    %170 = arith.mulf %169, %168 : vector<16x64xf32>
    %171 = math.tanh %170 : vector<16x64xf32>
    %cst_39 = arith.constant 1.000000e+00 : f32
    %172 = vector.broadcast %cst_39 : f32 to vector<16x64xf32>
    %173 = arith.addf %172, %171 : vector<16x64xf32>
    %174 = arith.mulf %163, %173 : vector<16x64xf32>
    %175 = arith.truncf %174 : vector<16x64xf32> to vector<16x64xbf16>
    %176 = vector.extract_strided_slice %155 {offsets = [32, 0], sizes = [64, 32], strides = [1, 1]} : vector<96x64xbf16> to vector<64x32xbf16>
    %cst_40 = arith.constant dense<0.000000e+00> : vector<16x32xf32>
    %177 = tpu.matmul %175, %176, %cst_40 {dimension_numbers = #tpu.dot_dimension_numbers<[1], [0], [0], [1], [0, 0, 1, 1], [], []>} : vector<16x64xbf16>, vector<64x32xbf16>, vector<16x32xf32> -> vector<16x32xf32>
    %c136 = arith.constant 136 : index
    %c0_41 = arith.constant 0 : index
    %178 = vector.load %arg4[%c136, %c0_41] : memref<144x128xf32, #tpu.memory_space<vmem>>, vector<1x32xf32>
    %179 = vector.broadcast %178 : vector<1x32xf32> to vector<16x32xf32>
    %180 = arith.addf %177, %179 : vector<16x32xf32>
    %181 = arith.addf %153, %180 : vector<16x32xf32>
    %c134 = arith.constant 134 : index
    %c0_42 = arith.constant 0 : index
    %182 = vector.load %arg4[%c134, %c0_42] : memref<144x128xf32, #tpu.memory_space<vmem>>, vector<1x32xf32>
    %c135 = arith.constant 135 : index
    %c0_43 = arith.constant 0 : index
    %183 = vector.load %arg4[%c135, %c0_43] : memref<144x128xf32, #tpu.memory_space<vmem>>, vector<1x32xf32>
    %cst_44 = arith.constant dense<0.000000e+00> : vector<16xf32>
    %184 = vector.multi_reduction <add>, %181, %cst_44 [1] : vector<16x32xf32> to vector<16xf32>
    %185 = vector.shape_cast %184 : vector<16xf32> to vector<16x1xf32>
    %cst_45 = arith.constant 3.200000e+01 : f32
    %186 = vector.broadcast %cst_45 : f32 to vector<16x1xf32>
    %187 = arith.divf %185, %186 : vector<16x1xf32>
    %188 = vector.broadcast %187 : vector<16x1xf32> to vector<16x32xf32>
    %189 = arith.subf %181, %188 : vector<16x32xf32>
    %190 = arith.mulf %189, %189 : vector<16x32xf32>
    %cst_46 = arith.constant dense<0.000000e+00> : vector<16xf32>
    %191 = vector.multi_reduction <add>, %190, %cst_46 [1] : vector<16x32xf32> to vector<16xf32>
    %192 = vector.shape_cast %191 : vector<16xf32> to vector<16x1xf32>
    %cst_47 = arith.constant 3.200000e+01 : f32
    %193 = vector.broadcast %cst_47 : f32 to vector<16x1xf32>
    %194 = arith.divf %192, %193 : vector<16x1xf32>
    %195 = vector.broadcast %187 : vector<16x1xf32> to vector<16x32xf32>
    %196 = arith.subf %181, %195 : vector<16x32xf32>
    %cst_48 = arith.constant 1.000000e-07 : f32
    %197 = vector.broadcast %cst_48 : f32 to vector<16x1xf32>
    %198 = arith.addf %194, %197 : vector<16x1xf32>
    %199 = math.rsqrt %198 : vector<16x1xf32>
    %200 = vector.broadcast %199 : vector<16x1xf32> to vector<16x32xf32>
    %201 = arith.mulf %196, %200 : vector<16x32xf32>
    %202 = vector.broadcast %182 : vector<1x32xf32> to vector<16x32xf32>
    %203 = arith.mulf %201, %202 : vector<16x32xf32>
    %204 = vector.broadcast %183 : vector<1x32xf32> to vector<16x32xf32>
    %205 = arith.addf %203, %204 : vector<16x32xf32>
    %c1 = arith.constant 1 : index
    %c0_49 = arith.constant 0 : index
    %c0_50 = arith.constant 0 : index
    %206 = vector.load %arg2[%c1, %c0_49, %c0_50] : memref<3x34x512xbf16, #tpu.memory_space<vmem>>, vector<1x34x512xbf16>
    %207 = vector.shape_cast %206 : vector<1x34x512xbf16> to vector<34x512xbf16>
    %208 = arith.truncf %205 : vector<16x32xf32> to vector<16x32xbf16>
    %209 = vector.extract_strided_slice %207 {offsets = [0, 0], sizes = [32, 384], strides = [1, 1]} : vector<34x512xbf16> to vector<32x384xbf16>
    %cst_51 = arith.constant dense<0.000000e+00> : vector<16x384xf32>
    %210 = tpu.matmul %208, %209, %cst_51 {dimension_numbers = #tpu.dot_dimension_numbers<[1], [0], [0], [1], [0, 0, 1, 1], [], []>} : vector<16x32xbf16>, vector<32x384xbf16>, vector<16x384xf32> -> vector<16x384xf32>
    %211 = vector.extract_strided_slice %207 {offsets = [32, 0], sizes = [1, 384], strides = [1, 1]} : vector<34x512xbf16> to vector<1x384xbf16>
    %212 = arith.extf %211 : vector<1x384xbf16> to vector<1x384xf32>
    %213 = vector.broadcast %212 : vector<1x384xf32> to vector<16x384xf32>
    %214 = arith.addf %210, %213 : vector<16x384xf32>
    %215 = vector.extract_strided_slice %214 {offsets = [0, 0], sizes = [16, 32], strides = [1, 1]} : vector<16x384xf32> to vector<16x32xf32>
    %216 = vector.shape_cast %215 : vector<16x32xf32> to vector<2x8x32xf32>
    %217 = vector.extract_strided_slice %214 {offsets = [0, 128], sizes = [16, 32], strides = [1, 1]} : vector<16x384xf32> to vector<16x32xf32>
    %218 = vector.shape_cast %217 : vector<16x32xf32> to vector<2x8x32xf32>
    %219 = vector.extract_strided_slice %214 {offsets = [0, 256], sizes = [16, 32], strides = [1, 1]} : vector<16x384xf32> to vector<16x32xf32>
    %220 = vector.shape_cast %219 : vector<16x32xf32> to vector<2x8x32xf32>
    %221 = vector.extract_strided_slice %216 {offsets = [0, 0, 0], sizes = [2, 8, 8], strides = [1, 1, 1]} : vector<2x8x32xf32> to vector<2x8x8xf32>
    %222 = vector.extract_strided_slice %216 {offsets = [0, 0, 8], sizes = [2, 8, 8], strides = [1, 1, 1]} : vector<2x8x32xf32> to vector<2x8x8xf32>
    %223 = vector.extract_strided_slice %216 {offsets = [0, 0, 16], sizes = [2, 8, 8], strides = [1, 1, 1]} : vector<2x8x32xf32> to vector<2x8x8xf32>
    %224 = vector.extract_strided_slice %216 {offsets = [0, 0, 24], sizes = [2, 8, 8], strides = [1, 1, 1]} : vector<2x8x32xf32> to vector<2x8x8xf32>
    %225 = vector.shape_cast %221 : vector<2x8x8xf32> to vector<2x1x8x8xf32>
    %226 = vector.shape_cast %222 : vector<2x8x8xf32> to vector<2x1x8x8xf32>
    %227 = vector.shape_cast %223 : vector<2x8x8xf32> to vector<2x1x8x8xf32>
    %228 = vector.shape_cast %224 : vector<2x8x8xf32> to vector<2x1x8x8xf32>
    %229 = tpu.concatenate %225, %226, %227, %228 in 1 : vector<2x1x8x8xf32>, vector<2x1x8x8xf32>, vector<2x1x8x8xf32>, vector<2x1x8x8xf32> -> vector<2x4x8x8xf32>
    %230 = vector.shape_cast %229 : vector<2x4x8x8xf32> to vector<8x8x8xf32>
    %231 = vector.extract_strided_slice %218 {offsets = [0, 0, 0], sizes = [2, 8, 8], strides = [1, 1, 1]} : vector<2x8x32xf32> to vector<2x8x8xf32>
    %232 = vector.extract_strided_slice %218 {offsets = [0, 0, 8], sizes = [2, 8, 8], strides = [1, 1, 1]} : vector<2x8x32xf32> to vector<2x8x8xf32>
    %233 = vector.extract_strided_slice %218 {offsets = [0, 0, 16], sizes = [2, 8, 8], strides = [1, 1, 1]} : vector<2x8x32xf32> to vector<2x8x8xf32>
    %234 = vector.extract_strided_slice %218 {offsets = [0, 0, 24], sizes = [2, 8, 8], strides = [1, 1, 1]} : vector<2x8x32xf32> to vector<2x8x8xf32>
    %235 = vector.shape_cast %231 : vector<2x8x8xf32> to vector<2x1x8x8xf32>
    %236 = vector.shape_cast %232 : vector<2x8x8xf32> to vector<2x1x8x8xf32>
    %237 = vector.shape_cast %233 : vector<2x8x8xf32> to vector<2x1x8x8xf32>
    %238 = vector.shape_cast %234 : vector<2x8x8xf32> to vector<2x1x8x8xf32>
    %239 = tpu.concatenate %235, %236, %237, %238 in 1 : vector<2x1x8x8xf32>, vector<2x1x8x8xf32>, vector<2x1x8x8xf32>, vector<2x1x8x8xf32> -> vector<2x4x8x8xf32>
    %240 = vector.shape_cast %239 : vector<2x4x8x8xf32> to vector<8x8x8xf32>
    %241 = vector.extract_strided_slice %220 {offsets = [0, 0, 0], sizes = [2, 8, 8], strides = [1, 1, 1]} : vector<2x8x32xf32> to vector<2x8x8xf32>
    %242 = vector.extract_strided_slice %220 {offsets = [0, 0, 8], sizes = [2, 8, 8], strides = [1, 1, 1]} : vector<2x8x32xf32> to vector<2x8x8xf32>
    %243 = vector.extract_strided_slice %220 {offsets = [0, 0, 16], sizes = [2, 8, 8], strides = [1, 1, 1]} : vector<2x8x32xf32> to vector<2x8x8xf32>
    %244 = vector.extract_strided_slice %220 {offsets = [0, 0, 24], sizes = [2, 8, 8], strides = [1, 1, 1]} : vector<2x8x32xf32> to vector<2x8x8xf32>
    %245 = vector.shape_cast %241 : vector<2x8x8xf32> to vector<2x1x8x8xf32>
    %246 = vector.shape_cast %242 : vector<2x8x8xf32> to vector<2x1x8x8xf32>
    %247 = vector.shape_cast %243 : vector<2x8x8xf32> to vector<2x1x8x8xf32>
    %248 = vector.shape_cast %244 : vector<2x8x8xf32> to vector<2x1x8x8xf32>
    %249 = tpu.concatenate %245, %246, %247, %248 in 1 : vector<2x1x8x8xf32>, vector<2x1x8x8xf32>, vector<2x1x8x8xf32>, vector<2x1x8x8xf32> -> vector<2x4x8x8xf32>
    %250 = vector.shape_cast %249 : vector<2x4x8x8xf32> to vector<8x8x8xf32>
    %251 = vector.shape_cast %230 : vector<8x8x8xf32> to vector<8x8x1x8xf32>
    %252 = vector.shape_cast %240 : vector<8x8x8xf32> to vector<8x1x8x8xf32>
    %253 = vector.broadcast %251 : vector<8x8x1x8xf32> to vector<8x8x8x8xf32>
    %254 = vector.broadcast %252 : vector<8x1x8x8xf32> to vector<8x8x8x8xf32>
    %255 = arith.mulf %253, %254 : vector<8x8x8x8xf32>
    %cst_52 = arith.constant dense<0.000000e+00> : vector<8x8x8xf32>
    %256 = vector.multi_reduction <add>, %255, %cst_52 [3] : vector<8x8x8x8xf32> to vector<8x8x8xf32>
    %cst_53 = arith.constant 0.353553385 : f32
    %257 = vector.broadcast %cst_53 : f32 to vector<8x8x8xf32>
    %258 = arith.mulf %256, %257 : vector<8x8x8xf32>
    %259 = arith.addf %258, %40 : vector<8x8x8xf32>
    %cst_54 = arith.constant dense<0xFF800000> : vector<8x8xf32>
    %260 = vector.multi_reduction <maximumf>, %259, %cst_54 [2] : vector<8x8x8xf32> to vector<8x8xf32>
    %261 = vector.shape_cast %260 : vector<8x8xf32> to vector<8x8x1xf32>
    %262 = vector.broadcast %261 : vector<8x8x1xf32> to vector<8x8x8xf32>
    %263 = arith.subf %259, %262 : vector<8x8x8xf32>
    %264 = math.exp %263 : vector<8x8x8xf32>
    %cst_55 = arith.constant dense<0.000000e+00> : vector<8x8xf32>
    %265 = vector.multi_reduction <add>, %264, %cst_55 [2] : vector<8x8x8xf32> to vector<8x8xf32>
    %266 = vector.shape_cast %265 : vector<8x8xf32> to vector<8x8x1xf32>
    %267 = tpu.reciprocal %266 {approx = true} : vector<8x8x1xf32> -> vector<8x8x1xf32>
    %268 = vector.broadcast %267 : vector<8x8x1xf32> to vector<8x8x8xf32>
    %269 = arith.mulf %264, %268 : vector<8x8x8xf32>
    %270 = vector.shape_cast %269 : vector<8x8x8xf32> to vector<8x8x8x1xf32>
    %271 = vector.shape_cast %250 : vector<8x8x8xf32> to vector<8x1x8x8xf32>
    %272 = vector.broadcast %270 : vector<8x8x8x1xf32> to vector<8x8x8x8xf32>
    %273 = vector.broadcast %271 : vector<8x1x8x8xf32> to vector<8x8x8x8xf32>
    %274 = arith.mulf %272, %273 : vector<8x8x8x8xf32>
    %cst_56 = arith.constant dense<0.000000e+00> : vector<8x8x8xf32>
    %275 = vector.multi_reduction <add>, %274, %cst_56 [2] : vector<8x8x8x8xf32> to vector<8x8x8xf32>
    %276 = vector.shape_cast %275 : vector<8x8x8xf32> to vector<2x4x8x8xf32>
    %277 = vector.extract_strided_slice %276 {offsets = [0, 0, 0, 0], sizes = [2, 1, 8, 8], strides = [1, 1, 1, 1]} : vector<2x4x8x8xf32> to vector<2x1x8x8xf32>
    %278 = vector.shape_cast %277 : vector<2x1x8x8xf32> to vector<2x8x8xf32>
    %279 = vector.extract_strided_slice %276 {offsets = [0, 1, 0, 0], sizes = [2, 1, 8, 8], strides = [1, 1, 1, 1]} : vector<2x4x8x8xf32> to vector<2x1x8x8xf32>
    %280 = vector.shape_cast %279 : vector<2x1x8x8xf32> to vector<2x8x8xf32>
    %281 = vector.extract_strided_slice %276 {offsets = [0, 2, 0, 0], sizes = [2, 1, 8, 8], strides = [1, 1, 1, 1]} : vector<2x4x8x8xf32> to vector<2x1x8x8xf32>
    %282 = vector.shape_cast %281 : vector<2x1x8x8xf32> to vector<2x8x8xf32>
    %283 = vector.extract_strided_slice %276 {offsets = [0, 3, 0, 0], sizes = [2, 1, 8, 8], strides = [1, 1, 1, 1]} : vector<2x4x8x8xf32> to vector<2x1x8x8xf32>
    %284 = vector.shape_cast %283 : vector<2x1x8x8xf32> to vector<2x8x8xf32>
    %285 = tpu.concatenate %278, %280, %282, %284 in 2 : vector<2x8x8xf32>, vector<2x8x8xf32>, vector<2x8x8xf32>, vector<2x8x8xf32> -> vector<2x8x32xf32>
    %286 = vector.shape_cast %285 : vector<2x8x32xf32> to vector<16x32xf32>
    %287 = arith.truncf %286 : vector<16x32xf32> to vector<16x32xbf16>
    %288 = vector.extract_strided_slice %207 {offsets = [0, 384], sizes = [32, 32], strides = [1, 1]} : vector<34x512xbf16> to vector<32x32xbf16>
    %cst_57 = arith.constant dense<0.000000e+00> : vector<16x32xf32>
    %289 = tpu.matmul %287, %288, %cst_57 {dimension_numbers = #tpu.dot_dimension_numbers<[1], [0], [0], [1], [0, 0, 1, 1], [], []>} : vector<16x32xbf16>, vector<32x32xbf16>, vector<16x32xf32> -> vector<16x32xf32>
    %290 = vector.extract_strided_slice %207 {offsets = [32, 384], sizes = [1, 32], strides = [1, 1]} : vector<34x512xbf16> to vector<1x32xbf16>
    %291 = arith.extf %290 : vector<1x32xbf16> to vector<1x32xf32>
    %292 = vector.broadcast %291 : vector<1x32xf32> to vector<16x32xf32>
    %293 = arith.addf %289, %292 : vector<16x32xf32>
    %294 = arith.addf %205, %293 : vector<16x32xf32>
    %c138 = arith.constant 138 : index
    %c0_58 = arith.constant 0 : index
    %295 = vector.load %arg4[%c138, %c0_58] : memref<144x128xf32, #tpu.memory_space<vmem>>, vector<1x32xf32>
    %c139 = arith.constant 139 : index
    %c0_59 = arith.constant 0 : index
    %296 = vector.load %arg4[%c139, %c0_59] : memref<144x128xf32, #tpu.memory_space<vmem>>, vector<1x32xf32>
    %cst_60 = arith.constant dense<0.000000e+00> : vector<16xf32>
    %297 = vector.multi_reduction <add>, %294, %cst_60 [1] : vector<16x32xf32> to vector<16xf32>
    %298 = vector.shape_cast %297 : vector<16xf32> to vector<16x1xf32>
    %cst_61 = arith.constant 3.200000e+01 : f32
    %299 = vector.broadcast %cst_61 : f32 to vector<16x1xf32>
    %300 = arith.divf %298, %299 : vector<16x1xf32>
    %301 = vector.broadcast %300 : vector<16x1xf32> to vector<16x32xf32>
    %302 = arith.subf %294, %301 : vector<16x32xf32>
    %303 = arith.mulf %302, %302 : vector<16x32xf32>
    %cst_62 = arith.constant dense<0.000000e+00> : vector<16xf32>
    %304 = vector.multi_reduction <add>, %303, %cst_62 [1] : vector<16x32xf32> to vector<16xf32>
    %305 = vector.shape_cast %304 : vector<16xf32> to vector<16x1xf32>
    %cst_63 = arith.constant 3.200000e+01 : f32
    %306 = vector.broadcast %cst_63 : f32 to vector<16x1xf32>
    %307 = arith.divf %305, %306 : vector<16x1xf32>
    %308 = vector.broadcast %300 : vector<16x1xf32> to vector<16x32xf32>
    %309 = arith.subf %294, %308 : vector<16x32xf32>
    %cst_64 = arith.constant 1.000000e-07 : f32
    %310 = vector.broadcast %cst_64 : f32 to vector<16x1xf32>
    %311 = arith.addf %307, %310 : vector<16x1xf32>
    %312 = math.rsqrt %311 : vector<16x1xf32>
    %313 = vector.broadcast %312 : vector<16x1xf32> to vector<16x32xf32>
    %314 = arith.mulf %309, %313 : vector<16x32xf32>
    %315 = vector.broadcast %295 : vector<1x32xf32> to vector<16x32xf32>
    %316 = arith.mulf %314, %315 : vector<16x32xf32>
    %317 = vector.broadcast %296 : vector<1x32xf32> to vector<16x32xf32>
    %318 = arith.addf %316, %317 : vector<16x32xf32>
    %c1_65 = arith.constant 1 : index
    %c0_66 = arith.constant 0 : index
    %c0_67 = arith.constant 0 : index
    %319 = vector.load %arg3[%c1_65, %c0_66, %c0_67] : memref<2x96x64xbf16, #tpu.memory_space<vmem>>, vector<1x96x64xbf16>
    %320 = vector.shape_cast %319 : vector<1x96x64xbf16> to vector<96x64xbf16>
    %321 = arith.truncf %318 : vector<16x32xf32> to vector<16x32xbf16>
    %322 = vector.extract_strided_slice %320 {offsets = [0, 0], sizes = [32, 64], strides = [1, 1]} : vector<96x64xbf16> to vector<32x64xbf16>
    %cst_68 = arith.constant dense<0.000000e+00> : vector<16x64xf32>
    %323 = tpu.matmul %321, %322, %cst_68 {dimension_numbers = #tpu.dot_dimension_numbers<[1], [0], [0], [1], [0, 0, 1, 1], [], []>} : vector<16x32xbf16>, vector<32x64xbf16>, vector<16x64xf32> -> vector<16x64xf32>
    %c143 = arith.constant 143 : index
    %c0_69 = arith.constant 0 : index
    %324 = vector.load %arg4[%c143, %c0_69] : memref<144x128xf32, #tpu.memory_space<vmem>>, vector<1x64xf32>
    %325 = vector.broadcast %324 : vector<1x64xf32> to vector<16x64xf32>
    %326 = arith.addf %323, %325 : vector<16x64xf32>
    %cst_70 = arith.constant 5.000000e-01 : f32
    %327 = vector.broadcast %cst_70 : f32 to vector<16x64xf32>
    %328 = arith.mulf %327, %326 : vector<16x64xf32>
    %cst_71 = arith.constant 4.471500e-02 : f32
    %329 = vector.broadcast %cst_71 : f32 to vector<16x64xf32>
    %330 = arith.mulf %329, %326 : vector<16x64xf32>
    %331 = arith.mulf %330, %326 : vector<16x64xf32>
    %332 = arith.mulf %331, %326 : vector<16x64xf32>
    %333 = arith.addf %326, %332 : vector<16x64xf32>
    %cst_72 = arith.constant 0.797884583 : f32
    %334 = vector.broadcast %cst_72 : f32 to vector<16x64xf32>
    %335 = arith.mulf %334, %333 : vector<16x64xf32>
    %336 = math.tanh %335 : vector<16x64xf32>
    %cst_73 = arith.constant 1.000000e+00 : f32
    %337 = vector.broadcast %cst_73 : f32 to vector<16x64xf32>
    %338 = arith.addf %337, %336 : vector<16x64xf32>
    %339 = arith.mulf %328, %338 : vector<16x64xf32>
    %340 = arith.truncf %339 : vector<16x64xf32> to vector<16x64xbf16>
    %341 = vector.extract_strided_slice %320 {offsets = [32, 0], sizes = [64, 32], strides = [1, 1]} : vector<96x64xbf16> to vector<64x32xbf16>
    %cst_74 = arith.constant dense<0.000000e+00> : vector<16x32xf32>
    %342 = tpu.matmul %340, %341, %cst_74 {dimension_numbers = #tpu.dot_dimension_numbers<[1], [0], [0], [1], [0, 0, 1, 1], [], []>} : vector<16x64xbf16>, vector<64x32xbf16>, vector<16x32xf32> -> vector<16x32xf32>
    %c142 = arith.constant 142 : index
    %c0_75 = arith.constant 0 : index
    %343 = vector.load %arg4[%c142, %c0_75] : memref<144x128xf32, #tpu.memory_space<vmem>>, vector<1x32xf32>
    %344 = vector.broadcast %343 : vector<1x32xf32> to vector<16x32xf32>
    %345 = arith.addf %342, %344 : vector<16x32xf32>
    %346 = arith.addf %318, %345 : vector<16x32xf32>
    %c140 = arith.constant 140 : index
    %c0_76 = arith.constant 0 : index
    %347 = vector.load %arg4[%c140, %c0_76] : memref<144x128xf32, #tpu.memory_space<vmem>>, vector<1x32xf32>
    %c141 = arith.constant 141 : index
    %c0_77 = arith.constant 0 : index
    %348 = vector.load %arg4[%c141, %c0_77] : memref<144x128xf32, #tpu.memory_space<vmem>>, vector<1x32xf32>
    %cst_78 = arith.constant dense<0.000000e+00> : vector<16xf32>
    %349 = vector.multi_reduction <add>, %346, %cst_78 [1] : vector<16x32xf32> to vector<16xf32>
    %350 = vector.shape_cast %349 : vector<16xf32> to vector<16x1xf32>
    %cst_79 = arith.constant 3.200000e+01 : f32
    %351 = vector.broadcast %cst_79 : f32 to vector<16x1xf32>
    %352 = arith.divf %350, %351 : vector<16x1xf32>
    %353 = vector.broadcast %352 : vector<16x1xf32> to vector<16x32xf32>
    %354 = arith.subf %346, %353 : vector<16x32xf32>
    %355 = arith.mulf %354, %354 : vector<16x32xf32>
    %cst_80 = arith.constant dense<0.000000e+00> : vector<16xf32>
    %356 = vector.multi_reduction <add>, %355, %cst_80 [1] : vector<16x32xf32> to vector<16xf32>
    %357 = vector.shape_cast %356 : vector<16xf32> to vector<16x1xf32>
    %cst_81 = arith.constant 3.200000e+01 : f32
    %358 = vector.broadcast %cst_81 : f32 to vector<16x1xf32>
    %359 = arith.divf %357, %358 : vector<16x1xf32>
    %360 = vector.broadcast %352 : vector<16x1xf32> to vector<16x32xf32>
    %361 = arith.subf %346, %360 : vector<16x32xf32>
    %cst_82 = arith.constant 1.000000e-07 : f32
    %362 = vector.broadcast %cst_82 : f32 to vector<16x1xf32>
    %363 = arith.addf %359, %362 : vector<16x1xf32>
    %364 = math.rsqrt %363 : vector<16x1xf32>
    %365 = vector.broadcast %364 : vector<16x1xf32> to vector<16x32xf32>
    %366 = arith.mulf %361, %365 : vector<16x32xf32>
    %367 = vector.broadcast %347 : vector<1x32xf32> to vector<16x32xf32>
    %368 = arith.mulf %366, %367 : vector<16x32xf32>
    %369 = vector.broadcast %348 : vector<1x32xf32> to vector<16x32xf32>
    %370 = arith.addf %368, %369 : vector<16x32xf32>
    %c2 = arith.constant 2 : index
    %c0_83 = arith.constant 0 : index
    %c0_84 = arith.constant 0 : index
    %371 = vector.load %arg2[%c2, %c0_83, %c0_84] : memref<3x34x512xbf16, #tpu.memory_space<vmem>>, vector<1x34x512xbf16>
    %372 = vector.shape_cast %371 : vector<1x34x512xbf16> to vector<34x512xbf16>
    %373 = arith.truncf %370 : vector<16x32xf32> to vector<16x32xbf16>
    %374 = vector.extract_strided_slice %372 {offsets = [0, 0], sizes = [32, 512], strides = [1, 1]} : vector<34x512xbf16> to vector<32x512xbf16>
    %cst_85 = arith.constant dense<0.000000e+00> : vector<16x512xf32>
    %375 = tpu.matmul %373, %374, %cst_85 {dimension_numbers = #tpu.dot_dimension_numbers<[1], [0], [0], [1], [0, 0, 1, 1], [], []>} : vector<16x32xbf16>, vector<32x512xbf16>, vector<16x512xf32> -> vector<16x512xf32>
    %376 = vector.extract_strided_slice %372 {offsets = [32, 0], sizes = [1, 512], strides = [1, 1]} : vector<34x512xbf16> to vector<1x512xbf16>
    %377 = arith.extf %376 : vector<1x512xbf16> to vector<1x512xf32>
    %378 = vector.broadcast %377 : vector<1x512xf32> to vector<16x512xf32>
    %379 = arith.addf %375, %378 : vector<16x512xf32>
    %380 = math.tanh %379 : vector<16x512xf32>
    %381 = vector.shape_cast %380 : vector<16x512xf32> to vector<2x8x512xf32>
    %382 = vector.extract_strided_slice %372 {offsets = [33, 0], sizes = [1, 512], strides = [1, 1]} : vector<34x512xbf16> to vector<1x512xbf16>
    %383 = arith.extf %382 : vector<1x512xbf16> to vector<1x512xf32>
    %384 = vector.shape_cast %383 : vector<1x512xf32> to vector<1x1x512xf32>
    %385 = vector.broadcast %384 : vector<1x1x512xf32> to vector<2x8x512xf32>
    %386 = arith.mulf %381, %385 : vector<2x8x512xf32>
    %cst_86 = arith.constant dense<0.000000e+00> : vector<2x8xf32>
    %387 = vector.multi_reduction <add>, %386, %cst_86 [2] : vector<2x8x512xf32> to vector<2x8xf32>
    %cst_87 = arith.constant dense<0xFF800000> : vector<2xf32>
    %388 = vector.multi_reduction <maximumf>, %387, %cst_87 [1] : vector<2x8xf32> to vector<2xf32>
    %389 = vector.shape_cast %388 : vector<2xf32> to vector<2x1xf32>
    %390 = vector.broadcast %389 : vector<2x1xf32> to vector<2x8xf32>
    %391 = arith.subf %387, %390 : vector<2x8xf32>
    %392 = math.exp %391 : vector<2x8xf32>
    %cst_88 = arith.constant dense<0.000000e+00> : vector<2xf32>
    %393 = vector.multi_reduction <add>, %392, %cst_88 [1] : vector<2x8xf32> to vector<2xf32>
    %394 = vector.shape_cast %393 : vector<2xf32> to vector<2x1xf32>
    %395 = tpu.reciprocal %394 {approx = true} : vector<2x1xf32> -> vector<2x1xf32>
    %396 = vector.broadcast %395 : vector<2x1xf32> to vector<2x8xf32>
    %397 = arith.mulf %392, %396 : vector<2x8xf32>
    %398 = vector.shape_cast %397 : vector<2x8xf32> to vector<2x8x1xf32>
    %399 = vector.shape_cast %370 : vector<16x32xf32> to vector<2x8x32xf32>
    %400 = vector.broadcast %398 : vector<2x8x1xf32> to vector<2x8x32xf32>
    %401 = arith.mulf %400, %399 : vector<2x8x32xf32>
    %cst_89 = arith.constant dense<0.000000e+00> : vector<2x32xf32>
    %402 = vector.multi_reduction <add>, %401, %cst_89 [1] : vector<2x8x32xf32> to vector<2x32xf32>
    %c130 = arith.constant 130 : index
    %c0_90 = arith.constant 0 : index
    %403 = vector.load %arg4[%c130, %c0_90] : memref<144x128xf32, #tpu.memory_space<vmem>>, vector<1x32xf32>
    %404 = vector.broadcast %403 : vector<1x32xf32> to vector<2x32xf32>
    %405 = arith.mulf %402, %404 : vector<2x32xf32>
    %cst_91 = arith.constant dense<0.000000e+00> : vector<2xf32>
    %406 = vector.multi_reduction <add>, %405, %cst_91 [1] : vector<2x32xf32> to vector<2xf32>
    %407 = vector.shape_cast %406 : vector<2xf32> to vector<2x1xf32>
    %c131 = arith.constant 131 : index
    %c0_92 = arith.constant 0 : index
    %408 = vector.load %arg4[%c131, %c0_92] : memref<144x128xf32, #tpu.memory_space<vmem>>, vector<1x1xf32>
    %409 = vector.broadcast %408 : vector<1x1xf32> to vector<2x1xf32>
    %410 = arith.addf %407, %409 : vector<2x1xf32>
    %411 = tpu.iota {dimensions = array<i32: 1>} : vector<2x128xi32>
    %c0_i32 = arith.constant 0 : i32
    %412 = vector.broadcast %c0_i32 : i32 to vector<2x128xi32>
    %413 = arith.cmpi eq, %411, %412 : vector<2x128xi32>
    %cst_93 = arith.constant 0.000000e+00 : f32
    %414 = vector.shape_cast %410 : vector<2x1xf32> to vector<2x1xf32>
    %415 = vector.broadcast %414 : vector<2x1xf32> to vector<2x128xf32>
    %416 = vector.broadcast %cst_93 : f32 to vector<2x128xf32>
    %417 = arith.select %413, %415, %416 : vector<2x128xi1>, vector<2x128xf32>
    %c0_94 = arith.constant 0 : index
    %c0_95 = arith.constant 0 : index
    %418 = vector.load %arg5[%c0_94, %c0_95] : memref<2x128xf32, #tpu.memory_space<vmem>>, vector<2x128xf32>
    tpu.vector_store %arg5[%c0_94, %c0_95], %417 {strides = array<i32>} : memref<2x128xf32, #tpu.memory_space<vmem>>, vector<2x128xf32>,
    return
  }
}

</mosaic_0001>

<llo_original>
// kernel: tpu_custom_call.1
$region0: #{tpu_custom_call.1}
  #allocation0 [shape = 'u32[]', space=smem, size = 0x4, offset = 0x4, fixed_abs, tag = 'smem constant byte address 0x4 - core index']
  #allocation1 [shape = 'u32[72,128]{1,0:T(1,128)}', space=vmem, size = 0x9000, scoped, tag = 'internal scratch']
  %s0 = inlined_call_operand.vmem [shape: s32[16,1], index: 0, kind: input, shape index: {}]
  %s1 = inlined_call_operand.vmem [shape: f32[2,8], index: 1, kind: input, shape index: {}]
  %s2 = inlined_call_operand.hbm [shape: bf16[3,34,512], index: 2, kind: input, shape index: {}]
  %s3 = inlined_call_operand.vmem [shape: bf16[2,96,64], index: 3, kind: input, shape index: {}]
  %s4 = inlined_call_operand.vmem [shape: f32[144,128], index: 4, kind: input, shape index: {}]
  %s5 = inlined_call_operand.hbm [shape: f32[2,128], index: 5, kind: output, shape index: {}]
  %s6 = sld [smem:[#allocation0]]
  $region34: #{tpu_custom_call.1} parent=0
    _
  %s8 = ssub.s32 1, %s6
  %s9 = scalar_select 0, %s8, %s6
  $region1: #{tpu_custom_call.1} parent=0
    #allocation2 [shape = 'u8[122880]{0}', space=vmem, size = 0x1e000, scoped, tag = 'input window, operand 2, single buffered']
    #allocation3 [shape = 's32[1]{0}', space=sflag, size = 0x4, scoped, tag = 'scoped memory for tpu_custom_call.1']
    #allocation4 [shape = 's32[1]{0}', space=sflag, size = 0x4, scoped, tag = 'scoped memory for tpu_custom_call.1']
    #allocation5 [shape = 'u8[1024]{0}', space=vmem, size = 0x400, scoped, tag = 'output window, operand 0, single buffered']
    %10 = vsyncpa [#allocation3], 0
    %11 = vsyncpa [#allocation4], 0
    // Predicated region
    $region2: #{tpu_custom_call.1} parent=1 // pred_check
      _
    $region3: #{tpu_custom_call.1} parent=1 // pred_check_branch
      %13 = sbr.rel (0) target = $region5
    $region4: #{tpu_custom_call.1} parent=1 // pred_region
      _
    $region5: #{tpu_custom_call.1} parent=1 // pred_fallthru
      _
    // Predicated region
    $region6: #{tpu_custom_call.1} parent=1 // pred_check
      _
    $region7: #{tpu_custom_call.1} parent=1 // pred_check_branch
      %15 = sbr.rel (0) target = $region9
    $region8: #{tpu_custom_call.1} parent=1 // pred_region
      _
    $region9: #{tpu_custom_call.1} parent=1 // pred_fallthru
      _
    // Predicated region
    $region10: #{tpu_custom_call.1} parent=1 // pred_check
      _
    $region11: #{tpu_custom_call.1} parent=1 // pred_check_branch
      %17 = sbr.rel (0) target = $region13
    $region12: #{tpu_custom_call.1} parent=1 // pred_region
      %19 = vsyncadd [#allocation3], 0
      %s20 = sshll.u32 %s2, 4
      %s21 = int_to_ptr.hbm [resolvable:$true] %s20
      %s22 = sshll.u32 [#allocation2], 4
      %s23 = int_to_ptr.vmem [resolvable:$true] %s22
      %28 = dma.hbm_to_vmem [thread:$0]  %s21, 3840, %s23, [#allocation3], 256, 256, 16
    $region13: #{tpu_custom_call.1} parent=1 // pred_fallthru
      _
    // Predicated region
    $region14: #{tpu_custom_call.1} parent=1 // pred_check
      _
    $region15: #{tpu_custom_call.1} parent=1 // pred_check_branch
      %30 = sbr.rel (0) target = $region17
    $region16: #{tpu_custom_call.1} parent=1 // pred_region
      _
    $region17: #{tpu_custom_call.1} parent=1 // pred_fallthru
      _
    // Predicated region
    $region18: #{tpu_custom_call.1} parent=1 // pred_check
      _
    $region19: #{tpu_custom_call.1} parent=1 // pred_check_branch
      %32 = sbr.rel (0) target = $region21
    $region20: #{tpu_custom_call.1} parent=1 // pred_region
      _
    $region21: #{tpu_custom_call.1} parent=1 // pred_fallthru
      _
    // Predicated region
    $region22: #{tpu_custom_call.1} parent=1 // pred_check
      _
    $region23: #{tpu_custom_call.1} parent=1 // pred_check_branch
      %34 = sbr.rel (0) target = $region25
    $region24: #{tpu_custom_call.1} parent=1 // pred_region
      %36 = dma.done [#allocation3], 3840
    $region25: #{tpu_custom_call.1} parent=1 // pred_fallthru
      _
    %v38 = vld [vmem:[%s0] sm:$0xff]
    %v39 = vld [vmem:[%s0 + $0x8] sm:$0xff]
    %v40 = vlaneseq
    %v41 = vand.u32 %v40, 127
    %42 = vset.pattern.permute.xlu0 0
    %43 = vperm.xlu0 %42, %v38
    %v44 = vpop.permute.xlu0 %43
    %45 = vset.pattern.permute.xlu0 0
    %46 = vperm.xlu0 %45, %v39
    %v47 = vpop.permute.xlu0 %46
    %vm48 = vcmp.eq.s32.totalorder %v44, %v41
    %vm49 = vcmp.eq.s32.totalorder %v47, %v41
    %v50 = vsel %vm48, 1, 0
    %v51 = vsel %vm49, 1, 0
    %v52 = vcvt.s32.f32 %v50
    %v53 = vcvt.s32.f32 %v51
    %v54 = vld [vmem:[%s4] sm:$0xff]
    %v55 = vld [vmem:[%s4 + $0x8] sm:$0xff]
    %v56 = vld [vmem:[%s4 + $0x10] sm:$0xff]
    %v57 = vld [vmem:[%s4 + $0x18] sm:$0xff]
    %v58 = vld [vmem:[%s4 + $0x20] sm:$0xff]
    %v59 = vld [vmem:[%s4 + $0x28] sm:$0xff]
    %v60 = vld [vmem:[%s4 + $0x30] sm:$0xff]
    %v61 = vld [vmem:[%s4 + $0x38] sm:$0xff]
    %v62 = vld [vmem:[%s4 + $0x40] sm:$0xff]
    %v63 = vld [vmem:[%s4 + $0x48] sm:$0xff]
    %v64 = vld [vmem:[%s4 + $0x50] sm:$0xff]
    %v65 = vld [vmem:[%s4 + $0x58] sm:$0xff]
    %v66 = vld [vmem:[%s4 + $0x60] sm:$0xff]
    %v67 = vld [vmem:[%s4 + $0x68] sm:$0xff]
    %v68 = vld [vmem:[%s4 + $0x70] sm:$0xff]
    %v69 = vld [vmem:[%s4 + $0x78] sm:$0xff]
    %70 = vmatpush.msra.mxu0 %v69
    %71 = vmatpush.msra.mxu0 %v68
    %72 = vmatpush.msra.mxu0 %v67
    %73 = vmatpush.msra.mxu0 %v66
    %74 = vmatpush.msra.mxu0 %v65
    %75 = vmatpush.msra.mxu0 %v64
    %76 = vmatpush.msra.mxu0 %v63
    %77 = vmatpush.msra.mxu0 %v62
    %78 = vmatpush.msra.mxu0 %v61
    %79 = vmatpush.msra.mxu0 %v60
    %80 = vmatpush.msra.mxu0 %v59
    %81 = vmatpush.msra.mxu0 %v58
    %82 = vmatpush.msra.mxu0 %v57
    %83 = vmatpush.msra.mxu0 %v56
    %84 = vmatpush.msra.mxu0 %v55
    %85 = vmatpush.msra.mxu0 %v54
    %86 = vmatmul.f32.gmra.mxu0 %v52
    %v87 = vpop.f32.mrf.mxu0
    %v88 = vadd.f32 0.0, %v87
    %89 = vmatmul.f32.gmra.mxu0 %v53
    %v90 = vpop.f32.mrf.mxu0
    %v91 = vadd.f32 0.0, %v90
    %92 = vdwg.mxu0
    %v93 = vld [vmem:[%s4 + $0x80] sm:$0x1]
    %v94 = vld [vmem:[%s4 + $0x81] sm:$0x1]
    %vm95 = vcmask 261120
    %v96 = vsel %vm95, %v88, 0.0
    %97 = vadd.xlane.f32.xlu0 %v96
    %v98 = vpop.xlane.xlu0 %97
    %v99 = vsel %vm95, %v91, 0.0
    %100 = vadd.xlane.f32.xlu0 %v99
    %v101 = vpop.xlane.xlu0 %100
    %v102 = vrcp.pop 32.0
    %v103 = vmul.f32 32.0, %v102
    %v104 = vsub.f32 1.0, %v103
    %v105 = vmul.f32 %v102, %v104
    %v106 = vadd.f32 %v102, %v105
    %vm107 = vweird.f32 %v102
    %v108 = vsel %vm107, %v102, %v106
    %v109 = vmul.f32 %v98, %v108
    %v110 = vmul.f32 %v101, %v108
    %v111 = vsub.f32 %v88, %v109
    %v112 = vsub.f32 %v91, %v110
    %v113 = vmul.f32 %v111, %v111
    %v114 = vmul.f32 %v112, %v112
    %v115 = vsel %vm95, %v113, 0.0
    %116 = vadd.xlane.f32.xlu0 %v115
    %v117 = vpop.xlane.xlu0 %116
    %v118 = vsel %vm95, %v114, 0.0
    %119 = vadd.xlane.f32.xlu0 %v118
    %v120 = vpop.xlane.xlu0 %119
    %v121 = vmul.f32 %v117, %v108
    %v122 = vmul.f32 %v120, %v108
    %v123 = vadd.f32 %v121, 1e-07
    %v124 = vadd.f32 %v122, 1e-07
    %v125 = vrsqrt.pop %v123
    %v126 = vmul.f32 %v125, %v123
    %v127 = vmul.f32 %v126, %v125
    %v128 = vmul.f32 0.5, %v127
    %v129 = vsub.f32 1.5, %v128
    %v130 = vmul.f32 %v125, %v129
    %vm131 = vweird.f32 %v123
    %vm132 = vweird.f32 %v125
    %vm133 = vmor %vm131, %vm132
    %v134 = vsel %vm133, %v125, %v130
    %v135 = vrsqrt.pop %v124
    %v136 = vmul.f32 %v135, %v124
    %v137 = vmul.f32 %v136, %v135
    %v138 = vmul.f32 0.5, %v137
    %v139 = vsub.f32 1.5, %v138
    %v140 = vmul.f32 %v135, %v139
    %vm141 = vweird.f32 %v124
    %vm142 = vweird.f32 %v135
    %vm143 = vmor %vm141, %vm142
    %v144 = vsel %vm143, %v135, %v140
    %v145 = vmul.f32 %v111, %v134
    %v146 = vmul.f32 %v112, %v144
    %v147 = vperm.slane %v93, 0
    %v148 = vmul.f32 %v145, %v147
    %v149 = vmul.f32 %v146, %v147
    %v150 = vperm.slane %v94, 0
    %v151 = vadd.f32 %v148, %v150
    %v152 = vadd.f32 %v149, %v150
    %v153 = vld [vmem:[%s1] sm:$0x3]
    %v154 = vsub.f32 1.0, %v153
    %v155 = vmul.f32 %v154, -1e+09
    %v157 = vrot.slane %v155, 1
    %v158 = vperm.slane %v155, 0
    %v159 = vperm.slane %v157, 0
    %v160 = vld [vmem:[#allocation2] sm:$0xff]
    %v161 = vld [vmem:[#allocation2 + $0x8] sm:$0xff]
    %v162 = vld [vmem:[#allocation2 + $0x10] sm:$0xff]
    %v163 = vld [vmem:[#allocation2 + $0x18] sm:$0xff]
    %v164 = vld [vmem:[#allocation2 + $0x20] sm:$0xff]
    %v165 = vld [vmem:[#allocation2 + $0x28] sm:$0xff]
    %v166 = vld [vmem:[#allocation2 + $0x30] sm:$0xff]
    %v167 = vld [vmem:[#allocation2 + $0x38] sm:$0xff]
    %v168 = vld [vmem:[#allocation2 + $0x40] sm:$0x11]
    %v169 = vld [vmem:[#allocation2 + $0x48] sm:$0x11]
    %v170 = vpack.c.bf16 %v152, %v151
    %v171 = vunpack.c.l.bf16 %v168
    %v172 = vunpack.c.h.bf16 %v168
    %v173 = vunpack.c.l.bf16 %v169
    %v174 = vperm.slane %v171, 0
    %v175 = vperm.slane %v172, 0
    %v176 = vperm.slane %v173, 0
    %v185 = vunpack.c.l.b16 %v160
    %v186 = vunpack.c.h.b16 %v160
    %v187 = vunpack.c.l.b16 %v161
    %v188 = vunpack.c.l.b16 %v162
    %v189 = vunpack.c.h.b16 %v162
    %v190 = vunpack.c.l.b16 %v163
    %v191 = vunpack.c.l.b16 %v164
    %v192 = vunpack.c.h.b16 %v164
    %v193 = vunpack.c.l.b16 %v165
    %v194 = vunpack.c.l.b16 %v166
    %v195 = vunpack.c.h.b16 %v166
    %v196 = vunpack.c.l.b16 %v167
    %v197 = vpack.c.b16 %v188, %v185
    %v198 = vpack.c.b16 %v189, %v186
    %v199 = vpack.c.b16 %v190, %v187
    %v200 = vpack.c.b16 %v194, %v191
    %v201 = vpack.c.b16 %v195, %v192
    %v202 = vpack.c.b16 %v196, %v193
    %v210 = vsel %vm95, %v170, 0
    %212 = vmatpush.bf16.msra.mxu0 0
    %213 = vmatpush.bf16.msra.mxu0 0
    %214 = vmatpush.bf16.msra.mxu0 0
    %215 = vmatpush.bf16.msra.mxu0 0
    %216 = vmatpush.bf16.msra.mxu0 0
    %217 = vmatpush.bf16.msra.mxu0 0
    %218 = vmatpush.bf16.msra.mxu0 %v200
    %219 = vmatpush.bf16.msra.mxu0 %v197
    %220 = vmatmul.bf16.gmra.mxu0 %v210
    %v221 = vpop.f32.mrf.mxu0
    %v222 = vadd.f32 %v174, %v221
    %v223 = vpop.f32.mrf.mxu0
    %v224 = vadd.f32 %v174, %v223
    %225 = vdwg.mxu0
    %226 = vmatpush.bf16.msra.mxu0 0
    %227 = vmatpush.bf16.msra.mxu0 0
    %228 = vmatpush.bf16.msra.mxu0 0
    %229 = vmatpush.bf16.msra.mxu0 0
    %230 = vmatpush.bf16.msra.mxu0 0
    %231 = vmatpush.bf16.msra.mxu0 0
    %232 = vmatpush.bf16.msra.mxu0 %v201
    %233 = vmatpush.bf16.msra.mxu0 %v198
    %234 = vmatmul.bf16.gmra.mxu0 %v210
    %v235 = vpop.f32.mrf.mxu0
    %v236 = vadd.f32 %v175, %v235
    %v237 = vpop.f32.mrf.mxu0
    %v238 = vadd.f32 %v175, %v237
    %239 = vdwg.mxu0
    %240 = vmatpush.bf16.msra.mxu0 0
    %241 = vmatpush.bf16.msra.mxu0 0
    %242 = vmatpush.bf16.msra.mxu0 0
    %243 = vmatpush.bf16.msra.mxu0 0
    %244 = vmatpush.bf16.msra.mxu0 0
    %245 = vmatpush.bf16.msra.mxu0 0
    %246 = vmatpush.bf16.msra.mxu0 %v202
    %247 = vmatpush.bf16.msra.mxu0 %v199
    %248 = vmatmul.bf16.gmra.mxu0 %v210
    %v249 = vpop.f32.mrf.mxu0
    %v250 = vadd.f32 %v176, %v249
    %v251 = vpop.f32.mrf.mxu0
    %v252 = vadd.f32 %v176, %v251
    %253 = vdwg.mxu0
    %256 = vrot.lane.b32.xlu0 %v222, 120
    %v257 = vpop.permute.xlu0 %256
    %258 = vrot.lane.b32.xlu0 %v224, 120
    %v259 = vpop.permute.xlu0 %258
    %260 = vrot.lane.b32.xlu0 %v222, 112
    %v261 = vpop.permute.xlu0 %260
    %262 = vrot.lane.b32.xlu0 %v224, 112
    %v263 = vpop.permute.xlu0 %262
    %264 = vrot.lane.b32.xlu0 %v222, 104
    %v265 = vpop.permute.xlu0 %264
    %266 = vrot.lane.b32.xlu0 %v224, 104
    %v267 = vpop.permute.xlu0 %266
    %270 = vrot.lane.b32.xlu0 %v236, 120
    %v271 = vpop.permute.xlu0 %270
    %272 = vrot.lane.b32.xlu0 %v238, 120
    %v273 = vpop.permute.xlu0 %272
    %276 = vrot.lane.b32.xlu0 %v236, 112
    %v277 = vpop.permute.xlu0 %276
    %278 = vrot.lane.b32.xlu0 %v238, 112
    %v279 = vpop.permute.xlu0 %278
    %282 = vrot.lane.b32.xlu0 %v236, 104
    %v283 = vpop.permute.xlu0 %282
    %284 = vrot.lane.b32.xlu0 %v238, 104
    %v285 = vpop.permute.xlu0 %284
    %290 = vrot.lane.b32.xlu0 %v250, 120
    %v291 = vpop.permute.xlu0 %290
    %292 = vrot.lane.b32.xlu0 %v252, 120
    %v293 = vpop.permute.xlu0 %292
    %296 = vrot.lane.b32.xlu0 %v250, 112
    %v297 = vpop.permute.xlu0 %296
    %298 = vrot.lane.b32.xlu0 %v252, 112
    %v299 = vpop.permute.xlu0 %298
    %302 = vrot.lane.b32.xlu0 %v250, 104
    %v303 = vpop.permute.xlu0 %302
    %304 = vrot.lane.b32.xlu0 %v252, 104
    %v305 = vpop.permute.xlu0 %304
    %v308 = vrot.slane %v222, 1
    %v309 = vrot.slane %v222, 2
    %v310 = vrot.slane %v222, 3
    %v311 = vrot.slane %v222, 4
    %v312 = vrot.slane %v222, 5
    %v313 = vrot.slane %v222, 6
    %v314 = vrot.slane %v222, 7
    %v315 = vrot.slane %v257, 1
    %v316 = vrot.slane %v257, 2
    %v317 = vrot.slane %v257, 3
    %v318 = vrot.slane %v257, 4
    %v319 = vrot.slane %v257, 5
    %v320 = vrot.slane %v257, 6
    %v321 = vrot.slane %v257, 7
    %v322 = vrot.slane %v261, 1
    %v323 = vrot.slane %v261, 2
    %v324 = vrot.slane %v261, 3
    %v325 = vrot.slane %v261, 4
    %v326 = vrot.slane %v261, 5
    %v327 = vrot.slane %v261, 6
    %v328 = vrot.slane %v261, 7
    %v329 = vrot.slane %v265, 1
    %v330 = vrot.slane %v265, 2
    %v331 = vrot.slane %v265, 3
    %v332 = vrot.slane %v265, 4
    %v333 = vrot.slane %v265, 5
    %v334 = vrot.slane %v265, 6
    %v335 = vrot.slane %v265, 7
    %v336 = vrot.slane %v224, 1
    %v337 = vrot.slane %v224, 2
    %v338 = vrot.slane %v224, 3
    %v339 = vrot.slane %v224, 4
    %v340 = vrot.slane %v224, 5
    %v341 = vrot.slane %v224, 6
    %v342 = vrot.slane %v224, 7
    %v343 = vrot.slane %v259, 1
    %v344 = vrot.slane %v259, 2
    %v345 = vrot.slane %v259, 3
    %v346 = vrot.slane %v259, 4
    %v347 = vrot.slane %v259, 5
    %v348 = vrot.slane %v259, 6
    %v349 = vrot.slane %v259, 7
    %v350 = vrot.slane %v263, 1
    %v351 = vrot.slane %v263, 2
    %v352 = vrot.slane %v263, 3
    %v353 = vrot.slane %v263, 4
    %v354 = vrot.slane %v263, 5
    %v355 = vrot.slane %v263, 6
    %v356 = vrot.slane %v263, 7
    %v357 = vrot.slane %v267, 1
    %v358 = vrot.slane %v267, 2
    %v359 = vrot.slane %v267, 3
    %v360 = vrot.slane %v267, 4
    %v361 = vrot.slane %v267, 5
    %v362 = vrot.slane %v267, 6
    %v363 = vrot.slane %v267, 7
    %v364 = vperm.slane %v222, 0
    %v365 = vperm.slane %v308, 0
    %v366 = vperm.slane %v309, 0
    %v367 = vperm.slane %v310, 0
    %v368 = vperm.slane %v311, 0
    %v369 = vperm.slane %v312, 0
    %v370 = vperm.slane %v313, 0
    %v371 = vperm.slane %v314, 0
    %v372 = vperm.slane %v257, 0
    %v373 = vperm.slane %v315, 0
    %v374 = vperm.slane %v316, 0
    %v375 = vperm.slane %v317, 0
    %v376 = vperm.slane %v318, 0
    %v377 = vperm.slane %v319, 0
    %v378 = vperm.slane %v320, 0
    %v379 = vperm.slane %v321, 0
    %v380 = vperm.slane %v261, 0
    %v381 = vperm.slane %v322, 0
    %v382 = vperm.slane %v323, 0
    %v383 = vperm.slane %v324, 0
    %v384 = vperm.slane %v325, 0
    %v385 = vperm.slane %v326, 0
    %v386 = vperm.slane %v327, 0
    %v387 = vperm.slane %v328, 0
    %v388 = vperm.slane %v265, 0
    %v389 = vperm.slane %v329, 0
    %v390 = vperm.slane %v330, 0
    %v391 = vperm.slane %v331, 0
    %v392 = vperm.slane %v332, 0
    %v393 = vperm.slane %v333, 0
    %v394 = vperm.slane %v334, 0
    %v395 = vperm.slane %v335, 0
    %v396 = vperm.slane %v224, 0
    %v397 = vperm.slane %v336, 0
    %v398 = vperm.slane %v337, 0
    %v399 = vperm.slane %v338, 0
    %v400 = vperm.slane %v339, 0
    %v401 = vperm.slane %v340, 0
    %v402 = vperm.slane %v341, 0
    %v403 = vperm.slane %v342, 0
    %v404 = vperm.slane %v259, 0
    %v405 = vperm.slane %v343, 0
    %v406 = vperm.slane %v344, 0
    %v407 = vperm.slane %v345, 0
    %v408 = vperm.slane %v346, 0
    %v409 = vperm.slane %v347, 0
    %v410 = vperm.slane %v348, 0
    %v411 = vperm.slane %v349, 0
    %v412 = vperm.slane %v263, 0
    %v413 = vperm.slane %v350, 0
    %v414 = vperm.slane %v351, 0
    %v415 = vperm.slane %v352, 0
    %v416 = vperm.slane %v353, 0
    %v417 = vperm.slane %v354, 0
    %v418 = vperm.slane %v355, 0
    %v419 = vperm.slane %v356, 0
    %v420 = vperm.slane %v267, 0
    %v421 = vperm.slane %v357, 0
    %v422 = vperm.slane %v358, 0
    %v423 = vperm.slane %v359, 0
    %v424 = vperm.slane %v360, 0
    %v425 = vperm.slane %v361, 0
    %v426 = vperm.slane %v362, 0
    %v427 = vperm.slane %v363, 0
    %v492 = vmul.f32 %v364, %v236
    %v493 = vmul.f32 %v365, %v236
    %v494 = vmul.f32 %v366, %v236
    %v495 = vmul.f32 %v367, %v236
    %v496 = vmul.f32 %v368, %v236
    %v497 = vmul.f32 %v369, %v236
    %v498 = vmul.f32 %v370, %v236
    %v499 = vmul.f32 %v371, %v236
    %v500 = vmul.f32 %v372, %v271
    %v501 = vmul.f32 %v373, %v271
    %v502 = vmul.f32 %v374, %v271
    %v503 = vmul.f32 %v375, %v271
    %v504 = vmul.f32 %v376, %v271
    %v505 = vmul.f32 %v377, %v271
    %v506 = vmul.f32 %v378, %v271
    %v507 = vmul.f32 %v379, %v271
    %v508 = vmul.f32 %v380, %v277
    %v509 = vmul.f32 %v381, %v277
    %v510 = vmul.f32 %v382, %v277
    %v511 = vmul.f32 %v383, %v277
    %v512 = vmul.f32 %v384, %v277
    %v513 = vmul.f32 %v385, %v277
    %v514 = vmul.f32 %v386, %v277
    %v515 = vmul.f32 %v387, %v277
    %v516 = vmul.f32 %v388, %v283
    %v517 = vmul.f32 %v389, %v283
    %v518 = vmul.f32 %v390, %v283
    %v519 = vmul.f32 %v391, %v283
    %v520 = vmul.f32 %v392, %v283
    %v521 = vmul.f32 %v393, %v283
    %v522 = vmul.f32 %v394, %v283
    %v523 = vmul.f32 %v395, %v283
    %v524 = vmul.f32 %v396, %v238
    %v525 = vmul.f32 %v397, %v238
    %v526 = vmul.f32 %v398, %v238
    %v527 = vmul.f32 %v399, %v238
    %v528 = vmul.f32 %v400, %v238
    %v529 = vmul.f32 %v401, %v238
    %v530 = vmul.f32 %v402, %v238
    %v531 = vmul.f32 %v403, %v238
    %v532 = vmul.f32 %v404, %v273
    %v533 = vmul.f32 %v405, %v273
    %v534 = vmul.f32 %v406, %v273
    %v535 = vmul.f32 %v407, %v273
    %v536 = vmul.f32 %v408, %v273
    %v537 = vmul.f32 %v409, %v273
    %v538 = vmul.f32 %v410, %v273
    %v539 = vmul.f32 %v411, %v273
    %v540 = vmul.f32 %v412, %v279
    %v541 = vmul.f32 %v413, %v279
    %v542 = vmul.f32 %v414, %v279
    %v543 = vmul.f32 %v415, %v279
    %v544 = vmul.f32 %v416, %v279
    %v545 = vmul.f32 %v417, %v279
    %v546 = vmul.f32 %v418, %v279
    %v547 = vmul.f32 %v419, %v279
    %v548 = vmul.f32 %v420, %v285
    %v549 = vmul.f32 %v421, %v285
    %v550 = vmul.f32 %v422, %v285
    %v551 = vmul.f32 %v423, %v285
    %v552 = vmul.f32 %v424, %v285
    %v553 = vmul.f32 %v425, %v285
    %v554 = vmul.f32 %v426, %v285
    %v555 = vmul.f32 %v427, %v285
    %vm556 = vcmask 64512
    %v557 = vsel %vm556, %v492, 0.0
    %558 = vadd.xlane.f32.xlu0 %v557
    %v559 = vpop.xlane.xlu0 %558
    %v560 = vsel %vm556, %v493, 0.0
    %561 = vadd.xlane.f32.xlu0 %v560
    %v562 = vpop.xlane.xlu0 %561
    %v563 = vsel %vm556, %v494, 0.0
    %564 = vadd.xlane.f32.xlu0 %v563
    %v565 = vpop.xlane.xlu0 %564
    %v566 = vsel %vm556, %v495, 0.0
    %567 = vadd.xlane.f32.xlu0 %v566
    %v568 = vpop.xlane.xlu0 %567
    %v569 = vsel %vm556, %v496, 0.0
    %570 = vadd.xlane.f32.xlu0 %v569
    %v571 = vpop.xlane.xlu0 %570
    %v572 = vsel %vm556, %v497, 0.0
    %573 = vadd.xlane.f32.xlu0 %v572
    %v574 = vpop.xlane.xlu0 %573
    %v575 = vsel %vm556, %v498, 0.0
    %576 = vadd.xlane.f32.xlu0 %v575
    %v577 = vpop.xlane.xlu0 %576
    %v578 = vsel %vm556, %v499, 0.0
    %579 = vadd.xlane.f32.xlu0 %v578
    %v580 = vpop.xlane.xlu0 %579
    %v581 = vsel %vm556, %v500, 0.0
    %582 = vadd.xlane.f32.xlu0 %v581
    %v583 = vpop.xlane.xlu0 %582
    %v584 = vsel %vm556, %v501, 0.0
    %585 = vadd.xlane.f32.xlu0 %v584
    %v586 = vpop.xlane.xlu0 %585
    %v587 = vsel %vm556, %v502, 0.0
    %588 = vadd.xlane.f32.xlu0 %v587
    %v589 = vpop.xlane.xlu0 %588
    %v590 = vsel %vm556, %v503, 0.0
    %591 = vadd.xlane.f32.xlu0 %v590
    %v592 = vpop.xlane.xlu0 %591
    %v593 = vsel %vm556, %v504, 0.0
    %594 = vadd.xlane.f32.xlu0 %v593
    %v595 = vpop.xlane.xlu0 %594
    %v596 = vsel %vm556, %v505, 0.0
    %597 = vadd.xlane.f32.xlu0 %v596
    %v598 = vpop.xlane.xlu0 %597
    %v599 = vsel %vm556, %v506, 0.0
    %600 = vadd.xlane.f32.xlu0 %v599
    %v601 = vpop.xlane.xlu0 %600
    %v602 = vsel %vm556, %v507, 0.0
    %603 = vadd.xlane.f32.xlu0 %v602
    %v604 = vpop.xlane.xlu0 %603
    %v605 = vsel %vm556, %v508, 0.0
    %606 = vadd.xlane.f32.xlu0 %v605
    %v607 = vpop.xlane.xlu0 %606
    %v608 = vsel %vm556, %v509, 0.0
    %609 = vadd.xlane.f32.xlu0 %v608
    %v610 = vpop.xlane.xlu0 %609
    %v611 = vsel %vm556, %v510, 0.0
    %612 = vadd.xlane.f32.xlu0 %v611
    %v613 = vpop.xlane.xlu0 %612
    %v614 = vsel %vm556, %v511, 0.0
    %615 = vadd.xlane.f32.xlu0 %v614
    %v616 = vpop.xlane.xlu0 %615
    %v617 = vsel %vm556, %v512, 0.0
    %618 = vadd.xlane.f32.xlu0 %v617
    %v619 = vpop.xlane.xlu0 %618
    %v620 = vsel %vm556, %v513, 0.0
    %621 = vadd.xlane.f32.xlu0 %v620
    %v622 = vpop.xlane.xlu0 %621
    %v623 = vsel %vm556, %v514, 0.0
    %624 = vadd.xlane.f32.xlu0 %v623
    %v625 = vpop.xlane.xlu0 %624
    %v626 = vsel %vm556, %v515, 0.0
    %627 = vadd.xlane.f32.xlu0 %v626
    %v628 = vpop.xlane.xlu0 %627
    %v629 = vsel %vm556, %v516, 0.0
    %630 = vadd.xlane.f32.xlu0 %v629
    %v631 = vpop.xlane.xlu0 %630
    %v632 = vsel %vm556, %v517, 0.0
    %633 = vadd.xlane.f32.xlu0 %v632
    %v634 = vpop.xlane.xlu0 %633
    %v635 = vsel %vm556, %v518, 0.0
    %636 = vadd.xlane.f32.xlu0 %v635
    %v637 = vpop.xlane.xlu0 %636
    %v638 = vsel %vm556, %v519, 0.0
    %639 = vadd.xlane.f32.xlu0 %v638
    %v640 = vpop.xlane.xlu0 %639
    %v641 = vsel %vm556, %v520, 0.0
    %642 = vadd.xlane.f32.xlu0 %v641
    %v643 = vpop.xlane.xlu0 %642
    %v644 = vsel %vm556, %v521, 0.0
    %645 = vadd.xlane.f32.xlu0 %v644
    %v646 = vpop.xlane.xlu0 %645
    %v647 = vsel %vm556, %v522, 0.0
    %648 = vadd.xlane.f32.xlu0 %v647
    %v649 = vpop.xlane.xlu0 %648
    %v650 = vsel %vm556, %v523, 0.0
    %651 = vadd.xlane.f32.xlu0 %v650
    %v652 = vpop.xlane.xlu0 %651
    %v653 = vsel %vm556, %v524, 0.0
    %654 = vadd.xlane.f32.xlu0 %v653
    %v655 = vpop.xlane.xlu0 %654
    %v656 = vsel %vm556, %v525, 0.0
    %657 = vadd.xlane.f32.xlu0 %v656
    %v658 = vpop.xlane.xlu0 %657
    %v659 = vsel %vm556, %v526, 0.0
    %660 = vadd.xlane.f32.xlu0 %v659
    %v661 = vpop.xlane.xlu0 %660
    %v662 = vsel %vm556, %v527, 0.0
    %663 = vadd.xlane.f32.xlu0 %v662
    %v664 = vpop.xlane.xlu0 %663
    %v665 = vsel %vm556, %v528, 0.0
    %666 = vadd.xlane.f32.xlu0 %v665
    %v667 = vpop.xlane.xlu0 %666
    %v668 = vsel %vm556, %v529, 0.0
    %669 = vadd.xlane.f32.xlu0 %v668
    %v670 = vpop.xlane.xlu0 %669
    %v671 = vsel %vm556, %v530, 0.0
    %672 = vadd.xlane.f32.xlu0 %v671
    %v673 = vpop.xlane.xlu0 %672
    %v674 = vsel %vm556, %v531, 0.0
    %675 = vadd.xlane.f32.xlu0 %v674
    %v676 = vpop.xlane.xlu0 %675
    %v677 = vsel %vm556, %v532, 0.0
    %678 = vadd.xlane.f32.xlu0 %v677
    %v679 = vpop.xlane.xlu0 %678
    %v680 = vsel %vm556, %v533, 0.0
    %681 = vadd.xlane.f32.xlu0 %v680
    %v682 = vpop.xlane.xlu0 %681
    %v683 = vsel %vm556, %v534, 0.0
    %684 = vadd.xlane.f32.xlu0 %v683
    %v685 = vpop.xlane.xlu0 %684
    %v686 = vsel %vm556, %v535, 0.0
    %687 = vadd.xlane.f32.xlu0 %v686
    %v688 = vpop.xlane.xlu0 %687
    %v689 = vsel %vm556, %v536, 0.0
    %690 = vadd.xlane.f32.xlu0 %v689
    %v691 = vpop.xlane.xlu0 %690
    %v692 = vsel %vm556, %v537, 0.0
    %693 = vadd.xlane.f32.xlu0 %v692
    %v694 = vpop.xlane.xlu0 %693
    %v695 = vsel %vm556, %v538, 0.0
    %696 = vadd.xlane.f32.xlu0 %v695
    %v697 = vpop.xlane.xlu0 %696
    %v698 = vsel %vm556, %v539, 0.0
    %699 = vadd.xlane.f32.xlu0 %v698
    %v700 = vpop.xlane.xlu0 %699
    %v701 = vsel %vm556, %v540, 0.0
    %702 = vadd.xlane.f32.xlu0 %v701
    %v703 = vpop.xlane.xlu0 %702
    %v704 = vsel %vm556, %v541, 0.0
    %705 = vadd.xlane.f32.xlu0 %v704
    %v706 = vpop.xlane.xlu0 %705
    %v707 = vsel %vm556, %v542, 0.0
    %708 = vadd.xlane.f32.xlu0 %v707
    %v709 = vpop.xlane.xlu0 %708
    %v710 = vsel %vm556, %v543, 0.0
    %711 = vadd.xlane.f32.xlu0 %v710
    %v712 = vpop.xlane.xlu0 %711
    %v713 = vsel %vm556, %v544, 0.0
    %714 = vadd.xlane.f32.xlu0 %v713
    %v715 = vpop.xlane.xlu0 %714
    %v716 = vsel %vm556, %v545, 0.0
    %717 = vadd.xlane.f32.xlu0 %v716
    %v718 = vpop.xlane.xlu0 %717
    %v719 = vsel %vm556, %v546, 0.0
    %720 = vadd.xlane.f32.xlu0 %v719
    %v721 = vpop.xlane.xlu0 %720
    %v722 = vsel %vm556, %v547, 0.0
    %723 = vadd.xlane.f32.xlu0 %v722
    %v724 = vpop.xlane.xlu0 %723
    %v725 = vsel %vm556, %v548, 0.0
    %726 = vadd.xlane.f32.xlu0 %v725
    %v727 = vpop.xlane.xlu0 %726
    %v728 = vsel %vm556, %v549, 0.0
    %729 = vadd.xlane.f32.xlu0 %v728
    %v730 = vpop.xlane.xlu0 %729
    %v731 = vsel %vm556, %v550, 0.0
    %732 = vadd.xlane.f32.xlu0 %v731
    %v733 = vpop.xlane.xlu0 %732
    %v734 = vsel %vm556, %v551, 0.0
    %735 = vadd.xlane.f32.xlu0 %v734
    %v736 = vpop.xlane.xlu0 %735
    %v737 = vsel %vm556, %v552, 0.0
    %738 = vadd.xlane.f32.xlu0 %v737
    %v739 = vpop.xlane.xlu0 %738
    %v740 = vsel %vm556, %v553, 0.0
    %741 = vadd.xlane.f32.xlu0 %v740
    %v742 = vpop.xlane.xlu0 %741
    %v743 = vsel %vm556, %v554, 0.0
    %744 = vadd.xlane.f32.xlu0 %v743
    %v745 = vpop.xlane.xlu0 %744
    %v746 = vsel %vm556, %v555, 0.0
    %747 = vadd.xlane.f32.xlu0 %v746
    %v748 = vpop.xlane.xlu0 %747
    %v749 = vmul.f32 %v559, 0.35355338
    %v750 = vmul.f32 %v562, 0.35355338
    %v751 = vmul.f32 %v565, 0.35355338
    %v752 = vmul.f32 %v568, 0.35355338
    %v753 = vmul.f32 %v571, 0.35355338
    %v754 = vmul.f32 %v574, 0.35355338
    %v755 = vmul.f32 %v577, 0.35355338
    %v756 = vmul.f32 %v580, 0.35355338
    %v757 = vmul.f32 %v583, 0.35355338
    %v758 = vmul.f32 %v586, 0.35355338
    %v759 = vmul.f32 %v589, 0.35355338
    %v760 = vmul.f32 %v592, 0.35355338
    %v761 = vmul.f32 %v595, 0.35355338
    %v762 = vmul.f32 %v598, 0.35355338
    %v763 = vmul.f32 %v601, 0.35355338
    %v764 = vmul.f32 %v604, 0.35355338
    %v765 = vmul.f32 %v607, 0.35355338
    %v766 = vmul.f32 %v610, 0.35355338
    %v767 = vmul.f32 %v613, 0.35355338
    %v768 = vmul.f32 %v616, 0.35355338
    %v769 = vmul.f32 %v619, 0.35355338
    %v770 = vmul.f32 %v622, 0.35355338
    %v771 = vmul.f32 %v625, 0.35355338
    %v772 = vmul.f32 %v628, 0.35355338
    %v773 = vmul.f32 %v631, 0.35355338
    %v774 = vmul.f32 %v634, 0.35355338
    %v775 = vmul.f32 %v637, 0.35355338
    %v776 = vmul.f32 %v640, 0.35355338
    %v777 = vmul.f32 %v643, 0.35355338
    %v778 = vmul.f32 %v646, 0.35355338
    %v779 = vmul.f32 %v649, 0.35355338
    %v780 = vmul.f32 %v652, 0.35355338
    %v781 = vmul.f32 %v655, 0.35355338
    %v782 = vmul.f32 %v658, 0.35355338
    %v783 = vmul.f32 %v661, 0.35355338
    %v784 = vmul.f32 %v664, 0.35355338
    %v785 = vmul.f32 %v667, 0.35355338
    %v786 = vmul.f32 %v670, 0.35355338
    %v787 = vmul.f32 %v673, 0.35355338
    %v788 = vmul.f32 %v676, 0.35355338
    %v789 = vmul.f32 %v679, 0.35355338
    %v790 = vmul.f32 %v682, 0.35355338
    %v791 = vmul.f32 %v685, 0.35355338
    %v792 = vmul.f32 %v688, 0.35355338
    %v793 = vmul.f32 %v691, 0.35355338
    %v794 = vmul.f32 %v694, 0.35355338
    %v795 = vmul.f32 %v697, 0.35355338
    %v796 = vmul.f32 %v700, 0.35355338
    %v797 = vmul.f32 %v703, 0.35355338
    %v798 = vmul.f32 %v706, 0.35355338
    %v799 = vmul.f32 %v709, 0.35355338
    %v800 = vmul.f32 %v712, 0.35355338
    %v801 = vmul.f32 %v715, 0.35355338
    %v802 = vmul.f32 %v718, 0.35355338
    %v803 = vmul.f32 %v721, 0.35355338
    %v804 = vmul.f32 %v724, 0.35355338
    %v805 = vmul.f32 %v727, 0.35355338
    %v806 = vmul.f32 %v730, 0.35355338
    %v807 = vmul.f32 %v733, 0.35355338
    %v808 = vmul.f32 %v736, 0.35355338
    %v809 = vmul.f32 %v739, 0.35355338
    %v810 = vmul.f32 %v742, 0.35355338
    %v811 = vmul.f32 %v745, 0.35355338
    %v812 = vmul.f32 %v748, 0.35355338
    %v813 = vlaneseq
    %v814 = vshrl.u32 %v813, 7
    %816 = vset.pattern.permute.xlu0 %v814
    %817 = vperm.xlu0 %816, %v158
    %v818 = vpop.permute.xlu0 %817
    %v819 = vlaneseq
    %v820 = vshrl.u32 %v819, 7
    %822 = vset.pattern.permute.xlu0 %v820
    %823 = vperm.xlu0 %822, %v159
    %v824 = vpop.permute.xlu0 %823
    %v827 = vadd.f32 %v749, %v818
    %v828 = vadd.f32 %v750, %v818
    %v829 = vadd.f32 %v751, %v818
    %v830 = vadd.f32 %v752, %v818
    %v831 = vadd.f32 %v753, %v818
    %v832 = vadd.f32 %v754, %v818
    %v833 = vadd.f32 %v755, %v818
    %v834 = vadd.f32 %v756, %v818
    %v835 = vadd.f32 %v757, %v818
    %v836 = vadd.f32 %v758, %v818
    %v837 = vadd.f32 %v759, %v818
    %v838 = vadd.f32 %v760, %v818
    %v839 = vadd.f32 %v761, %v818
    %v840 = vadd.f32 %v762, %v818
    %v841 = vadd.f32 %v763, %v818
    %v842 = vadd.f32 %v764, %v818
    %v843 = vadd.f32 %v765, %v818
    %v844 = vadd.f32 %v766, %v818
    %v845 = vadd.f32 %v767, %v818
    %v846 = vadd.f32 %v768, %v818
    %v847 = vadd.f32 %v769, %v818
    %v848 = vadd.f32 %v770, %v818
    %v849 = vadd.f32 %v771, %v818
    %v850 = vadd.f32 %v772, %v818
    %v851 = vadd.f32 %v773, %v818
    %v852 = vadd.f32 %v774, %v818
    %v853 = vadd.f32 %v775, %v818
    %v854 = vadd.f32 %v776, %v818
    %v855 = vadd.f32 %v777, %v818
    %v856 = vadd.f32 %v778, %v818
    %v857 = vadd.f32 %v779, %v818
    %v858 = vadd.f32 %v780, %v818
    %v859 = vadd.f32 %v781, %v824
    %v860 = vadd.f32 %v782, %v824
    %v861 = vadd.f32 %v783, %v824
    %v862 = vadd.f32 %v784, %v824
    %v863 = vadd.f32 %v785, %v824
    %v864 = vadd.f32 %v786, %v824
    %v865 = vadd.f32 %v787, %v824
    %v866 = vadd.f32 %v788, %v824
    %v867 = vadd.f32 %v789, %v824
    %v868 = vadd.f32 %v790, %v824
    %v869 = vadd.f32 %v791, %v824
    %v870 = vadd.f32 %v792, %v824
    %v871 = vadd.f32 %v793, %v824
    %v872 = vadd.f32 %v794, %v824
    %v873 = vadd.f32 %v795, %v824
    %v874 = vadd.f32 %v796, %v824
    %v875 = vadd.f32 %v797, %v824
    %v876 = vadd.f32 %v798, %v824
    %v877 = vadd.f32 %v799, %v824
    %v878 = vadd.f32 %v800, %v824
    %v879 = vadd.f32 %v801, %v824
    %v880 = vadd.f32 %v802, %v824
    %v881 = vadd.f32 %v803, %v824
    %v882 = vadd.f32 %v804, %v824
    %v883 = vadd.f32 %v805, %v824
    %v884 = vadd.f32 %v806, %v824
    %v885 = vadd.f32 %v807, %v824
    %v886 = vadd.f32 %v808, %v824
    %v887 = vadd.f32 %v809, %v824
    %v888 = vadd.f32 %v810, %v824
    %v889 = vadd.f32 %v811, %v824
    %v890 = vadd.f32 %v812, %v824
    %955 = vset.pattern.permute.xlu0 0
    %956 = vperm.xlu0 %955, %v827
    %v957 = vpop.permute.xlu0 %956
    %958 = vset.pattern.permute.xlu0 0
    %959 = vperm.xlu0 %958, %v828
    %v960 = vpop.permute.xlu0 %959
    %961 = vset.pattern.permute.xlu0 0
    %962 = vperm.xlu0 %961, %v829
    %v963 = vpop.permute.xlu0 %962
    %964 = vset.pattern.permute.xlu0 0
    %965 = vperm.xlu0 %964, %v830
    %v966 = vpop.permute.xlu0 %965
    %967 = vset.pattern.permute.xlu0 0
    %968 = vperm.xlu0 %967, %v831
    %v969 = vpop.permute.xlu0 %968
    %970 = vset.pattern.permute.xlu0 0
    %971 = vperm.xlu0 %970, %v832
    %v972 = vpop.permute.xlu0 %971
    %973 = vset.pattern.permute.xlu0 0
    %974 = vperm.xlu0 %973, %v833
    %v975 = vpop.permute.xlu0 %974
    %976 = vset.pattern.permute.xlu0 0
    %977 = vperm.xlu0 %976, %v834
    %v978 = vpop.permute.xlu0 %977
    %979 = vset.pattern.permute.xlu0 0
    %980 = vperm.xlu0 %979, %v835
    %v981 = vpop.permute.xlu0 %980
    %982 = vset.pattern.permute.xlu0 0
    %983 = vperm.xlu0 %982, %v836
    %v984 = vpop.permute.xlu0 %983
    %985 = vset.pattern.permute.xlu0 0
    %986 = vperm.xlu0 %985, %v837
    %v987 = vpop.permute.xlu0 %986
    %988 = vset.pattern.permute.xlu0 0
    %989 = vperm.xlu0 %988, %v838
    %v990 = vpop.permute.xlu0 %989
    %991 = vset.pattern.permute.xlu0 0
    %992 = vperm.xlu0 %991, %v839
    %v993 = vpop.permute.xlu0 %992
    %994 = vset.pattern.permute.xlu0 0
    %995 = vperm.xlu0 %994, %v840
    %v996 = vpop.permute.xlu0 %995
    %997 = vset.pattern.permute.xlu0 0
    %998 = vperm.xlu0 %997, %v841
    %v999 = vpop.permute.xlu0 %998
    %1000 = vset.pattern.permute.xlu0 0
    %1001 = vperm.xlu0 %1000, %v842
    %v1002 = vpop.permute.xlu0 %1001
    %1003 = vset.pattern.permute.xlu0 0
    %1004 = vperm.xlu0 %1003, %v843
    %v1005 = vpop.permute.xlu0 %1004
    %1006 = vset.pattern.permute.xlu0 0
    %1007 = vperm.xlu0 %1006, %v844
    %v1008 = vpop.permute.xlu0 %1007
    %1009 = vset.pattern.permute.xlu0 0
    %1010 = vperm.xlu0 %1009, %v845
    %v1011 = vpop.permute.xlu0 %1010
    %1012 = vset.pattern.permute.xlu0 0
    %1013 = vperm.xlu0 %1012, %v846
    %v1014 = vpop.permute.xlu0 %1013
    %1015 = vset.pattern.permute.xlu0 0
    %1016 = vperm.xlu0 %1015, %v847
    %v1017 = vpop.permute.xlu0 %1016
    %1018 = vset.pattern.permute.xlu0 0
    %1019 = vperm.xlu0 %1018, %v848
    %v1020 = vpop.permute.xlu0 %1019
    %1021 = vset.pattern.permute.xlu0 0
    %1022 = vperm.xlu0 %1021, %v849
    %v1023 = vpop.permute.xlu0 %1022
    %1024 = vset.pattern.permute.xlu0 0
    %1025 = vperm.xlu0 %1024, %v850
    %v1026 = vpop.permute.xlu0 %1025
    %1027 = vset.pattern.permute.xlu0 0
    %1028 = vperm.xlu0 %1027, %v851
    %v1029 = vpop.permute.xlu0 %1028
    %1030 = vset.pattern.permute.xlu0 0
    %1031 = vperm.xlu0 %1030, %v852
    %v1032 = vpop.permute.xlu0 %1031
    %1033 = vset.pattern.permute.xlu0 0
    %1034 = vperm.xlu0 %1033, %v853
    %v1035 = vpop.permute.xlu0 %1034
    %1036 = vset.pattern.permute.xlu0 0
    %1037 = vperm.xlu0 %1036, %v854
    %v1038 = vpop.permute.xlu0 %1037
    %1039 = vset.pattern.permute.xlu0 0
    %1040 = vperm.xlu0 %1039, %v855
    %v1041 = vpop.permute.xlu0 %1040
    %1042 = vset.pattern.permute.xlu0 0
    %1043 = vperm.xlu0 %1042, %v856
    %v1044 = vpop.permute.xlu0 %1043
    %1045 = vset.pattern.permute.xlu0 0
    %1046 = vperm.xlu0 %1045, %v857
    %v1047 = vpop.permute.xlu0 %1046
    %1048 = vset.pattern.permute.xlu0 0
    %1049 = vperm.xlu0 %1048, %v858
    %v1050 = vpop.permute.xlu0 %1049
    %1051 = vset.pattern.permute.xlu0 0
    %1052 = vperm.xlu0 %1051, %v859
    %v1053 = vpop.permute.xlu0 %1052
    %1054 = vset.pattern.permute.xlu0 0
    %1055 = vperm.xlu0 %1054, %v860
    %v1056 = vpop.permute.xlu0 %1055
    %1057 = vset.pattern.permute.xlu0 0
    %1058 = vperm.xlu0 %1057, %v861
    %v1059 = vpop.permute.xlu0 %1058
    %1060 = vset.pattern.permute.xlu0 0
    %1061 = vperm.xlu0 %1060, %v862
    %v1062 = vpop.permute.xlu0 %1061
    %1063 = vset.pattern.permute.xlu0 0
    %1064 = vperm.xlu0 %1063, %v863
    %v1065 = vpop.permute.xlu0 %1064
    %1066 = vset.pattern.permute.xlu0 0
    %1067 = vperm.xlu0 %1066, %v864
    %v1068 = vpop.permute.xlu0 %1067
    %1069 = vset.pattern.permute.xlu0 0
    %1070 = vperm.xlu0 %1069, %v865
    %v1071 = vpop.permute.xlu0 %1070
    %1072 = vset.pattern.permute.xlu0 0
    %1073 = vperm.xlu0 %1072, %v866
    %v1074 = vpop.permute.xlu0 %1073
    %1075 = vset.pattern.permute.xlu0 0
    %1076 = vperm.xlu0 %1075, %v867
    %v1077 = vpop.permute.xlu0 %1076
    %1078 = vset.pattern.permute.xlu0 0
    %1079 = vperm.xlu0 %1078, %v868
    %v1080 = vpop.permute.xlu0 %1079
    %1081 = vset.pattern.permute.xlu0 0
    %1082 = vperm.xlu0 %1081, %v869
    %v1083 = vpop.permute.xlu0 %1082
    %1084 = vset.pattern.permute.xlu0 0
    %1085 = vperm.xlu0 %1084, %v870
    %v1086 = vpop.permute.xlu0 %1085
    %1087 = vset.pattern.permute.xlu0 0
    %1088 = vperm.xlu0 %1087, %v871
    %v1089 = vpop.permute.xlu0 %1088
    %1090 = vset.pattern.permute.xlu0 0
    %1091 = vperm.xlu0 %1090, %v872
    %v1092 = vpop.permute.xlu0 %1091
    %1093 = vset.pattern.permute.xlu0 0
    %1094 = vperm.xlu0 %1093, %v873
    %v1095 = vpop.permute.xlu0 %1094
    %1096 = vset.pattern.permute.xlu0 0
    %1097 = vperm.xlu0 %1096, %v874
    %v1098 = vpop.permute.xlu0 %1097
    %1099 = vset.pattern.permute.xlu0 0
    %1100 = vperm.xlu0 %1099, %v875
    %v1101 = vpop.permute.xlu0 %1100
    %1102 = vset.pattern.permute.xlu0 0
    %1103 = vperm.xlu0 %1102, %v876
    %v1104 = vpop.permute.xlu0 %1103
    %1105 = vset.pattern.permute.xlu0 0
    %1106 = vperm.xlu0 %1105, %v877
    %v1107 = vpop.permute.xlu0 %1106
    %1108 = vset.pattern.permute.xlu0 0
    %1109 = vperm.xlu0 %1108, %v878
    %v1110 = vpop.permute.xlu0 %1109
    %1111 = vset.pattern.permute.xlu0 0
    %1112 = vperm.xlu0 %1111, %v879
    %v1113 = vpop.permute.xlu0 %1112
    %1114 = vset.pattern.permute.xlu0 0
    %1115 = vperm.xlu0 %1114, %v880
    %v1116 = vpop.permute.xlu0 %1115
    %1117 = vset.pattern.permute.xlu0 0
    %1118 = vperm.xlu0 %1117, %v881
    %v1119 = vpop.permute.xlu0 %1118
    %1120 = vset.pattern.permute.xlu0 0
    %1121 = vperm.xlu0 %1120, %v882
    %v1122 = vpop.permute.xlu0 %1121
    %1123 = vset.pattern.permute.xlu0 0
    %1124 = vperm.xlu0 %1123, %v883
    %v1125 = vpop.permute.xlu0 %1124
    %1126 = vset.pattern.permute.xlu0 0
    %1127 = vperm.xlu0 %1126, %v884
    %v1128 = vpop.permute.xlu0 %1127
    %1129 = vset.pattern.permute.xlu0 0
    %1130 = vperm.xlu0 %1129, %v885
    %v1131 = vpop.permute.xlu0 %1130
    %1132 = vset.pattern.permute.xlu0 0
    %1133 = vperm.xlu0 %1132, %v886
    %v1134 = vpop.permute.xlu0 %1133
    %1135 = vset.pattern.permute.xlu0 0
    %1136 = vperm.xlu0 %1135, %v887
    %v1137 = vpop.permute.xlu0 %1136
    %1138 = vset.pattern.permute.xlu0 0
    %1139 = vperm.xlu0 %1138, %v888
    %v1140 = vpop.permute.xlu0 %1139
    %1141 = vset.pattern.permute.xlu0 0
    %1142 = vperm.xlu0 %1141, %v889
    %v1143 = vpop.permute.xlu0 %1142
    %1144 = vset.pattern.permute.xlu0 0
    %1145 = vperm.xlu0 %1144, %v890
    %v1146 = vpop.permute.xlu0 %1145
    %v1147 = vperm.slane %v957, %v41
    %v1148 = vperm.slane %v960, %v41
    %v1149 = vperm.slane %v963, %v41
    %v1150 = vperm.slane %v966, %v41
    %v1151 = vperm.slane %v969, %v41
    %v1152 = vperm.slane %v972, %v41
    %v1153 = vperm.slane %v975, %v41
    %v1154 = vperm.slane %v978, %v41
    %v1155 = vperm.slane %v981, %v41
    %v1156 = vperm.slane %v984, %v41
    %v1157 = vperm.slane %v987, %v41
    %v1158 = vperm.slane %v990, %v41
    %v1159 = vperm.slane %v993, %v41
    %v1160 = vperm.slane %v996, %v41
    %v1161 = vperm.slane %v999, %v41
    %v1162 = vperm.slane %v1002, %v41
    %v1163 = vperm.slane %v1005, %v41
    %v1164 = vperm.slane %v1008, %v41
    %v1165 = vperm.slane %v1011, %v41
    %v1166 = vperm.slane %v1014, %v41
    %v1167 = vperm.slane %v1017, %v41
    %v1168 = vperm.slane %v1020, %v41
    %v1169 = vperm.slane %v1023, %v41
    %v1170 = vperm.slane %v1026, %v41
    %v1171 = vperm.slane %v1029, %v41
    %v1172 = vperm.slane %v1032, %v41
    %v1173 = vperm.slane %v1035, %v41
    %v1174 = vperm.slane %v1038, %v41
    %v1175 = vperm.slane %v1041, %v41
    %v1176 = vperm.slane %v1044, %v41
    %v1177 = vperm.slane %v1047, %v41
    %v1178 = vperm.slane %v1050, %v41
    %v1179 = vperm.slane %v1053, %v41
    %v1180 = vperm.slane %v1056, %v41
    %v1181 = vperm.slane %v1059, %v41
    %v1182 = vperm.slane %v1062, %v41
    %v1183 = vperm.slane %v1065, %v41
    %v1184 = vperm.slane %v1068, %v41
    %v1185 = vperm.slane %v1071, %v41
    %v1186 = vperm.slane %v1074, %v41
    %v1187 = vperm.slane %v1077, %v41
    %v1188 = vperm.slane %v1080, %v41
    %v1189 = vperm.slane %v1083, %v41
    %v1190 = vperm.slane %v1086, %v41
    %v1191 = vperm.slane %v1089, %v41
    %v1192 = vperm.slane %v1092, %v41
    %v1193 = vperm.slane %v1095, %v41
    %v1194 = vperm.slane %v1098, %v41
    %v1195 = vperm.slane %v1101, %v41
    %v1196 = vperm.slane %v1104, %v41
    %v1197 = vperm.slane %v1107, %v41
    %v1198 = vperm.slane %v1110, %v41
    %v1199 = vperm.slane %v1113, %v41
    %v1200 = vperm.slane %v1116, %v41
    %v1201 = vperm.slane %v1119, %v41
    %v1202 = vperm.slane %v1122, %v41
    %v1203 = vperm.slane %v1125, %v41
    %v1204 = vperm.slane %v1128, %v41
    %v1205 = vperm.slane %v1131, %v41
    %v1206 = vperm.slane %v1134, %v41
    %v1207 = vperm.slane %v1137, %v41
    %v1208 = vperm.slane %v1140, %v41
    %v1209 = vperm.slane %v1143, %v41
    %v1210 = vperm.slane %v1146, %v41
    %vm1211 = vcmask 1041409
    %v1212 = vsel %vm1211, %v1148, %v1147
    %vm1213 = vcmask 1042434
    %v1214 = vsel %vm1213, %v1149, %v1212
    %vm1215 = vcmask 1043459
    %v1216 = vsel %vm1215, %v1150, %v1214
    %vm1217 = vcmask 1044484
    %v1218 = vsel %vm1217, %v1151, %v1216
    %vm1219 = vcmask 1045509
    %v1220 = vsel %vm1219, %v1152, %v1218
    %vm1221 = vcmask 1046534
    %v1222 = vsel %vm1221, %v1153, %v1220
    %vm1223 = vcmask 1047559
    %v1224 = vsel %vm1223, %v1154, %v1222
    %v1225 = vsel %vm1211, %v1156, %v1155
    %v1226 = vsel %vm1213, %v1157, %v1225
    %v1227 = vsel %vm1215, %v1158, %v1226
    %v1228 = vsel %vm1217, %v1159, %v1227
    %v1229 = vsel %vm1219, %v1160, %v1228
    %v1230 = vsel %vm1221, %v1161, %v1229
    %v1231 = vsel %vm1223, %v1162, %v1230
    %v1232 = vsel %vm1211, %v1164, %v1163
    %v1233 = vsel %vm1213, %v1165, %v1232
    %v1234 = vsel %vm1215, %v1166, %v1233
    %v1235 = vsel %vm1217, %v1167, %v1234
    %v1236 = vsel %vm1219, %v1168, %v1235
    %v1237 = vsel %vm1221, %v1169, %v1236
    %v1238 = vsel %vm1223, %v1170, %v1237
    %v1239 = vsel %vm1211, %v1172, %v1171
    %v1240 = vsel %vm1213, %v1173, %v1239
    %v1241 = vsel %vm1215, %v1174, %v1240
    %v1242 = vsel %vm1217, %v1175, %v1241
    %v1243 = vsel %vm1219, %v1176, %v1242
    %v1244 = vsel %vm1221, %v1177, %v1243
    %v1245 = vsel %vm1223, %v1178, %v1244
    %v1246 = vsel %vm1211, %v1180, %v1179
    %v1247 = vsel %vm1213, %v1181, %v1246
    %v1248 = vsel %vm1215, %v1182, %v1247
    %v1249 = vsel %vm1217, %v1183, %v1248
    %v1250 = vsel %vm1219, %v1184, %v1249
    %v1251 = vsel %vm1221, %v1185, %v1250
    %v1252 = vsel %vm1223, %v1186, %v1251
    %v1253 = vsel %vm1211, %v1188, %v1187
    %v1254 = vsel %vm1213, %v1189, %v1253
    %v1255 = vsel %vm1215, %v1190, %v1254
    %v1256 = vsel %vm1217, %v1191, %v1255
    %v1257 = vsel %vm1219, %v1192, %v1256
    %v1258 = vsel %vm1221, %v1193, %v1257
    %v1259 = vsel %vm1223, %v1194, %v1258
    %v1260 = vsel %vm1211, %v1196, %v1195
    %v1261 = vsel %vm1213, %v1197, %v1260
    %v1262 = vsel %vm1215, %v1198, %v1261
    %v1263 = vsel %vm1217, %v1199, %v1262
    %v1264 = vsel %vm1219, %v1200, %v1263
    %v1265 = vsel %vm1221, %v1201, %v1264
    %v1266 = vsel %vm1223, %v1202, %v1265
    %v1267 = vsel %vm1211, %v1204, %v1203
    %v1268 = vsel %vm1213, %v1205, %v1267
    %v1269 = vsel %vm1215, %v1206, %v1268
    %v1270 = vsel %vm1217, %v1207, %v1269
    %v1271 = vsel %vm1219, %v1208, %v1270
    %v1272 = vsel %vm1221, %v1209, %v1271
    %v1273 = vsel %vm1223, %v1210, %v1272
    %v1282 = vsel %vm556, %v1224, -inf
    %1283 = vmax.xlane.f32.xlu0 %v1282
    %v1284 = vpop.xlane.xlu0 %1283
    %v1285 = vsel %vm556, %v1231, -inf
    %1286 = vmax.xlane.f32.xlu0 %v1285
    %v1287 = vpop.xlane.xlu0 %1286
    %v1288 = vsel %vm556, %v1238, -inf
    %1289 = vmax.xlane.f32.xlu0 %v1288
    %v1290 = vpop.xlane.xlu0 %1289
    %v1291 = vsel %vm556, %v1245, -inf
    %1292 = vmax.xlane.f32.xlu0 %v1291
    %v1293 = vpop.xlane.xlu0 %1292
    %v1294 = vsel %vm556, %v1252, -inf
    %1295 = vmax.xlane.f32.xlu0 %v1294
    %v1296 = vpop.xlane.xlu0 %1295
    %v1297 = vsel %vm556, %v1259, -inf
    %1298 = vmax.xlane.f32.xlu0 %v1297
    %v1299 = vpop.xlane.xlu0 %1298
    %v1300 = vsel %vm556, %v1266, -inf
    %1301 = vmax.xlane.f32.xlu0 %v1300
    %v1302 = vpop.xlane.xlu0 %1301
    %v1303 = vsel %vm556, %v1273, -inf
    %1304 = vmax.xlane.f32.xlu0 %v1303
    %v1305 = vpop.xlane.xlu0 %1304
    %v1314 = vperm.slane %v1284, 0
    %v1315 = vperm.slane %v1284, 1
    %v1316 = vperm.slane %v1284, 2
    %v1317 = vperm.slane %v1284, 3
    %v1318 = vperm.slane %v1284, 4
    %v1319 = vperm.slane %v1284, 5
    %v1320 = vperm.slane %v1284, 6
    %v1321 = vperm.slane %v1284, 7
    %v1322 = vperm.slane %v1287, 0
    %v1323 = vperm.slane %v1287, 1
    %v1324 = vperm.slane %v1287, 2
    %v1325 = vperm.slane %v1287, 3
    %v1326 = vperm.slane %v1287, 4
    %v1327 = vperm.slane %v1287, 5
    %v1328 = vperm.slane %v1287, 6
    %v1329 = vperm.slane %v1287, 7
    %v1330 = vperm.slane %v1290, 0
    %v1331 = vperm.slane %v1290, 1
    %v1332 = vperm.slane %v1290, 2
    %v1333 = vperm.slane %v1290, 3
    %v1334 = vperm.slane %v1290, 4
    %v1335 = vperm.slane %v1290, 5
    %v1336 = vperm.slane %v1290, 6
    %v1337 = vperm.slane %v1290, 7
    %v1338 = vperm.slane %v1293, 0
    %v1339 = vperm.slane %v1293, 1
    %v1340 = vperm.slane %v1293, 2
    %v1341 = vperm.slane %v1293, 3
    %v1342 = vperm.slane %v1293, 4
    %v1343 = vperm.slane %v1293, 5
    %v1344 = vperm.slane %v1293, 6
    %v1345 = vperm.slane %v1293, 7
    %v1346 = vperm.slane %v1296, 0
    %v1347 = vperm.slane %v1296, 1
    %v1348 = vperm.slane %v1296, 2
    %v1349 = vperm.slane %v1296, 3
    %v1350 = vperm.slane %v1296, 4
    %v1351 = vperm.slane %v1296, 5
    %v1352 = vperm.slane %v1296, 6
    %v1353 = vperm.slane %v1296, 7
    %v1354 = vperm.slane %v1299, 0
    %v1355 = vperm.slane %v1299, 1
    %v1356 = vperm.slane %v1299, 2
    %v1357 = vperm.slane %v1299, 3
    %v1358 = vperm.slane %v1299, 4
    %v1359 = vperm.slane %v1299, 5
    %v1360 = vperm.slane %v1299, 6
    %v1361 = vperm.slane %v1299, 7
    %v1362 = vperm.slane %v1302, 0
    %v1363 = vperm.slane %v1302, 1
    %v1364 = vperm.slane %v1302, 2
    %v1365 = vperm.slane %v1302, 3
    %v1366 = vperm.slane %v1302, 4
    %v1367 = vperm.slane %v1302, 5
    %v1368 = vperm.slane %v1302, 6
    %v1369 = vperm.slane %v1302, 7
    %v1370 = vperm.slane %v1305, 0
    %v1371 = vperm.slane %v1305, 1
    %v1372 = vperm.slane %v1305, 2
    %v1373 = vperm.slane %v1305, 3
    %v1374 = vperm.slane %v1305, 4
    %v1375 = vperm.slane %v1305, 5
    %v1376 = vperm.slane %v1305, 6
    %v1377 = vperm.slane %v1305, 7
    %v1442 = vsub.f32 %v827, %v1314
    %v1443 = vsub.f32 %v828, %v1315
    %v1444 = vsub.f32 %v829, %v1316
    %v1445 = vsub.f32 %v830, %v1317
    %v1446 = vsub.f32 %v831, %v1318
    %v1447 = vsub.f32 %v832, %v1319
    %v1448 = vsub.f32 %v833, %v1320
    %v1449 = vsub.f32 %v834, %v1321
    %v1450 = vsub.f32 %v835, %v1322
    %v1451 = vsub.f32 %v836, %v1323
    %v1452 = vsub.f32 %v837, %v1324
    %v1453 = vsub.f32 %v838, %v1325
    %v1454 = vsub.f32 %v839, %v1326
    %v1455 = vsub.f32 %v840, %v1327
    %v1456 = vsub.f32 %v841, %v1328
    %v1457 = vsub.f32 %v842, %v1329
    %v1458 = vsub.f32 %v843, %v1330
    %v1459 = vsub.f32 %v844, %v1331
    %v1460 = vsub.f32 %v845, %v1332
    %v1461 = vsub.f32 %v846, %v1333
    %v1462 = vsub.f32 %v847, %v1334
    %v1463 = vsub.f32 %v848, %v1335
    %v1464 = vsub.f32 %v849, %v1336
    %v1465 = vsub.f32 %v850, %v1337
    %v1466 = vsub.f32 %v851, %v1338
    %v1467 = vsub.f32 %v852, %v1339
    %v1468 = vsub.f32 %v853, %v1340
    %v1469 = vsub.f32 %v854, %v1341
    %v1470 = vsub.f32 %v855, %v1342
    %v1471 = vsub.f32 %v856, %v1343
    %v1472 = vsub.f32 %v857, %v1344
    %v1473 = vsub.f32 %v858, %v1345
    %v1474 = vsub.f32 %v859, %v1346
    %v1475 = vsub.f32 %v860, %v1347
    %v1476 = vsub.f32 %v861, %v1348
    %v1477 = vsub.f32 %v862, %v1349
    %v1478 = vsub.f32 %v863, %v1350
    %v1479 = vsub.f32 %v864, %v1351
    %v1480 = vsub.f32 %v865, %v1352
    %v1481 = vsub.f32 %v866, %v1353
    %v1482 = vsub.f32 %v867, %v1354
    %v1483 = vsub.f32 %v868, %v1355
    %v1484 = vsub.f32 %v869, %v1356
    %v1485 = vsub.f32 %v870, %v1357
    %v1486 = vsub.f32 %v871, %v1358
    %v1487 = vsub.f32 %v872, %v1359
    %v1488 = vsub.f32 %v873, %v1360
    %v1489 = vsub.f32 %v874, %v1361
    %v1490 = vsub.f32 %v875, %v1362
    %v1491 = vsub.f32 %v876, %v1363
    %v1492 = vsub.f32 %v877, %v1364
    %v1493 = vsub.f32 %v878, %v1365
    %v1494 = vsub.f32 %v879, %v1366
    %v1495 = vsub.f32 %v880, %v1367
    %v1496 = vsub.f32 %v881, %v1368
    %v1497 = vsub.f32 %v882, %v1369
    %v1498 = vsub.f32 %v883, %v1370
    %v1499 = vsub.f32 %v884, %v1371
    %v1500 = vsub.f32 %v885, %v1372
    %v1501 = vsub.f32 %v886, %v1373
    %v1502 = vsub.f32 %v887, %v1374
    %v1503 = vsub.f32 %v888, %v1375
    %v1504 = vsub.f32 %v889, %v1376
    %v1505 = vsub.f32 %v890, %v1377
    %v1506 = vmul.f32 %v1442, 1.442695
    %v1507 = vpow.pop %v1506
    %v1508 = vmul.f32 %v1443, 1.442695
    %v1509 = vpow.pop %v1508
    %v1510 = vmul.f32 %v1444, 1.442695
    %v1511 = vpow.pop %v1510
    %v1512 = vmul.f32 %v1445, 1.442695
    %v1513 = vpow.pop %v1512
    %v1514 = vmul.f32 %v1446, 1.442695
    %v1515 = vpow.pop %v1514
    %v1516 = vmul.f32 %v1447, 1.442695
    %v1517 = vpow.pop %v1516
    %v1518 = vmul.f32 %v1448, 1.442695
    %v1519 = vpow.pop %v1518
    %v1520 = vmul.f32 %v1449, 1.442695
    %v1521 = vpow.pop %v1520
    %v1522 = vmul.f32 %v1450, 1.442695
    %v1523 = vpow.pop %v1522
    %v1524 = vmul.f32 %v1451, 1.442695
    %v1525 = vpow.pop %v1524
    %v1526 = vmul.f32 %v1452, 1.442695
    %v1527 = vpow.pop %v1526
    %v1528 = vmul.f32 %v1453, 1.442695
    %v1529 = vpow.pop %v1528
    %v1530 = vmul.f32 %v1454, 1.442695
    %v1531 = vpow.pop %v1530
    %v1532 = vmul.f32 %v1455, 1.442695
    %v1533 = vpow.pop %v1532
    %v1534 = vmul.f32 %v1456, 1.442695
    %v1535 = vpow.pop %v1534
    %v1536 = vmul.f32 %v1457, 1.442695
    %v1537 = vpow.pop %v1536
    %v1538 = vmul.f32 %v1458, 1.442695
    %v1539 = vpow.pop %v1538
    %v1540 = vmul.f32 %v1459, 1.442695
    %v1541 = vpow.pop %v1540
    %v1542 = vmul.f32 %v1460, 1.442695
    %v1543 = vpow.pop %v1542
    %v1544 = vmul.f32 %v1461, 1.442695
    %v1545 = vpow.pop %v1544
    %v1546 = vmul.f32 %v1462, 1.442695
    %v1547 = vpow.pop %v1546
    %v1548 = vmul.f32 %v1463, 1.442695
    %v1549 = vpow.pop %v1548
    %v1550 = vmul.f32 %v1464, 1.442695
    %v1551 = vpow.pop %v1550
    %v1552 = vmul.f32 %v1465, 1.442695
    %v1553 = vpow.pop %v1552
    %v1554 = vmul.f32 %v1466, 1.442695
    %v1555 = vpow.pop %v1554
    %v1556 = vmul.f32 %v1467, 1.442695
    %v1557 = vpow.pop %v1556
    %v1558 = vmul.f32 %v1468, 1.442695
    %v1559 = vpow.pop %v1558
    %v1560 = vmul.f32 %v1469, 1.442695
    %v1561 = vpow.pop %v1560
    %v1562 = vmul.f32 %v1470, 1.442695
    %v1563 = vpow.pop %v1562
    %v1564 = vmul.f32 %v1471, 1.442695
    %v1565 = vpow.pop %v1564
    %v1566 = vmul.f32 %v1472, 1.442695
    %v1567 = vpow.pop %v1566
    %v1568 = vmul.f32 %v1473, 1.442695
    %v1569 = vpow.pop %v1568
    %v1570 = vmul.f32 %v1474, 1.442695
    %v1571 = vpow.pop %v1570
    %v1572 = vmul.f32 %v1475, 1.442695
    %v1573 = vpow.pop %v1572
    %v1574 = vmul.f32 %v1476, 1.442695
    %v1575 = vpow.pop %v1574
    %v1576 = vmul.f32 %v1477, 1.442695
    %v1577 = vpow.pop %v1576
    %v1578 = vmul.f32 %v1478, 1.442695
    %v1579 = vpow.pop %v1578
    %v1580 = vmul.f32 %v1479, 1.442695
    %v1581 = vpow.pop %v1580
    %v1582 = vmul.f32 %v1480, 1.442695
    %v1583 = vpow.pop %v1582
    %v1584 = vmul.f32 %v1481, 1.442695
    %v1585 = vpow.pop %v1584
    %v1586 = vmul.f32 %v1482, 1.442695
    %v1587 = vpow.pop %v1586
    %v1588 = vmul.f32 %v1483, 1.442695
    %v1589 = vpow.pop %v1588
    %v1590 = vmul.f32 %v1484, 1.442695
    %v1591 = vpow.pop %v1590
    %v1592 = vmul.f32 %v1485, 1.442695
    %v1593 = vpow.pop %v1592
    %v1594 = vmul.f32 %v1486, 1.442695
    %v1595 = vpow.pop %v1594
    %v1596 = vmul.f32 %v1487, 1.442695
    %v1597 = vpow.pop %v1596
    %v1598 = vmul.f32 %v1488, 1.442695
    %v1599 = vpow.pop %v1598
    %v1600 = vmul.f32 %v1489, 1.442695
    %v1601 = vpow.pop %v1600
    %v1602 = vmul.f32 %v1490, 1.442695
    %v1603 = vpow.pop %v1602
    %v1604 = vmul.f32 %v1491, 1.442695
    %v1605 = vpow.pop %v1604
    %v1606 = vmul.f32 %v1492, 1.442695
    %v1607 = vpow.pop %v1606
    %v1608 = vmul.f32 %v1493, 1.442695
    %v1609 = vpow.pop %v1608
    %v1610 = vmul.f32 %v1494, 1.442695
    %v1611 = vpow.pop %v1610
    %v1612 = vmul.f32 %v1495, 1.442695
    %v1613 = vpow.pop %v1612
    %v1614 = vmul.f32 %v1496, 1.442695
    %v1615 = vpow.pop %v1614
    %v1616 = vmul.f32 %v1497, 1.442695
    %v1617 = vpow.pop %v1616
    %v1618 = vmul.f32 %v1498, 1.442695
    %v1619 = vpow.pop %v1618
    %v1620 = vmul.f32 %v1499, 1.442695
    %v1621 = vpow.pop %v1620
    %v1622 = vmul.f32 %v1500, 1.442695
    %v1623 = vpow.pop %v1622
    %v1624 = vmul.f32 %v1501, 1.442695
    %v1625 = vpow.pop %v1624
    %v1626 = vmul.f32 %v1502, 1.442695
    %v1627 = vpow.pop %v1626
    %v1628 = vmul.f32 %v1503, 1.442695
    %v1629 = vpow.pop %v1628
    %v1630 = vmul.f32 %v1504, 1.442695
    %v1631 = vpow.pop %v1630
    %v1632 = vmul.f32 %v1505, 1.442695
    %v1633 = vpow.pop %v1632
    %1698 = vset.pattern.permute.xlu0 0
    %1699 = vperm.xlu0 %1698, %v1507
    %v1700 = vpop.permute.xlu0 %1699
    %1701 = vset.pattern.permute.xlu0 0
    %1702 = vperm.xlu0 %1701, %v1509
    %v1703 = vpop.permute.xlu0 %1702
    %1704 = vset.pattern.permute.xlu0 0
    %1705 = vperm.xlu0 %1704, %v1511
    %v1706 = vpop.permute.xlu0 %1705
    %1707 = vset.pattern.permute.xlu0 0
    %1708 = vperm.xlu0 %1707, %v1513
    %v1709 = vpop.permute.xlu0 %1708
    %1710 = vset.pattern.permute.xlu0 0
    %1711 = vperm.xlu0 %1710, %v1515
    %v1712 = vpop.permute.xlu0 %1711
    %1713 = vset.pattern.permute.xlu0 0
    %1714 = vperm.xlu0 %1713, %v1517
    %v1715 = vpop.permute.xlu0 %1714
    %1716 = vset.pattern.permute.xlu0 0
    %1717 = vperm.xlu0 %1716, %v1519
    %v1718 = vpop.permute.xlu0 %1717
    %1719 = vset.pattern.permute.xlu0 0
    %1720 = vperm.xlu0 %1719, %v1521
    %v1721 = vpop.permute.xlu0 %1720
    %1722 = vset.pattern.permute.xlu0 0
    %1723 = vperm.xlu0 %1722, %v1523
    %v1724 = vpop.permute.xlu0 %1723
    %1725 = vset.pattern.permute.xlu0 0
    %1726 = vperm.xlu0 %1725, %v1525
    %v1727 = vpop.permute.xlu0 %1726
    %1728 = vset.pattern.permute.xlu0 0
    %1729 = vperm.xlu0 %1728, %v1527
    %v1730 = vpop.permute.xlu0 %1729
    %1731 = vset.pattern.permute.xlu0 0
    %1732 = vperm.xlu0 %1731, %v1529
    %v1733 = vpop.permute.xlu0 %1732
    %1734 = vset.pattern.permute.xlu0 0
    %1735 = vperm.xlu0 %1734, %v1531
    %v1736 = vpop.permute.xlu0 %1735
    %1737 = vset.pattern.permute.xlu0 0
    %1738 = vperm.xlu0 %1737, %v1533
    %v1739 = vpop.permute.xlu0 %1738
    %1740 = vset.pattern.permute.xlu0 0
    %1741 = vperm.xlu0 %1740, %v1535
    %v1742 = vpop.permute.xlu0 %1741
    %1743 = vset.pattern.permute.xlu0 0
    %1744 = vperm.xlu0 %1743, %v1537
    %v1745 = vpop.permute.xlu0 %1744
    %1746 = vset.pattern.permute.xlu0 0
    %1747 = vperm.xlu0 %1746, %v1539
    %v1748 = vpop.permute.xlu0 %1747
    %1749 = vset.pattern.permute.xlu0 0
    %1750 = vperm.xlu0 %1749, %v1541
    %v1751 = vpop.permute.xlu0 %1750
    %1752 = vset.pattern.permute.xlu0 0
    %1753 = vperm.xlu0 %1752, %v1543
    %v1754 = vpop.permute.xlu0 %1753
    %1755 = vset.pattern.permute.xlu0 0
    %1756 = vperm.xlu0 %1755, %v1545
    %v1757 = vpop.permute.xlu0 %1756
    %1758 = vset.pattern.permute.xlu0 0
    %1759 = vperm.xlu0 %1758, %v1547
    %v1760 = vpop.permute.xlu0 %1759
    %1761 = vset.pattern.permute.xlu0 0
    %1762 = vperm.xlu0 %1761, %v1549
    %v1763 = vpop.permute.xlu0 %1762
    %1764 = vset.pattern.permute.xlu0 0
    %1765 = vperm.xlu0 %1764, %v1551
    %v1766 = vpop.permute.xlu0 %1765
    %1767 = vset.pattern.permute.xlu0 0
    %1768 = vperm.xlu0 %1767, %v1553
    %v1769 = vpop.permute.xlu0 %1768
    %1770 = vset.pattern.permute.xlu0 0
    %1771 = vperm.xlu0 %1770, %v1555
    %v1772 = vpop.permute.xlu0 %1771
    %1773 = vset.pattern.permute.xlu0 0
    %1774 = vperm.xlu0 %1773, %v1557
    %v1775 = vpop.permute.xlu0 %1774
    %1776 = vset.pattern.permute.xlu0 0
    %1777 = vperm.xlu0 %1776, %v1559
    %v1778 = vpop.permute.xlu0 %1777
    %1779 = vset.pattern.permute.xlu0 0
    %1780 = vperm.xlu0 %1779, %v1561
    %v1781 = vpop.permute.xlu0 %1780
    %1782 = vset.pattern.permute.xlu0 0
    %1783 = vperm.xlu0 %1782, %v1563
    %v1784 = vpop.permute.xlu0 %1783
    %1785 = vset.pattern.permute.xlu0 0
    %1786 = vperm.xlu0 %1785, %v1565
    %v1787 = vpop.permute.xlu0 %1786
    %1788 = vset.pattern.permute.xlu0 0
    %1789 = vperm.xlu0 %1788, %v1567
    %v1790 = vpop.permute.xlu0 %1789
    %1791 = vset.pattern.permute.xlu0 0
    %1792 = vperm.xlu0 %1791, %v1569
    %v1793 = vpop.permute.xlu0 %1792
    %1794 = vset.pattern.permute.xlu0 0
    %1795 = vperm.xlu0 %1794, %v1571
    %v1796 = vpop.permute.xlu0 %1795
    %1797 = vset.pattern.permute.xlu0 0
    %1798 = vperm.xlu0 %1797, %v1573
    %v1799 = vpop.permute.xlu0 %1798
    %1800 = vset.pattern.permute.xlu0 0
    %1801 = vperm.xlu0 %1800, %v1575
    %v1802 = vpop.permute.xlu0 %1801
    %1803 = vset.pattern.permute.xlu0 0
    %1804 = vperm.xlu0 %1803, %v1577
    %v1805 = vpop.permute.xlu0 %1804
    %1806 = vset.pattern.permute.xlu0 0
    %1807 = vperm.xlu0 %1806, %v1579
    %v1808 = vpop.permute.xlu0 %1807
    %1809 = vset.pattern.permute.xlu0 0
    %1810 = vperm.xlu0 %1809, %v1581
    %v1811 = vpop.permute.xlu0 %1810
    %1812 = vset.pattern.permute.xlu0 0
    %1813 = vperm.xlu0 %1812, %v1583
    %v1814 = vpop.permute.xlu0 %1813
    %1815 = vset.pattern.permute.xlu0 0
    %1816 = vperm.xlu0 %1815, %v1585
    %v1817 = vpop.permute.xlu0 %1816
    %1818 = vset.pattern.permute.xlu0 0
    %1819 = vperm.xlu0 %1818, %v1587
    %v1820 = vpop.permute.xlu0 %1819
    %1821 = vset.pattern.permute.xlu0 0
    %1822 = vperm.xlu0 %1821, %v1589
    %v1823 = vpop.permute.xlu0 %1822
    %1824 = vset.pattern.permute.xlu0 0
    %1825 = vperm.xlu0 %1824, %v1591
    %v1826 = vpop.permute.xlu0 %1825
    %1827 = vset.pattern.permute.xlu0 0
    %1828 = vperm.xlu0 %1827, %v1593
    %v1829 = vpop.permute.xlu0 %1828
    %1830 = vset.pattern.permute.xlu0 0
    %1831 = vperm.xlu0 %1830, %v1595
    %v1832 = vpop.permute.xlu0 %1831
    %1833 = vset.pattern.permute.xlu0 0
    %1834 = vperm.xlu0 %1833, %v1597
    %v1835 = vpop.permute.xlu0 %1834
    %1836 = vset.pattern.permute.xlu0 0
    %1837 = vperm.xlu0 %1836, %v1599
    %v1838 = vpop.permute.xlu0 %1837
    %1839 = vset.pattern.permute.xlu0 0
    %1840 = vperm.xlu0 %1839, %v1601
    %v1841 = vpop.permute.xlu0 %1840
    %1842 = vset.pattern.permute.xlu0 0
    %1843 = vperm.xlu0 %1842, %v1603
    %v1844 = vpop.permute.xlu0 %1843
    %1845 = vset.pattern.permute.xlu0 0
    %1846 = vperm.xlu0 %1845, %v1605
    %v1847 = vpop.permute.xlu0 %1846
    %1848 = vset.pattern.permute.xlu0 0
    %1849 = vperm.xlu0 %1848, %v1607
    %v1850 = vpop.permute.xlu0 %1849
    %1851 = vset.pattern.permute.xlu0 0
    %1852 = vperm.xlu0 %1851, %v1609
    %v1853 = vpop.permute.xlu0 %1852
    %1854 = vset.pattern.permute.xlu0 0
    %1855 = vperm.xlu0 %1854, %v1611
    %v1856 = vpop.permute.xlu0 %1855
    %1857 = vset.pattern.permute.xlu0 0
    %1858 = vperm.xlu0 %1857, %v1613
    %v1859 = vpop.permute.xlu0 %1858
    %1860 = vset.pattern.permute.xlu0 0
    %1861 = vperm.xlu0 %1860, %v1615
    %v1862 = vpop.permute.xlu0 %1861
    %1863 = vset.pattern.permute.xlu0 0
    %1864 = vperm.xlu0 %1863, %v1617
    %v1865 = vpop.permute.xlu0 %1864
    %1866 = vset.pattern.permute.xlu0 0
    %1867 = vperm.xlu0 %1866, %v1619
    %v1868 = vpop.permute.xlu0 %1867
    %1869 = vset.pattern.permute.xlu0 0
    %1870 = vperm.xlu0 %1869, %v1621
    %v1871 = vpop.permute.xlu0 %1870
    %1872 = vset.pattern.permute.xlu0 0
    %1873 = vperm.xlu0 %1872, %v1623
    %v1874 = vpop.permute.xlu0 %1873
    %1875 = vset.pattern.permute.xlu0 0
    %1876 = vperm.xlu0 %1875, %v1625
    %v1877 = vpop.permute.xlu0 %1876
    %1878 = vset.pattern.permute.xlu0 0
    %1879 = vperm.xlu0 %1878, %v1627
    %v1880 = vpop.permute.xlu0 %1879
    %1881 = vset.pattern.permute.xlu0 0
    %1882 = vperm.xlu0 %1881, %v1629
    %v1883 = vpop.permute.xlu0 %1882
    %1884 = vset.pattern.permute.xlu0 0
    %1885 = vperm.xlu0 %1884, %v1631
    %v1886 = vpop.permute.xlu0 %1885
    %1887 = vset.pattern.permute.xlu0 0
    %1888 = vperm.xlu0 %1887, %v1633
    %v1889 = vpop.permute.xlu0 %1888
    %v1890 = vperm.slane %v1700, %v41
    %v1891 = vperm.slane %v1703, %v41
    %v1892 = vperm.slane %v1706, %v41
    %v1893 = vperm.slane %v1709, %v41
    %v1894 = vperm.slane %v1712, %v41
    %v1895 = vperm.slane %v1715, %v41
    %v1896 = vperm.slane %v1718, %v41
    %v1897 = vperm.slane %v1721, %v41
    %v1898 = vperm.slane %v1724, %v41
    %v1899 = vperm.slane %v1727, %v41
    %v1900 = vperm.slane %v1730, %v41
    %v1901 = vperm.slane %v1733, %v41
    %v1902 = vperm.slane %v1736, %v41
    %v1903 = vperm.slane %v1739, %v41
    %v1904 = vperm.slane %v1742, %v41
    %v1905 = vperm.slane %v1745, %v41
    %v1906 = vperm.slane %v1748, %v41
    %v1907 = vperm.slane %v1751, %v41
    %v1908 = vperm.slane %v1754, %v41
    %v1909 = vperm.slane %v1757, %v41
    %v1910 = vperm.slane %v1760, %v41
    %v1911 = vperm.slane %v1763, %v41
    %v1912 = vperm.slane %v1766, %v41
    %v1913 = vperm.slane %v1769, %v41
    %v1914 = vperm.slane %v1772, %v41
    %v1915 = vperm.slane %v1775, %v41
    %v1916 = vperm.slane %v1778, %v41
    %v1917 = vperm.slane %v1781, %v41
    %v1918 = vperm.slane %v1784, %v41
    %v1919 = vperm.slane %v1787, %v41
    %v1920 = vperm.slane %v1790, %v41
    %v1921 = vperm.slane %v1793, %v41
    %v1922 = vperm.slane %v1796, %v41
    %v1923 = vperm.slane %v1799, %v41
    %v1924 = vperm.slane %v1802, %v41
    %v1925 = vperm.slane %v1805, %v41
    %v1926 = vperm.slane %v1808, %v41
    %v1927 = vperm.slane %v1811, %v41
    %v1928 = vperm.slane %v1814, %v41
    %v1929 = vperm.slane %v1817, %v41
    %v1930 = vperm.slane %v1820, %v41
    %v1931 = vperm.slane %v1823, %v41
    %v1932 = vperm.slane %v1826, %v41
    %v1933 = vperm.slane %v1829, %v41
    %v1934 = vperm.slane %v1832, %v41
    %v1935 = vperm.slane %v1835, %v41
    %v1936 = vperm.slane %v1838, %v41
    %v1937 = vperm.slane %v1841, %v41
    %v1938 = vperm.slane %v1844, %v41
    %v1939 = vperm.slane %v1847, %v41
    %v1940 = vperm.slane %v1850, %v41
    %v1941 = vperm.slane %v1853, %v41
    %v1942 = vperm.slane %v1856, %v41
    %v1943 = vperm.slane %v1859, %v41
    %v1944 = vperm.slane %v1862, %v41
    %v1945 = vperm.slane %v1865, %v41
    %v1946 = vperm.slane %v1868, %v41
    %v1947 = vperm.slane %v1871, %v41
    %v1948 = vperm.slane %v1874, %v41
    %v1949 = vperm.slane %v1877, %v41
    %v1950 = vperm.slane %v1880, %v41
    %v1951 = vperm.slane %v1883, %v41
    %v1952 = vperm.slane %v1886, %v41
    %v1953 = vperm.slane %v1889, %v41
    %v1954 = vsel %vm1211, %v1891, %v1890
    %v1955 = vsel %vm1213, %v1892, %v1954
    %v1956 = vsel %vm1215, %v1893, %v1955
    %v1957 = vsel %vm1217, %v1894, %v1956
    %v1958 = vsel %vm1219, %v1895, %v1957
    %v1959 = vsel %vm1221, %v1896, %v1958
    %v1960 = vsel %vm1223, %v1897, %v1959
    %v1961 = vsel %vm1211, %v1899, %v1898
    %v1962 = vsel %vm1213, %v1900, %v1961
    %v1963 = vsel %vm1215, %v1901, %v1962
    %v1964 = vsel %vm1217, %v1902, %v1963
    %v1965 = vsel %vm1219, %v1903, %v1964
    %v1966 = vsel %vm1221, %v1904, %v1965
    %v1967 = vsel %vm1223, %v1905, %v1966
    %v1968 = vsel %vm1211, %v1907, %v1906
    %v1969 = vsel %vm1213, %v1908, %v1968
    %v1970 = vsel %vm1215, %v1909, %v1969
    %v1971 = vsel %vm1217, %v1910, %v1970
    %v1972 = vsel %vm1219, %v1911, %v1971
    %v1973 = vsel %vm1221, %v1912, %v1972
    %v1974 = vsel %vm1223, %v1913, %v1973
    %v1975 = vsel %vm1211, %v1915, %v1914
    %v1976 = vsel %vm1213, %v1916, %v1975
    %v1977 = vsel %vm1215, %v1917, %v1976
    %v1978 = vsel %vm1217, %v1918, %v1977
    %v1979 = vsel %vm1219, %v1919, %v1978
    %v1980 = vsel %vm1221, %v1920, %v1979
    %v1981 = vsel %vm1223, %v1921, %v1980
    %v1982 = vsel %vm1211, %v1923, %v1922
    %v1983 = vsel %vm1213, %v1924, %v1982
    %v1984 = vsel %vm1215, %v1925, %v1983
    %v1985 = vsel %vm1217, %v1926, %v1984
    %v1986 = vsel %vm1219, %v1927, %v1985
    %v1987 = vsel %vm1221, %v1928, %v1986
    %v1988 = vsel %vm1223, %v1929, %v1987
    %v1989 = vsel %vm1211, %v1931, %v1930
    %v1990 = vsel %vm1213, %v1932, %v1989
    %v1991 = vsel %vm1215, %v1933, %v1990
    %v1992 = vsel %vm1217, %v1934, %v1991
    %v1993 = vsel %vm1219, %v1935, %v1992
    %v1994 = vsel %vm1221, %v1936, %v1993
    %v1995 = vsel %vm1223, %v1937, %v1994
    %v1996 = vsel %vm1211, %v1939, %v1938
    %v1997 = vsel %vm1213, %v1940, %v1996
    %v1998 = vsel %vm1215, %v1941, %v1997
    %v1999 = vsel %vm1217, %v1942, %v1998
    %v2000 = vsel %vm1219, %v1943, %v1999
    %v2001 = vsel %vm1221, %v1944, %v2000
    %v2002 = vsel %vm1223, %v1945, %v2001
    %v2003 = vsel %vm1211, %v1947, %v1946
    %v2004 = vsel %vm1213, %v1948, %v2003
    %v2005 = vsel %vm1215, %v1949, %v2004
    %v2006 = vsel %vm1217, %v1950, %v2005
    %v2007 = vsel %vm1219, %v1951, %v2006
    %v2008 = vsel %vm1221, %v1952, %v2007
    %v2009 = vsel %vm1223, %v1953, %v2008
    %v2018 = vsel %vm556, %v1960, 0.0
    %2019 = vadd.xlane.f32.xlu0 %v2018
    %v2020 = vpop.xlane.xlu0 %2019
    %v2021 = vsel %vm556, %v1967, 0.0
    %2022 = vadd.xlane.f32.xlu0 %v2021
    %v2023 = vpop.xlane.xlu0 %2022
    %v2024 = vsel %vm556, %v1974, 0.0
    %2025 = vadd.xlane.f32.xlu0 %v2024
    %v2026 = vpop.xlane.xlu0 %2025
    %v2027 = vsel %vm556, %v1981, 0.0
    %2028 = vadd.xlane.f32.xlu0 %v2027
    %v2029 = vpop.xlane.xlu0 %2028
    %v2030 = vsel %vm556, %v1988, 0.0
    %2031 = vadd.xlane.f32.xlu0 %v2030
    %v2032 = vpop.xlane.xlu0 %2031
    %v2033 = vsel %vm556, %v1995, 0.0
    %2034 = vadd.xlane.f32.xlu0 %v2033
    %v2035 = vpop.xlane.xlu0 %2034
    %v2036 = vsel %vm556, %v2002, 0.0
    %2037 = vadd.xlane.f32.xlu0 %v2036
    %v2038 = vpop.xlane.xlu0 %2037
    %v2039 = vsel %vm556, %v2009, 0.0
    %2040 = vadd.xlane.f32.xlu0 %v2039
    %v2041 = vpop.xlane.xlu0 %2040
    %v2042 = vrcp.pop %v2020
    %v2043 = vrcp.pop %v2023
    %v2044 = vrcp.pop %v2026
    %v2045 = vrcp.pop %v2029
    %v2046 = vrcp.pop %v2032
    %v2047 = vrcp.pop %v2035
    %v2048 = vrcp.pop %v2038
    %v2049 = vrcp.pop %v2041
    %v2058 = vperm.slane %v2042, 0
    %v2059 = vperm.slane %v2042, 1
    %v2060 = vperm.slane %v2042, 2
    %v2061 = vperm.slane %v2042, 3
    %v2062 = vperm.slane %v2042, 4
    %v2063 = vperm.slane %v2042, 5
    %v2064 = vperm.slane %v2042, 6
    %v2065 = vperm.slane %v2042, 7
    %v2066 = vperm.slane %v2043, 0
    %v2067 = vperm.slane %v2043, 1
    %v2068 = vperm.slane %v2043, 2
    %v2069 = vperm.slane %v2043, 3
    %v2070 = vperm.slane %v2043, 4
    %v2071 = vperm.slane %v2043, 5
    %v2072 = vperm.slane %v2043, 6
    %v2073 = vperm.slane %v2043, 7
    %v2074 = vperm.slane %v2044, 0
    %v2075 = vperm.slane %v2044, 1
    %v2076 = vperm.slane %v2044, 2
    %v2077 = vperm.slane %v2044, 3
    %v2078 = vperm.slane %v2044, 4
    %v2079 = vperm.slane %v2044, 5
    %v2080 = vperm.slane %v2044, 6
    %v2081 = vperm.slane %v2044, 7
    %v2082 = vperm.slane %v2045, 0
    %v2083 = vperm.slane %v2045, 1
    %v2084 = vperm.slane %v2045, 2
    %v2085 = vperm.slane %v2045, 3
    %v2086 = vperm.slane %v2045, 4
    %v2087 = vperm.slane %v2045, 5
    %v2088 = vperm.slane %v2045, 6
    %v2089 = vperm.slane %v2045, 7
    %v2090 = vperm.slane %v2046, 0
    %v2091 = vperm.slane %v2046, 1
    %v2092 = vperm.slane %v2046, 2
    %v2093 = vperm.slane %v2046, 3
    %v2094 = vperm.slane %v2046, 4
    %v2095 = vperm.slane %v2046, 5
    %v2096 = vperm.slane %v2046, 6
    %v2097 = vperm.slane %v2046, 7
    %v2098 = vperm.slane %v2047, 0
    %v2099 = vperm.slane %v2047, 1
    %v2100 = vperm.slane %v2047, 2
    %v2101 = vperm.slane %v2047, 3
    %v2102 = vperm.slane %v2047, 4
    %v2103 = vperm.slane %v2047, 5
    %v2104 = vperm.slane %v2047, 6
    %v2105 = vperm.slane %v2047, 7
    %v2106 = vperm.slane %v2048, 0
    %v2107 = vperm.slane %v2048, 1
    %v2108 = vperm.slane %v2048, 2
    %v2109 = vperm.slane %v2048, 3
    %v2110 = vperm.slane %v2048, 4
    %v2111 = vperm.slane %v2048, 5
    %v2112 = vperm.slane %v2048, 6
    %v2113 = vperm.slane %v2048, 7
    %v2114 = vperm.slane %v2049, 0
    %v2115 = vperm.slane %v2049, 1
    %v2116 = vperm.slane %v2049, 2
    %v2117 = vperm.slane %v2049, 3
    %v2118 = vperm.slane %v2049, 4
    %v2119 = vperm.slane %v2049, 5
    %v2120 = vperm.slane %v2049, 6
    %v2121 = vperm.slane %v2049, 7
    %v2186 = vmul.f32 %v1507, %v2058
    %v2187 = vmul.f32 %v1509, %v2059
    %v2188 = vmul.f32 %v1511, %v2060
    %v2189 = vmul.f32 %v1513, %v2061
    %v2190 = vmul.f32 %v1515, %v2062
    %v2191 = vmul.f32 %v1517, %v2063
    %v2192 = vmul.f32 %v1519, %v2064
    %v2193 = vmul.f32 %v1521, %v2065
    %v2194 = vmul.f32 %v1523, %v2066
    %v2195 = vmul.f32 %v1525, %v2067
    %v2196 = vmul.f32 %v1527, %v2068
    %v2197 = vmul.f32 %v1529, %v2069
    %v2198 = vmul.f32 %v1531, %v2070
    %v2199 = vmul.f32 %v1533, %v2071
    %v2200 = vmul.f32 %v1535, %v2072
    %v2201 = vmul.f32 %v1537, %v2073
    %v2202 = vmul.f32 %v1539, %v2074
    %v2203 = vmul.f32 %v1541, %v2075
    %v2204 = vmul.f32 %v1543, %v2076
    %v2205 = vmul.f32 %v1545, %v2077
    %v2206 = vmul.f32 %v1547, %v2078
    %v2207 = vmul.f32 %v1549, %v2079
    %v2208 = vmul.f32 %v1551, %v2080
    %v2209 = vmul.f32 %v1553, %v2081
    %v2210 = vmul.f32 %v1555, %v2082
    %v2211 = vmul.f32 %v1557, %v2083
    %v2212 = vmul.f32 %v1559, %v2084
    %v2213 = vmul.f32 %v1561, %v2085
    %v2214 = vmul.f32 %v1563, %v2086
    %v2215 = vmul.f32 %v1565, %v2087
    %v2216 = vmul.f32 %v1567, %v2088
    %v2217 = vmul.f32 %v1569, %v2089
    %v2218 = vmul.f32 %v1571, %v2090
    %v2219 = vmul.f32 %v1573, %v2091
    %v2220 = vmul.f32 %v1575, %v2092
    %v2221 = vmul.f32 %v1577, %v2093
    %v2222 = vmul.f32 %v1579, %v2094
    %v2223 = vmul.f32 %v1581, %v2095
    %v2224 = vmul.f32 %v1583, %v2096
    %v2225 = vmul.f32 %v1585, %v2097
    %v2226 = vmul.f32 %v1587, %v2098
    %v2227 = vmul.f32 %v1589, %v2099
    %v2228 = vmul.f32 %v1591, %v2100
    %v2229 = vmul.f32 %v1593, %v2101
    %v2230 = vmul.f32 %v1595, %v2102
    %v2231 = vmul.f32 %v1597, %v2103
    %v2232 = vmul.f32 %v1599, %v2104
    %v2233 = vmul.f32 %v1601, %v2105
    %v2234 = vmul.f32 %v1603, %v2106
    %v2235 = vmul.f32 %v1605, %v2107
    %v2236 = vmul.f32 %v1607, %v2108
    %v2237 = vmul.f32 %v1609, %v2109
    %v2238 = vmul.f32 %v1611, %v2110
    %v2239 = vmul.f32 %v1613, %v2111
    %v2240 = vmul.f32 %v1615, %v2112
    %v2241 = vmul.f32 %v1617, %v2113
    %v2242 = vmul.f32 %v1619, %v2114
    %v2243 = vmul.f32 %v1621, %v2115
    %v2244 = vmul.f32 %v1623, %v2116
    %v2245 = vmul.f32 %v1625, %v2117
    %v2246 = vmul.f32 %v1627, %v2118
    %v2247 = vmul.f32 %v1629, %v2119
    %v2248 = vmul.f32 %v1631, %v2120
    %v2249 = vmul.f32 %v1633, %v2121
    %2251 = vset.pattern.permute.xlu0 0
    %2252 = vperm.xlu0 %2251, %v2186
    %v2253 = vpop.permute.xlu0 %2252
    %2256 = vset.pattern.permute.xlu0 0
    %2257 = vperm.xlu0 %2256, %v2187
    %v2258 = vpop.permute.xlu0 %2257
    %2261 = vset.pattern.permute.xlu0 0
    %2262 = vperm.xlu0 %2261, %v2188
    %v2263 = vpop.permute.xlu0 %2262
    %2266 = vset.pattern.permute.xlu0 0
    %2267 = vperm.xlu0 %2266, %v2189
    %v2268 = vpop.permute.xlu0 %2267
    %2271 = vset.pattern.permute.xlu0 0
    %2272 = vperm.xlu0 %2271, %v2190
    %v2273 = vpop.permute.xlu0 %2272
    %2276 = vset.pattern.permute.xlu0 0
    %2277 = vperm.xlu0 %2276, %v2191
    %v2278 = vpop.permute.xlu0 %2277
    %2281 = vset.pattern.permute.xlu0 0
    %2282 = vperm.xlu0 %2281, %v2192
    %v2283 = vpop.permute.xlu0 %2282
    %2286 = vset.pattern.permute.xlu0 0
    %2287 = vperm.xlu0 %2286, %v2193
    %v2288 = vpop.permute.xlu0 %2287
    %2291 = vset.pattern.permute.xlu0 0
    %2292 = vperm.xlu0 %2291, %v2194
    %v2293 = vpop.permute.xlu0 %2292
    %2296 = vset.pattern.permute.xlu0 0
    %2297 = vperm.xlu0 %2296, %v2195
    %v2298 = vpop.permute.xlu0 %2297
    %2301 = vset.pattern.permute.xlu0 0
    %2302 = vperm.xlu0 %2301, %v2196
    %v2303 = vpop.permute.xlu0 %2302
    %2306 = vset.pattern.permute.xlu0 0
    %2307 = vperm.xlu0 %2306, %v2197
    %v2308 = vpop.permute.xlu0 %2307
    %2311 = vset.pattern.permute.xlu0 0
    %2312 = vperm.xlu0 %2311, %v2198
    %v2313 = vpop.permute.xlu0 %2312
    %2316 = vset.pattern.permute.xlu0 0
    %2317 = vperm.xlu0 %2316, %v2199
    %v2318 = vpop.permute.xlu0 %2317
    %2321 = vset.pattern.permute.xlu0 0
    %2322 = vperm.xlu0 %2321, %v2200
    %v2323 = vpop.permute.xlu0 %2322
    %2326 = vset.pattern.permute.xlu0 0
    %2327 = vperm.xlu0 %2326, %v2201
    %v2328 = vpop.permute.xlu0 %2327
    %2331 = vset.pattern.permute.xlu0 0
    %2332 = vperm.xlu0 %2331, %v2202
    %v2333 = vpop.permute.xlu0 %2332
    %2336 = vset.pattern.permute.xlu0 0
    %2337 = vperm.xlu0 %2336, %v2203
    %v2338 = vpop.permute.xlu0 %2337
    %2341 = vset.pattern.permute.xlu0 0
    %2342 = vperm.xlu0 %2341, %v2204
    %v2343 = vpop.permute.xlu0 %2342
    %2346 = vset.pattern.permute.xlu0 0
    %2347 = vperm.xlu0 %2346, %v2205
    %v2348 = vpop.permute.xlu0 %2347
    %2351 = vset.pattern.permute.xlu0 0
    %2352 = vperm.xlu0 %2351, %v2206
    %v2353 = vpop.permute.xlu0 %2352
    %2356 = vset.pattern.permute.xlu0 0
    %2357 = vperm.xlu0 %2356, %v2207
    %v2358 = vpop.permute.xlu0 %2357
    %2361 = vset.pattern.permute.xlu0 0
    %2362 = vperm.xlu0 %2361, %v2208
    %v2363 = vpop.permute.xlu0 %2362
    %2366 = vset.pattern.permute.xlu0 0
    %2367 = vperm.xlu0 %2366, %v2209
    %v2368 = vpop.permute.xlu0 %2367
    %2371 = vset.pattern.permute.xlu0 0
    %2372 = vperm.xlu0 %2371, %v2210
    %v2373 = vpop.permute.xlu0 %2372
    %2376 = vset.pattern.permute.xlu0 0
    %2377 = vperm.xlu0 %2376, %v2211
    %v2378 = vpop.permute.xlu0 %2377
    %2381 = vset.pattern.permute.xlu0 0
    %2382 = vperm.xlu0 %2381, %v2212
    %v2383 = vpop.permute.xlu0 %2382
    %2386 = vset.pattern.permute.xlu0 0
    %2387 = vperm.xlu0 %2386, %v2213
    %v2388 = vpop.permute.xlu0 %2387
    %2391 = vset.pattern.permute.xlu0 0
    %2392 = vperm.xlu0 %2391, %v2214
    %v2393 = vpop.permute.xlu0 %2392
    %2396 = vset.pattern.permute.xlu0 0
    %2397 = vperm.xlu0 %2396, %v2215
    %v2398 = vpop.permute.xlu0 %2397
    %2401 = vset.pattern.permute.xlu0 0
    %2402 = vperm.xlu0 %2401, %v2216
    %v2403 = vpop.permute.xlu0 %2402
    %2406 = vset.pattern.permute.xlu0 0
    %2407 = vperm.xlu0 %2406, %v2217
    %v2408 = vpop.permute.xlu0 %2407
    %2411 = vset.pattern.permute.xlu0 0
    %2412 = vperm.xlu0 %2411, %v2218
    %v2413 = vpop.permute.xlu0 %2412
    %2416 = vset.pattern.permute.xlu0 0
    %2417 = vperm.xlu0 %2416, %v2219
    %v2418 = vpop.permute.xlu0 %2417
    %2421 = vset.pattern.permute.xlu0 0
    %2422 = vperm.xlu0 %2421, %v2220
    %v2423 = vpop.permute.xlu0 %2422
    %2426 = vset.pattern.permute.xlu0 0
    %2427 = vperm.xlu0 %2426, %v2221
    %v2428 = vpop.permute.xlu0 %2427
    %2431 = vset.pattern.permute.xlu0 0
    %2432 = vperm.xlu0 %2431, %v2222
    %v2433 = vpop.permute.xlu0 %2432
    %2436 = vset.pattern.permute.xlu0 0
    %2437 = vperm.xlu0 %2436, %v2223
    %v2438 = vpop.permute.xlu0 %2437
    %2441 = vset.pattern.permute.xlu0 0
    %2442 = vperm.xlu0 %2441, %v2224
    %v2443 = vpop.permute.xlu0 %2442
    %2446 = vset.pattern.permute.xlu0 0
    %2447 = vperm.xlu0 %2446, %v2225
    %v2448 = vpop.permute.xlu0 %2447
    %2451 = vset.pattern.permute.xlu0 0
    %2452 = vperm.xlu0 %2451, %v2226
    %v2453 = vpop.permute.xlu0 %2452
    %2456 = vset.pattern.permute.xlu0 0
    %2457 = vperm.xlu0 %2456, %v2227
    %v2458 = vpop.permute.xlu0 %2457
    %2461 = vset.pattern.permute.xlu0 0
    %2462 = vperm.xlu0 %2461, %v2228
    %v2463 = vpop.permute.xlu0 %2462
    %2466 = vset.pattern.permute.xlu0 0
    %2467 = vperm.xlu0 %2466, %v2229
    %v2468 = vpop.permute.xlu0 %2467
    %2471 = vset.pattern.permute.xlu0 0
    %2472 = vperm.xlu0 %2471, %v2230
    %v2473 = vpop.permute.xlu0 %2472
    %2476 = vset.pattern.permute.xlu0 0
    %2477 = vperm.xlu0 %2476, %v2231
    %v2478 = vpop.permute.xlu0 %2477
    %2481 = vset.pattern.permute.xlu0 0
    %2482 = vperm.xlu0 %2481, %v2232
    %v2483 = vpop.permute.xlu0 %2482
    %2486 = vset.pattern.permute.xlu0 0
    %2487 = vperm.xlu0 %2486, %v2233
    %v2488 = vpop.permute.xlu0 %2487
    %2491 = vset.pattern.permute.xlu0 0
    %2492 = vperm.xlu0 %2491, %v2234
    %v2493 = vpop.permute.xlu0 %2492
    %2496 = vset.pattern.permute.xlu0 0
    %2497 = vperm.xlu0 %2496, %v2235
    %v2498 = vpop.permute.xlu0 %2497
    %2501 = vset.pattern.permute.xlu0 0
    %2502 = vperm.xlu0 %2501, %v2236
    %v2503 = vpop.permute.xlu0 %2502
    %2506 = vset.pattern.permute.xlu0 0
    %2507 = vperm.xlu0 %2506, %v2237
    %v2508 = vpop.permute.xlu0 %2507
    %2511 = vset.pattern.permute.xlu0 0
    %2512 = vperm.xlu0 %2511, %v2238
    %v2513 = vpop.permute.xlu0 %2512
    %2516 = vset.pattern.permute.xlu0 0
    %2517 = vperm.xlu0 %2516, %v2239
    %v2518 = vpop.permute.xlu0 %2517
    %2521 = vset.pattern.permute.xlu0 0
    %2522 = vperm.xlu0 %2521, %v2240
    %v2523 = vpop.permute.xlu0 %2522
    %2526 = vset.pattern.permute.xlu0 0
    %2527 = vperm.xlu0 %2526, %v2241
    %v2528 = vpop.permute.xlu0 %2527
    %2531 = vset.pattern.permute.xlu0 0
    %2532 = vperm.xlu0 %2531, %v2242
    %v2533 = vpop.permute.xlu0 %2532
    %2536 = vset.pattern.permute.xlu0 0
    %2537 = vperm.xlu0 %2536, %v2243
    %v2538 = vpop.permute.xlu0 %2537
    %2541 = vset.pattern.permute.xlu0 0
    %2542 = vperm.xlu0 %2541, %v2244
    %v2543 = vpop.permute.xlu0 %2542
    %2546 = vset.pattern.permute.xlu0 0
    %2547 = vperm.xlu0 %2546, %v2245
    %v2548 = vpop.permute.xlu0 %2547
    %2551 = vset.pattern.permute.xlu0 0
    %2552 = vperm.xlu0 %2551, %v2246
    %v2553 = vpop.permute.xlu0 %2552
    %2556 = vset.pattern.permute.xlu0 0
    %2557 = vperm.xlu0 %2556, %v2247
    %v2558 = vpop.permute.xlu0 %2557
    %2561 = vset.pattern.permute.xlu0 0
    %2562 = vperm.xlu0 %2561, %v2248
    %v2563 = vpop.permute.xlu0 %2562
    %2566 = vset.pattern.permute.xlu0 0
    %2567 = vperm.xlu0 %2566, %v2249
    %v2568 = vpop.permute.xlu0 %2567
    %v2570 = vmul.f32 %v2253, %v250
    %v2571 = vmul.f32 %v2258, %v250
    %v2572 = vmul.f32 %v2263, %v250
    %v2573 = vmul.f32 %v2268, %v250
    %v2574 = vmul.f32 %v2273, %v250
    %v2575 = vmul.f32 %v2278, %v250
    %v2576 = vmul.f32 %v2283, %v250
    %v2577 = vmul.f32 %v2288, %v250
    %v2578 = vmul.f32 %v2293, %v291
    %v2579 = vmul.f32 %v2298, %v291
    %v2580 = vmul.f32 %v2303, %v291
    %v2581 = vmul.f32 %v2308, %v291
    %v2582 = vmul.f32 %v2313, %v291
    %v2583 = vmul.f32 %v2318, %v291
    %v2584 = vmul.f32 %v2323, %v291
    %v2585 = vmul.f32 %v2328, %v291
    %v2586 = vmul.f32 %v2333, %v297
    %v2587 = vmul.f32 %v2338, %v297
    %v2588 = vmul.f32 %v2343, %v297
    %v2589 = vmul.f32 %v2348, %v297
    %v2590 = vmul.f32 %v2353, %v297
    %v2591 = vmul.f32 %v2358, %v297
    %v2592 = vmul.f32 %v2363, %v297
    %v2593 = vmul.f32 %v2368, %v297
    %v2594 = vmul.f32 %v2373, %v303
    %v2595 = vmul.f32 %v2378, %v303
    %v2596 = vmul.f32 %v2383, %v303
    %v2597 = vmul.f32 %v2388, %v303
    %v2598 = vmul.f32 %v2393, %v303
    %v2599 = vmul.f32 %v2398, %v303
    %v2600 = vmul.f32 %v2403, %v303
    %v2601 = vmul.f32 %v2408, %v303
    %v2602 = vmul.f32 %v2413, %v252
    %v2603 = vmul.f32 %v2418, %v252
    %v2604 = vmul.f32 %v2423, %v252
    %v2605 = vmul.f32 %v2428, %v252
    %v2606 = vmul.f32 %v2433, %v252
    %v2607 = vmul.f32 %v2438, %v252
    %v2608 = vmul.f32 %v2443, %v252
    %v2609 = vmul.f32 %v2448, %v252
    %v2610 = vmul.f32 %v2453, %v293
    %v2611 = vmul.f32 %v2458, %v293
    %v2612 = vmul.f32 %v2463, %v293
    %v2613 = vmul.f32 %v2468, %v293
    %v2614 = vmul.f32 %v2473, %v293
    %v2615 = vmul.f32 %v2478, %v293
    %v2616 = vmul.f32 %v2483, %v293
    %v2617 = vmul.f32 %v2488, %v293
    %v2618 = vmul.f32 %v2493, %v299
    %v2619 = vmul.f32 %v2498, %v299
    %v2620 = vmul.f32 %v2503, %v299
    %v2621 = vmul.f32 %v2508, %v299
    %v2622 = vmul.f32 %v2513, %v299
    %v2623 = vmul.f32 %v2518, %v299
    %v2624 = vmul.f32 %v2523, %v299
    %v2625 = vmul.f32 %v2528, %v299
    %v2626 = vmul.f32 %v2533, %v305
    %v2627 = vmul.f32 %v2538, %v305
    %v2628 = vmul.f32 %v2543, %v305
    %v2629 = vmul.f32 %v2548, %v305
    %v2630 = vmul.f32 %v2553, %v305
    %v2631 = vmul.f32 %v2558, %v305
    %v2632 = vmul.f32 %v2563, %v305
    %v2633 = vmul.f32 %v2568, %v305
    %v2634 = vsel %vm556, %v2570, 0.0
    %v2635 = vrot.slane %v2634, 4
    %v2636 = vadd.f32 %v2634, %v2635
    %v2637 = vrot.slane %v2636, 2
    %v2638 = vadd.f32 %v2636, %v2637
    %v2639 = vrot.slane %v2638, 1
    %v2640 = vadd.f32 %v2638, %v2639
    %v2641 = vsel %vm556, %v2571, 0.0
    %v2642 = vrot.slane %v2641, 4
    %v2643 = vadd.f32 %v2641, %v2642
    %v2644 = vrot.slane %v2643, 2
    %v2645 = vadd.f32 %v2643, %v2644
    %v2646 = vrot.slane %v2645, 1
    %v2647 = vadd.f32 %v2645, %v2646
    %v2648 = vsel %vm556, %v2572, 0.0
    %v2649 = vrot.slane %v2648, 4
    %v2650 = vadd.f32 %v2648, %v2649
    %v2651 = vrot.slane %v2650, 2
    %v2652 = vadd.f32 %v2650, %v2651
    %v2653 = vrot.slane %v2652, 1
    %v2654 = vadd.f32 %v2652, %v2653
    %v2655 = vsel %vm556, %v2573, 0.0
    %v2656 = vrot.slane %v2655, 4
    %v2657 = vadd.f32 %v2655, %v2656
    %v2658 = vrot.slane %v2657, 2
    %v2659 = vadd.f32 %v2657, %v2658
    %v2660 = vrot.slane %v2659, 1
    %v2661 = vadd.f32 %v2659, %v2660
    %v2662 = vsel %vm556, %v2574, 0.0
    %v2663 = vrot.slane %v2662, 4
    %v2664 = vadd.f32 %v2662, %v2663
    %v2665 = vrot.slane %v2664, 2
    %v2666 = vadd.f32 %v2664, %v2665
    %v2667 = vrot.slane %v2666, 1
    %v2668 = vadd.f32 %v2666, %v2667
    %v2669 = vsel %vm556, %v2575, 0.0
    %v2670 = vrot.slane %v2669, 4
    %v2671 = vadd.f32 %v2669, %v2670
    %v2672 = vrot.slane %v2671, 2
    %v2673 = vadd.f32 %v2671, %v2672
    %v2674 = vrot.slane %v2673, 1
    %v2675 = vadd.f32 %v2673, %v2674
    %v2676 = vsel %vm556, %v2576, 0.0
    %v2677 = vrot.slane %v2676, 4
    %v2678 = vadd.f32 %v2676, %v2677
    %v2679 = vrot.slane %v2678, 2
    %v2680 = vadd.f32 %v2678, %v2679
    %v2681 = vrot.slane %v2680, 1
    %v2682 = vadd.f32 %v2680, %v2681
    %v2683 = vsel %vm556, %v2577, 0.0
    %v2684 = vrot.slane %v2683, 4
    %v2685 = vadd.f32 %v2683, %v2684
    %v2686 = vrot.slane %v2685, 2
    %v2687 = vadd.f32 %v2685, %v2686
    %v2688 = vrot.slane %v2687, 1
    %v2689 = vadd.f32 %v2687, %v2688
    %v2690 = vsel %vm556, %v2578, 0.0
    %v2691 = vrot.slane %v2690, 4
    %v2692 = vadd.f32 %v2690, %v2691
    %v2693 = vrot.slane %v2692, 2
    %v2694 = vadd.f32 %v2692, %v2693
    %v2695 = vrot.slane %v2694, 1
    %v2696 = vadd.f32 %v2694, %v2695
    %v2697 = vsel %vm556, %v2579, 0.0
    %v2698 = vrot.slane %v2697, 4
    %v2699 = vadd.f32 %v2697, %v2698
    %v2700 = vrot.slane %v2699, 2
    %v2701 = vadd.f32 %v2699, %v2700
    %v2702 = vrot.slane %v2701, 1
    %v2703 = vadd.f32 %v2701, %v2702
    %v2704 = vsel %vm556, %v2580, 0.0
    %v2705 = vrot.slane %v2704, 4
    %v2706 = vadd.f32 %v2704, %v2705
    %v2707 = vrot.slane %v2706, 2
    %v2708 = vadd.f32 %v2706, %v2707
    %v2709 = vrot.slane %v2708, 1
    %v2710 = vadd.f32 %v2708, %v2709
    %v2711 = vsel %vm556, %v2581, 0.0
    %v2712 = vrot.slane %v2711, 4
    %v2713 = vadd.f32 %v2711, %v2712
    %v2714 = vrot.slane %v2713, 2
    %v2715 = vadd.f32 %v2713, %v2714
    %v2716 = vrot.slane %v2715, 1
    %v2717 = vadd.f32 %v2715, %v2716
    %v2718 = vsel %vm556, %v2582, 0.0
    %v2719 = vrot.slane %v2718, 4
    %v2720 = vadd.f32 %v2718, %v2719
    %v2721 = vrot.slane %v2720, 2
    %v2722 = vadd.f32 %v2720, %v2721
    %v2723 = vrot.slane %v2722, 1
    %v2724 = vadd.f32 %v2722, %v2723
    %v2725 = vsel %vm556, %v2583, 0.0
    %v2726 = vrot.slane %v2725, 4
    %v2727 = vadd.f32 %v2725, %v2726
    %v2728 = vrot.slane %v2727, 2
    %v2729 = vadd.f32 %v2727, %v2728
    %v2730 = vrot.slane %v2729, 1
    %v2731 = vadd.f32 %v2729, %v2730
    %v2732 = vsel %vm556, %v2584, 0.0
    %v2733 = vrot.slane %v2732, 4
    %v2734 = vadd.f32 %v2732, %v2733
    %v2735 = vrot.slane %v2734, 2
    %v2736 = vadd.f32 %v2734, %v2735
    %v2737 = vrot.slane %v2736, 1
    %v2738 = vadd.f32 %v2736, %v2737
    %v2739 = vsel %vm556, %v2585, 0.0
    %v2740 = vrot.slane %v2739, 4
    %v2741 = vadd.f32 %v2739, %v2740
    %v2742 = vrot.slane %v2741, 2
    %v2743 = vadd.f32 %v2741, %v2742
    %v2744 = vrot.slane %v2743, 1
    %v2745 = vadd.f32 %v2743, %v2744
    %v2746 = vsel %vm556, %v2586, 0.0
    %v2747 = vrot.slane %v2746, 4
    %v2748 = vadd.f32 %v2746, %v2747
    %v2749 = vrot.slane %v2748, 2
    %v2750 = vadd.f32 %v2748, %v2749
    %v2751 = vrot.slane %v2750, 1
    %v2752 = vadd.f32 %v2750, %v2751
    %v2753 = vsel %vm556, %v2587, 0.0
    %v2754 = vrot.slane %v2753, 4
    %v2755 = vadd.f32 %v2753, %v2754
    %v2756 = vrot.slane %v2755, 2
    %v2757 = vadd.f32 %v2755, %v2756
    %v2758 = vrot.slane %v2757, 1
    %v2759 = vadd.f32 %v2757, %v2758
    %v2760 = vsel %vm556, %v2588, 0.0
    %v2761 = vrot.slane %v2760, 4
    %v2762 = vadd.f32 %v2760, %v2761
    %v2763 = vrot.slane %v2762, 2
    %v2764 = vadd.f32 %v2762, %v2763
    %v2765 = vrot.slane %v2764, 1
    %v2766 = vadd.f32 %v2764, %v2765
    %v2767 = vsel %vm556, %v2589, 0.0
    %v2768 = vrot.slane %v2767, 4
    %v2769 = vadd.f32 %v2767, %v2768
    %v2770 = vrot.slane %v2769, 2
    %v2771 = vadd.f32 %v2769, %v2770
    %v2772 = vrot.slane %v2771, 1
    %v2773 = vadd.f32 %v2771, %v2772
    %v2774 = vsel %vm556, %v2590, 0.0
    %v2775 = vrot.slane %v2774, 4
    %v2776 = vadd.f32 %v2774, %v2775
    %v2777 = vrot.slane %v2776, 2
    %v2778 = vadd.f32 %v2776, %v2777
    %v2779 = vrot.slane %v2778, 1
    %v2780 = vadd.f32 %v2778, %v2779
    %v2781 = vsel %vm556, %v2591, 0.0
    %v2782 = vrot.slane %v2781, 4
    %v2783 = vadd.f32 %v2781, %v2782
    %v2784 = vrot.slane %v2783, 2
    %v2785 = vadd.f32 %v2783, %v2784
    %v2786 = vrot.slane %v2785, 1
    %v2787 = vadd.f32 %v2785, %v2786
    %v2788 = vsel %vm556, %v2592, 0.0
    %v2789 = vrot.slane %v2788, 4
    %v2790 = vadd.f32 %v2788, %v2789
    %v2791 = vrot.slane %v2790, 2
    %v2792 = vadd.f32 %v2790, %v2791
    %v2793 = vrot.slane %v2792, 1
    %v2794 = vadd.f32 %v2792, %v2793
    %v2795 = vsel %vm556, %v2593, 0.0
    %v2796 = vrot.slane %v2795, 4
    %v2797 = vadd.f32 %v2795, %v2796
    %v2798 = vrot.slane %v2797, 2
    %v2799 = vadd.f32 %v2797, %v2798
    %v2800 = vrot.slane %v2799, 1
    %v2801 = vadd.f32 %v2799, %v2800
    %v2802 = vsel %vm556, %v2594, 0.0
    %v2803 = vrot.slane %v2802, 4
    %v2804 = vadd.f32 %v2802, %v2803
    %v2805 = vrot.slane %v2804, 2
    %v2806 = vadd.f32 %v2804, %v2805
    %v2807 = vrot.slane %v2806, 1
    %v2808 = vadd.f32 %v2806, %v2807
    %v2809 = vsel %vm556, %v2595, 0.0
    %v2810 = vrot.slane %v2809, 4
    %v2811 = vadd.f32 %v2809, %v2810
    %v2812 = vrot.slane %v2811, 2
    %v2813 = vadd.f32 %v2811, %v2812
    %v2814 = vrot.slane %v2813, 1
    %v2815 = vadd.f32 %v2813, %v2814
    %v2816 = vsel %vm556, %v2596, 0.0
    %v2817 = vrot.slane %v2816, 4
    %v2818 = vadd.f32 %v2816, %v2817
    %v2819 = vrot.slane %v2818, 2
    %v2820 = vadd.f32 %v2818, %v2819
    %v2821 = vrot.slane %v2820, 1
    %v2822 = vadd.f32 %v2820, %v2821
    %v2823 = vsel %vm556, %v2597, 0.0
    %v2824 = vrot.slane %v2823, 4
    %v2825 = vadd.f32 %v2823, %v2824
    %v2826 = vrot.slane %v2825, 2
    %v2827 = vadd.f32 %v2825, %v2826
    %v2828 = vrot.slane %v2827, 1
    %v2829 = vadd.f32 %v2827, %v2828
    %v2830 = vsel %vm556, %v2598, 0.0
    %v2831 = vrot.slane %v2830, 4
    %v2832 = vadd.f32 %v2830, %v2831
    %v2833 = vrot.slane %v2832, 2
    %v2834 = vadd.f32 %v2832, %v2833
    %v2835 = vrot.slane %v2834, 1
    %v2836 = vadd.f32 %v2834, %v2835
    %v2837 = vsel %vm556, %v2599, 0.0
    %v2838 = vrot.slane %v2837, 4
    %v2839 = vadd.f32 %v2837, %v2838
    %v2840 = vrot.slane %v2839, 2
    %v2841 = vadd.f32 %v2839, %v2840
    %v2842 = vrot.slane %v2841, 1
    %v2843 = vadd.f32 %v2841, %v2842
    %v2844 = vsel %vm556, %v2600, 0.0
    %v2845 = vrot.slane %v2844, 4
    %v2846 = vadd.f32 %v2844, %v2845
    %v2847 = vrot.slane %v2846, 2
    %v2848 = vadd.f32 %v2846, %v2847
    %v2849 = vrot.slane %v2848, 1
    %v2850 = vadd.f32 %v2848, %v2849
    %v2851 = vsel %vm556, %v2601, 0.0
    %v2852 = vrot.slane %v2851, 4
    %v2853 = vadd.f32 %v2851, %v2852
    %v2854 = vrot.slane %v2853, 2
    %v2855 = vadd.f32 %v2853, %v2854
    %v2856 = vrot.slane %v2855, 1
    %v2857 = vadd.f32 %v2855, %v2856
    %v2858 = vsel %vm556, %v2602, 0.0
    %v2859 = vrot.slane %v2858, 4
    %v2860 = vadd.f32 %v2858, %v2859
    %v2861 = vrot.slane %v2860, 2
    %v2862 = vadd.f32 %v2860, %v2861
    %v2863 = vrot.slane %v2862, 1
    %v2864 = vadd.f32 %v2862, %v2863
    %v2865 = vsel %vm556, %v2603, 0.0
    %v2866 = vrot.slane %v2865, 4
    %v2867 = vadd.f32 %v2865, %v2866
    %v2868 = vrot.slane %v2867, 2
    %v2869 = vadd.f32 %v2867, %v2868
    %v2870 = vrot.slane %v2869, 1
    %v2871 = vadd.f32 %v2869, %v2870
    %v2872 = vsel %vm556, %v2604, 0.0
    %v2873 = vrot.slane %v2872, 4
    %v2874 = vadd.f32 %v2872, %v2873
    %v2875 = vrot.slane %v2874, 2
    %v2876 = vadd.f32 %v2874, %v2875
    %v2877 = vrot.slane %v2876, 1
    %v2878 = vadd.f32 %v2876, %v2877
    %v2879 = vsel %vm556, %v2605, 0.0
    %v2880 = vrot.slane %v2879, 4
    %v2881 = vadd.f32 %v2879, %v2880
    %v2882 = vrot.slane %v2881, 2
    %v2883 = vadd.f32 %v2881, %v2882
    %v2884 = vrot.slane %v2883, 1
    %v2885 = vadd.f32 %v2883, %v2884
    %v2886 = vsel %vm556, %v2606, 0.0
    %v2887 = vrot.slane %v2886, 4
    %v2888 = vadd.f32 %v2886, %v2887
    %v2889 = vrot.slane %v2888, 2
    %v2890 = vadd.f32 %v2888, %v2889
    %v2891 = vrot.slane %v2890, 1
    %v2892 = vadd.f32 %v2890, %v2891
    %v2893 = vsel %vm556, %v2607, 0.0
    %v2894 = vrot.slane %v2893, 4
    %v2895 = vadd.f32 %v2893, %v2894
    %v2896 = vrot.slane %v2895, 2
    %v2897 = vadd.f32 %v2895, %v2896
    %v2898 = vrot.slane %v2897, 1
    %v2899 = vadd.f32 %v2897, %v2898
    %v2900 = vsel %vm556, %v2608, 0.0
    %v2901 = vrot.slane %v2900, 4
    %v2902 = vadd.f32 %v2900, %v2901
    %v2903 = vrot.slane %v2902, 2
    %v2904 = vadd.f32 %v2902, %v2903
    %v2905 = vrot.slane %v2904, 1
    %v2906 = vadd.f32 %v2904, %v2905
    %v2907 = vsel %vm556, %v2609, 0.0
    %v2908 = vrot.slane %v2907, 4
    %v2909 = vadd.f32 %v2907, %v2908
    %v2910 = vrot.slane %v2909, 2
    %v2911 = vadd.f32 %v2909, %v2910
    %v2912 = vrot.slane %v2911, 1
    %v2913 = vadd.f32 %v2911, %v2912
    %v2914 = vsel %vm556, %v2610, 0.0
    %v2915 = vrot.slane %v2914, 4
    %v2916 = vadd.f32 %v2914, %v2915
    %v2917 = vrot.slane %v2916, 2
    %v2918 = vadd.f32 %v2916, %v2917
    %v2919 = vrot.slane %v2918, 1
    %v2920 = vadd.f32 %v2918, %v2919
    %v2921 = vsel %vm556, %v2611, 0.0
    %v2922 = vrot.slane %v2921, 4
    %v2923 = vadd.f32 %v2921, %v2922
    %v2924 = vrot.slane %v2923, 2
    %v2925 = vadd.f32 %v2923, %v2924
    %v2926 = vrot.slane %v2925, 1
    %v2927 = vadd.f32 %v2925, %v2926
    %v2928 = vsel %vm556, %v2612, 0.0
    %v2929 = vrot.slane %v2928, 4
    %v2930 = vadd.f32 %v2928, %v2929
    %v2931 = vrot.slane %v2930, 2
    %v2932 = vadd.f32 %v2930, %v2931
    %v2933 = vrot.slane %v2932, 1
    %v2934 = vadd.f32 %v2932, %v2933
    %v2935 = vsel %vm556, %v2613, 0.0
    %v2936 = vrot.slane %v2935, 4
    %v2937 = vadd.f32 %v2935, %v2936
    %v2938 = vrot.slane %v2937, 2
    %v2939 = vadd.f32 %v2937, %v2938
    %v2940 = vrot.slane %v2939, 1
    %v2941 = vadd.f32 %v2939, %v2940
    %v2942 = vsel %vm556, %v2614, 0.0
    %v2943 = vrot.slane %v2942, 4
    %v2944 = vadd.f32 %v2942, %v2943
    %v2945 = vrot.slane %v2944, 2
    %v2946 = vadd.f32 %v2944, %v2945
    %v2947 = vrot.slane %v2946, 1
    %v2948 = vadd.f32 %v2946, %v2947
    %v2949 = vsel %vm556, %v2615, 0.0
    %v2950 = vrot.slane %v2949, 4
    %v2951 = vadd.f32 %v2949, %v2950
    %v2952 = vrot.slane %v2951, 2
    %v2953 = vadd.f32 %v2951, %v2952
    %v2954 = vrot.slane %v2953, 1
    %v2955 = vadd.f32 %v2953, %v2954
    %v2956 = vsel %vm556, %v2616, 0.0
    %v2957 = vrot.slane %v2956, 4
    %v2958 = vadd.f32 %v2956, %v2957
    %v2959 = vrot.slane %v2958, 2
    %v2960 = vadd.f32 %v2958, %v2959
    %v2961 = vrot.slane %v2960, 1
    %v2962 = vadd.f32 %v2960, %v2961
    %v2963 = vsel %vm556, %v2617, 0.0
    %v2964 = vrot.slane %v2963, 4
    %v2965 = vadd.f32 %v2963, %v2964
    %v2966 = vrot.slane %v2965, 2
    %v2967 = vadd.f32 %v2965, %v2966
    %v2968 = vrot.slane %v2967, 1
    %v2969 = vadd.f32 %v2967, %v2968
    %v2970 = vsel %vm556, %v2618, 0.0
    %v2971 = vrot.slane %v2970, 4
    %v2972 = vadd.f32 %v2970, %v2971
    %v2973 = vrot.slane %v2972, 2
    %v2974 = vadd.f32 %v2972, %v2973
    %v2975 = vrot.slane %v2974, 1
    %v2976 = vadd.f32 %v2974, %v2975
    %v2977 = vsel %vm556, %v2619, 0.0
    %v2978 = vrot.slane %v2977, 4
    %v2979 = vadd.f32 %v2977, %v2978
    %v2980 = vrot.slane %v2979, 2
    %v2981 = vadd.f32 %v2979, %v2980
    %v2982 = vrot.slane %v2981, 1
    %v2983 = vadd.f32 %v2981, %v2982
    %v2984 = vsel %vm556, %v2620, 0.0
    %v2985 = vrot.slane %v2984, 4
    %v2986 = vadd.f32 %v2984, %v2985
    %v2987 = vrot.slane %v2986, 2
    %v2988 = vadd.f32 %v2986, %v2987
    %v2989 = vrot.slane %v2988, 1
    %v2990 = vadd.f32 %v2988, %v2989
    %v2991 = vsel %vm556, %v2621, 0.0
    %v2992 = vrot.slane %v2991, 4
    %v2993 = vadd.f32 %v2991, %v2992
    %v2994 = vrot.slane %v2993, 2
    %v2995 = vadd.f32 %v2993, %v2994
    %v2996 = vrot.slane %v2995, 1
    %v2997 = vadd.f32 %v2995, %v2996
    %v2998 = vsel %vm556, %v2622, 0.0
    %v2999 = vrot.slane %v2998, 4
    %v3000 = vadd.f32 %v2998, %v2999
    %v3001 = vrot.slane %v3000, 2
    %v3002 = vadd.f32 %v3000, %v3001
    %v3003 = vrot.slane %v3002, 1
    %v3004 = vadd.f32 %v3002, %v3003
    %v3005 = vsel %vm556, %v2623, 0.0
    %v3006 = vrot.slane %v3005, 4
    %v3007 = vadd.f32 %v3005, %v3006
    %v3008 = vrot.slane %v3007, 2
    %v3009 = vadd.f32 %v3007, %v3008
    %v3010 = vrot.slane %v3009, 1
    %v3011 = vadd.f32 %v3009, %v3010
    %v3012 = vsel %vm556, %v2624, 0.0
    %v3013 = vrot.slane %v3012, 4
    %v3014 = vadd.f32 %v3012, %v3013
    %v3015 = vrot.slane %v3014, 2
    %v3016 = vadd.f32 %v3014, %v3015
    %v3017 = vrot.slane %v3016, 1
    %v3018 = vadd.f32 %v3016, %v3017
    %v3019 = vsel %vm556, %v2625, 0.0
    %v3020 = vrot.slane %v3019, 4
    %v3021 = vadd.f32 %v3019, %v3020
    %v3022 = vrot.slane %v3021, 2
    %v3023 = vadd.f32 %v3021, %v3022
    %v3024 = vrot.slane %v3023, 1
    %v3025 = vadd.f32 %v3023, %v3024
    %v3026 = vsel %vm556, %v2626, 0.0
    %v3027 = vrot.slane %v3026, 4
    %v3028 = vadd.f32 %v3026, %v3027
    %v3029 = vrot.slane %v3028, 2
    %v3030 = vadd.f32 %v3028, %v3029
    %v3031 = vrot.slane %v3030, 1
    %v3032 = vadd.f32 %v3030, %v3031
    %v3033 = vsel %vm556, %v2627, 0.0
    %v3034 = vrot.slane %v3033, 4
    %v3035 = vadd.f32 %v3033, %v3034
    %v3036 = vrot.slane %v3035, 2
    %v3037 = vadd.f32 %v3035, %v3036
    %v3038 = vrot.slane %v3037, 1
    %v3039 = vadd.f32 %v3037, %v3038
    %v3040 = vsel %vm556, %v2628, 0.0
    %v3041 = vrot.slane %v3040, 4
    %v3042 = vadd.f32 %v3040, %v3041
    %v3043 = vrot.slane %v3042, 2
    %v3044 = vadd.f32 %v3042, %v3043
    %v3045 = vrot.slane %v3044, 1
    %v3046 = vadd.f32 %v3044, %v3045
    %v3047 = vsel %vm556, %v2629, 0.0
    %v3048 = vrot.slane %v3047, 4
    %v3049 = vadd.f32 %v3047, %v3048
    %v3050 = vrot.slane %v3049, 2
    %v3051 = vadd.f32 %v3049, %v3050
    %v3052 = vrot.slane %v3051, 1
    %v3053 = vadd.f32 %v3051, %v3052
    %v3054 = vsel %vm556, %v2630, 0.0
    %v3055 = vrot.slane %v3054, 4
    %v3056 = vadd.f32 %v3054, %v3055
    %v3057 = vrot.slane %v3056, 2
    %v3058 = vadd.f32 %v3056, %v3057
    %v3059 = vrot.slane %v3058, 1
    %v3060 = vadd.f32 %v3058, %v3059
    %v3061 = vsel %vm556, %v2631, 0.0
    %v3062 = vrot.slane %v3061, 4
    %v3063 = vadd.f32 %v3061, %v3062
    %v3064 = vrot.slane %v3063, 2
    %v3065 = vadd.f32 %v3063, %v3064
    %v3066 = vrot.slane %v3065, 1
    %v3067 = vadd.f32 %v3065, %v3066
    %v3068 = vsel %vm556, %v2632, 0.0
    %v3069 = vrot.slane %v3068, 4
    %v3070 = vadd.f32 %v3068, %v3069
    %v3071 = vrot.slane %v3070, 2
    %v3072 = vadd.f32 %v3070, %v3071
    %v3073 = vrot.slane %v3072, 1
    %v3074 = vadd.f32 %v3072, %v3073
    %v3075 = vsel %vm556, %v2633, 0.0
    %v3076 = vrot.slane %v3075, 4
    %v3077 = vadd.f32 %v3075, %v3076
    %v3078 = vrot.slane %v3077, 2
    %v3079 = vadd.f32 %v3077, %v3078
    %v3080 = vrot.slane %v3079, 1
    %v3081 = vadd.f32 %v3079, %v3080
    %v3098 = vsel %vm1211, %v2647, %v2640
    %v3099 = vsel %vm1213, %v2654, %v3098
    %v3100 = vsel %vm1215, %v2661, %v3099
    %v3101 = vsel %vm1217, %v2668, %v3100
    %v3102 = vsel %vm1219, %v2675, %v3101
    %v3103 = vsel %vm1221, %v2682, %v3102
    %v3104 = vsel %vm1223, %v2689, %v3103
    %v3105 = vsel %vm1211, %v2871, %v2864
    %v3106 = vsel %vm1213, %v2878, %v3105
    %v3107 = vsel %vm1215, %v2885, %v3106
    %v3108 = vsel %vm1217, %v2892, %v3107
    %v3109 = vsel %vm1219, %v2899, %v3108
    %v3110 = vsel %vm1221, %v2906, %v3109
    %v3111 = vsel %vm1223, %v2913, %v3110
    %v3130 = vsel %vm1211, %v2703, %v2696
    %v3131 = vsel %vm1213, %v2710, %v3130
    %v3132 = vsel %vm1215, %v2717, %v3131
    %v3133 = vsel %vm1217, %v2724, %v3132
    %v3134 = vsel %vm1219, %v2731, %v3133
    %v3135 = vsel %vm1221, %v2738, %v3134
    %v3136 = vsel %vm1223, %v2745, %v3135
    %v3137 = vsel %vm1211, %v2927, %v2920
    %v3138 = vsel %vm1213, %v2934, %v3137
    %v3139 = vsel %vm1215, %v2941, %v3138
    %v3140 = vsel %vm1217, %v2948, %v3139
    %v3141 = vsel %vm1219, %v2955, %v3140
    %v3142 = vsel %vm1221, %v2962, %v3141
    %v3143 = vsel %vm1223, %v2969, %v3142
    %3144 = vrot.lane.b32.xlu0 %v3136, 8
    %v3145 = vpop.permute.xlu0 %3144
    %3146 = vrot.lane.b32.xlu0 %v3143, 8
    %v3147 = vpop.permute.xlu0 %3146
    %v3166 = vsel %vm1211, %v2759, %v2752
    %v3167 = vsel %vm1213, %v2766, %v3166
    %v3168 = vsel %vm1215, %v2773, %v3167
    %v3169 = vsel %vm1217, %v2780, %v3168
    %v3170 = vsel %vm1219, %v2787, %v3169
    %v3171 = vsel %vm1221, %v2794, %v3170
    %v3172 = vsel %vm1223, %v2801, %v3171
    %v3173 = vsel %vm1211, %v2983, %v2976
    %v3174 = vsel %vm1213, %v2990, %v3173
    %v3175 = vsel %vm1215, %v2997, %v3174
    %v3176 = vsel %vm1217, %v3004, %v3175
    %v3177 = vsel %vm1219, %v3011, %v3176
    %v3178 = vsel %vm1221, %v3018, %v3177
    %v3179 = vsel %vm1223, %v3025, %v3178
    %3180 = vrot.lane.b32.xlu0 %v3172, 16
    %v3181 = vpop.permute.xlu0 %3180
    %3182 = vrot.lane.b32.xlu0 %v3179, 16
    %v3183 = vpop.permute.xlu0 %3182
    %v3202 = vsel %vm1211, %v2815, %v2808
    %v3203 = vsel %vm1213, %v2822, %v3202
    %v3204 = vsel %vm1215, %v2829, %v3203
    %v3205 = vsel %vm1217, %v2836, %v3204
    %v3206 = vsel %vm1219, %v2843, %v3205
    %v3207 = vsel %vm1221, %v2850, %v3206
    %v3208 = vsel %vm1223, %v2857, %v3207
    %v3209 = vsel %vm1211, %v3039, %v3032
    %v3210 = vsel %vm1213, %v3046, %v3209
    %v3211 = vsel %vm1215, %v3053, %v3210
    %v3212 = vsel %vm1217, %v3060, %v3211
    %v3213 = vsel %vm1219, %v3067, %v3212
    %v3214 = vsel %vm1221, %v3074, %v3213
    %v3215 = vsel %vm1223, %v3081, %v3214
    %3216 = vrot.lane.b32.xlu0 %v3208, 24
    %v3217 = vpop.permute.xlu0 %3216
    %3218 = vrot.lane.b32.xlu0 %v3215, 24
    %v3219 = vpop.permute.xlu0 %3218
    %v3222 = vsel %vm556, %v3104, %v3145
    %v3223 = vsel %vm556, %v3111, %v3147
    %vm3224 = vcmask 130048
    %v3225 = vsel %vm3224, %v3222, %v3181
    %v3226 = vsel %vm3224, %v3223, %v3183
    %vm3227 = vcmask 195584
    %v3228 = vsel %vm3227, %v3225, %v3217
    %v3229 = vsel %vm3227, %v3226, %v3219
    %v3230 = vpack.c.bf16 %v3229, %v3228
    %v3232 = vrot.slane %v169, 4
    %v3234 = vunpack.c.l.bf16 %v3232
    %v3235 = vperm.slane %v3234, 0
    %v3236 = vunpack.c.h.b16 %v161
    %v3237 = vunpack.c.h.b16 %v163
    %v3238 = vunpack.c.h.b16 %v165
    %v3239 = vunpack.c.h.b16 %v167
    %v3240 = vpack.c.b16 %v3237, %v3236
    %v3241 = vpack.c.b16 %v3239, %v3238
    %v3245 = vsel %vm95, %v3230, 0
    %3247 = vmatpush.bf16.msra.mxu0 0
    %3248 = vmatpush.bf16.msra.mxu0 0
    %3249 = vmatpush.bf16.msra.mxu0 0
    %3250 = vmatpush.bf16.msra.mxu0 0
    %3251 = vmatpush.bf16.msra.mxu0 0
    %3252 = vmatpush.bf16.msra.mxu0 0
    %3253 = vmatpush.bf16.msra.mxu0 %v3241
    %3254 = vmatpush.bf16.msra.mxu0 %v3240
    %3255 = vmatmul.bf16.gmra.mxu0 %v3245
    %v3256 = vpop.f32.mrf.mxu0
    %v3257 = vadd.f32 %v3235, %v3256
    %v3258 = vpop.f32.mrf.mxu0
    %v3259 = vadd.f32 %v3235, %v3258
    %3260 = vdwg.mxu0
    %v3261 = vadd.f32 %v151, %v3257
    %v3262 = vadd.f32 %v152, %v3259
    %v3263 = vld [vmem:[%s4 + $0x84] sm:$0x1]
    %v3264 = vld [vmem:[%s4 + $0x85] sm:$0x1]
    %v3265 = vsel %vm95, %v3261, 0.0
    %3266 = vadd.xlane.f32.xlu0 %v3265
    %v3267 = vpop.xlane.xlu0 %3266
    %v3268 = vsel %vm95, %v3262, 0.0
    %3269 = vadd.xlane.f32.xlu0 %v3268
    %v3270 = vpop.xlane.xlu0 %3269
    %v3271 = vmul.f32 %v3267, %v108
    %v3272 = vmul.f32 %v3270, %v108
    %v3273 = vsub.f32 %v3261, %v3271
    %v3274 = vsub.f32 %v3262, %v3272
    %v3275 = vmul.f32 %v3273, %v3273
    %v3276 = vmul.f32 %v3274, %v3274
    %v3277 = vsel %vm95, %v3275, 0.0
    %3278 = vadd.xlane.f32.xlu0 %v3277
    %v3279 = vpop.xlane.xlu0 %3278
    %v3280 = vsel %vm95, %v3276, 0.0
    %3281 = vadd.xlane.f32.xlu0 %v3280
    %v3282 = vpop.xlane.xlu0 %3281
    %v3283 = vmul.f32 %v3279, %v108
    %v3284 = vmul.f32 %v3282, %v108
    %v3285 = vadd.f32 %v3283, 1e-07
    %v3286 = vadd.f32 %v3284, 1e-07
    %v3287 = vrsqrt.pop %v3285
    %v3288 = vmul.f32 %v3287, %v3285
    %v3289 = vmul.f32 %v3288, %v3287
    %v3290 = vmul.f32 0.5, %v3289
    %v3291 = vsub.f32 1.5, %v3290
    %v3292 = vmul.f32 %v3287, %v3291
    %vm3293 = vweird.f32 %v3285
    %vm3294 = vweird.f32 %v3287
    %vm3295 = vmor %vm3293, %vm3294
    %v3296 = vsel %vm3295, %v3287, %v3292
    %v3297 = vrsqrt.pop %v3286
    %v3298 = vmul.f32 %v3297, %v3286
    %v3299 = vmul.f32 %v3298, %v3297
    %v3300 = vmul.f32 0.5, %v3299
    %v3301 = vsub.f32 1.5, %v3300
    %v3302 = vmul.f32 %v3297, %v3301
    %vm3303 = vweird.f32 %v3286
    %vm3304 = vweird.f32 %v3297
    %vm3305 = vmor %vm3303, %vm3304
    %v3306 = vsel %vm3305, %v3297, %v3302
    %v3307 = vmul.f32 %v3273, %v3296
    %v3308 = vmul.f32 %v3274, %v3306
    %v3309 = vperm.slane %v3263, 0
    %v3310 = vmul.f32 %v3307, %v3309
    %v3311 = vmul.f32 %v3308, %v3309
    %v3312 = vperm.slane %v3264, 0
    %v3313 = vadd.f32 %v3310, %v3312
    %v3314 = vadd.f32 %v3311, %v3312
    %v3315 = vld [vmem:[%s3] sm:$0xf]
    %v3316 = vld [vmem:[%s3 + $0x4] sm:$0xf]
    %v3317 = vld [vmem:[%s3 + $0x8] sm:$0xf]
    %v3318 = vld [vmem:[%s3 + $0xc] sm:$0xf]
    %v3319 = vld [vmem:[%s3 + $0x10] sm:$0xf]
    %v3320 = vld [vmem:[%s3 + $0x14] sm:$0xf]
    %v3321 = vld [vmem:[%s3 + $0x18] sm:$0xf]
    %v3322 = vld [vmem:[%s3 + $0x1c] sm:$0xf]
    %v3323 = vld [vmem:[%s3 + $0x20] sm:$0xf]
    %v3324 = vld [vmem:[%s3 + $0x24] sm:$0xf]
    %v3325 = vld [vmem:[%s3 + $0x28] sm:$0xf]
    %v3326 = vld [vmem:[%s3 + $0x2c] sm:$0xf]
    %v3327 = vpack.c.bf16 %v3314, %v3313
    %v3328 = vld [vmem:[%s4 + $0x89] sm:$0x1]
    %v3329 = vperm.slane %v3328, 0
    %v3334 = vunpack.c.l.b16 %v3315
    %v3335 = vunpack.c.l.b16 %v3316
    %v3336 = vunpack.c.l.b16 %v3317
    %v3337 = vunpack.c.l.b16 %v3318
    %v3338 = vpack.c.b16 %v3335, %v3334
    %v3339 = vpack.c.b16 %v3337, %v3336
    %v3343 = vsel %vm95, %v3327, 0
    %3345 = vmatpush.bf16.msra.mxu0 0
    %3346 = vmatpush.bf16.msra.mxu0 0
    %3347 = vmatpush.bf16.msra.mxu0 0
    %3348 = vmatpush.bf16.msra.mxu0 0
    %3349 = vmatpush.bf16.msra.mxu0 0
    %3350 = vmatpush.bf16.msra.mxu0 0
    %3351 = vmatpush.bf16.msra.mxu0 %v3339
    %3352 = vmatpush.bf16.msra.mxu0 %v3338
    %3353 = vmatmul.bf16.gmra.mxu0 %v3343
    %v3354 = vpop.f32.mrf.mxu0
    %v3355 = vadd.f32 %v3329, %v3354
    %v3356 = vpop.f32.mrf.mxu0
    %v3357 = vadd.f32 %v3329, %v3356
    %3358 = vdwg.mxu0
    %v3359 = vmul.f32 %v3355, 0.5
    %v3360 = vmul.f32 %v3357, 0.5
    %v3361 = vmul.f32 %v3355, 0.044715
    %v3362 = vmul.f32 %v3357, 0.044715
    %v3363 = vmul.f32 %v3361, %v3355
    %v3364 = vmul.f32 %v3362, %v3357
    %v3365 = vmul.f32 %v3363, %v3355
    %v3366 = vmul.f32 %v3364, %v3357
    %v3367 = vadd.f32 %v3355, %v3365
    %v3368 = vadd.f32 %v3357, %v3366
    %v3369 = vmul.f32 %v3367, 0.7978846
    %v3370 = vmul.f32 %v3368, 0.7978846
    %v3371 = vtanh.pop %v3369
    %v3372 = vtanh.pop %v3370
    %v3373 = vadd.f32 %v3371, 1.0
    %v3374 = vadd.f32 %v3372, 1.0
    %v3375 = vmul.f32 %v3359, %v3373
    %v3376 = vmul.f32 %v3360, %v3374
    %v3377 = vpack.c.bf16 %v3376, %v3375
    %v3378 = vld [vmem:[%s4 + $0x88] sm:$0x1]
    %v3379 = vperm.slane %v3378, 0
    %v3388 = vunpack.c.l.b16 %v3319
    %v3389 = vunpack.c.l.b16 %v3320
    %v3390 = vunpack.c.l.b16 %v3321
    %v3391 = vunpack.c.l.b16 %v3322
    %v3392 = vunpack.c.l.b16 %v3323
    %v3393 = vunpack.c.l.b16 %v3324
    %v3394 = vunpack.c.l.b16 %v3325
    %v3395 = vunpack.c.l.b16 %v3326
    %v3396 = vpack.c.b16 %v3389, %v3388
    %v3397 = vpack.c.b16 %v3391, %v3390
    %v3398 = vpack.c.b16 %v3393, %v3392
    %v3399 = vpack.c.b16 %v3395, %v3394
    %vm3404 = vcmask 523264
    %v3406 = vsel %vm3404, %v3377, 0
    %3408 = vmatpush.bf16.msra.mxu0 0
    %3409 = vmatpush.bf16.msra.mxu0 0
    %3410 = vmatpush.bf16.msra.mxu0 0
    %3411 = vmatpush.bf16.msra.mxu0 0
    %3412 = vmatpush.bf16.msra.mxu0 %v3399
    %3413 = vmatpush.bf16.msra.mxu0 %v3398
    %3414 = vmatpush.bf16.msra.mxu0 %v3397
    %3415 = vmatpush.bf16.msra.mxu0 %v3396
    %3416 = vmatmul.bf16.gmra.mxu0 %v3406
    %v3417 = vpop.f32.mrf.mxu0
    %v3418 = vadd.f32 %v3379, %v3417
    %v3419 = vpop.f32.mrf.mxu0
    %v3420 = vadd.f32 %v3379, %v3419
    %3421 = vdwg.mxu0
    %v3422 = vadd.f32 %v3313, %v3418
    %v3423 = vadd.f32 %v3314, %v3420
    %v3424 = vld [vmem:[%s4 + $0x86] sm:$0x1]
    %v3425 = vld [vmem:[%s4 + $0x87] sm:$0x1]
    %v3426 = vsel %vm95, %v3422, 0.0
    %3427 = vadd.xlane.f32.xlu0 %v3426
    %v3428 = vpop.xlane.xlu0 %3427
    %v3429 = vsel %vm95, %v3423, 0.0
    %3430 = vadd.xlane.f32.xlu0 %v3429
    %v3431 = vpop.xlane.xlu0 %3430
    %v3432 = vmul.f32 %v3428, %v108
    %v3433 = vmul.f32 %v3431, %v108
    %v3434 = vsub.f32 %v3422, %v3432
    %v3435 = vsub.f32 %v3423, %v3433
    %v3436 = vmul.f32 %v3434, %v3434
    %v3437 = vmul.f32 %v3435, %v3435
    %v3438 = vsel %vm95, %v3436, 0.0
    %3439 = vadd.xlane.f32.xlu0 %v3438
    %v3440 = vpop.xlane.xlu0 %3439
    %v3441 = vsel %vm95, %v3437, 0.0
    %3442 = vadd.xlane.f32.xlu0 %v3441
    %v3443 = vpop.xlane.xlu0 %3442
    %v3444 = vmul.f32 %v3440, %v108
    %v3445 = vmul.f32 %v3443, %v108
    %v3446 = vadd.f32 %v3444, 1e-07
    %v3447 = vadd.f32 %v3445, 1e-07
    %v3448 = vrsqrt.pop %v3446
    %v3449 = vmul.f32 %v3448, %v3446
    %v3450 = vmul.f32 %v3449, %v3448
    %v3451 = vmul.f32 0.5, %v3450
    %v3452 = vsub.f32 1.5, %v3451
    %v3453 = vmul.f32 %v3448, %v3452
    %vm3454 = vweird.f32 %v3446
    %vm3455 = vweird.f32 %v3448
    %vm3456 = vmor %vm3454, %vm3455
    %v3457 = vsel %vm3456, %v3448, %v3453
    %v3458 = vrsqrt.pop %v3447
    %v3459 = vmul.f32 %v3458, %v3447
    %v3460 = vmul.f32 %v3459, %v3458
    %v3461 = vmul.f32 0.5, %v3460
    %v3462 = vsub.f32 1.5, %v3461
    %v3463 = vmul.f32 %v3458, %v3462
    %vm3464 = vweird.f32 %v3447
    %vm3465 = vweird.f32 %v3458
    %vm3466 = vmor %vm3464, %vm3465
    %v3467 = vsel %vm3466, %v3458, %v3463
    %v3468 = vmul.f32 %v3434, %v3457
    %v3469 = vmul.f32 %v3435, %v3467
    %v3470 = vperm.slane %v3424, 0
    %v3471 = vmul.f32 %v3468, %v3470
    %v3472 = vmul.f32 %v3469, %v3470
    %v3473 = vperm.slane %v3425, 0
    %v3474 = vadd.f32 %v3471, %v3473
    %v3475 = vadd.f32 %v3472, %v3473
    %s3476 = scalar_lea.vmem [#allocation2], 80
    %v3477 = vld [vmem:[%s3476] sm:$0xff]
    %v3478 = vld [vmem:[%s3476 + $0x8] sm:$0xff]
    %v3479 = vld [vmem:[%s3476 + $0x10] sm:$0xff]
    %v3480 = vld [vmem:[%s3476 + $0x18] sm:$0xff]
    %v3481 = vld [vmem:[%s3476 + $0x20] sm:$0xff]
    %v3482 = vld [vmem:[%s3476 + $0x28] sm:$0xff]
    %v3483 = vld [vmem:[%s3476 + $0x30] sm:$0xff]
    %v3484 = vld [vmem:[%s3476 + $0x38] sm:$0xff]
    %v3485 = vld [vmem:[%s3476 + $0x40] sm:$0x11]
    %v3486 = vld [vmem:[%s3476 + $0x48] sm:$0x11]
    %v3487 = vpack.c.bf16 %v3475, %v3474
    %v3488 = vunpack.c.l.bf16 %v3485
    %v3489 = vunpack.c.h.bf16 %v3485
    %v3490 = vunpack.c.l.bf16 %v3486
    %v3491 = vperm.slane %v3488, 0
    %v3492 = vperm.slane %v3489, 0
    %v3493 = vperm.slane %v3490, 0
    %v3502 = vunpack.c.l.b16 %v3477
    %v3503 = vunpack.c.h.b16 %v3477
    %v3504 = vunpack.c.l.b16 %v3478
    %v3505 = vunpack.c.l.b16 %v3479
    %v3506 = vunpack.c.h.b16 %v3479
    %v3507 = vunpack.c.l.b16 %v3480
    %v3508 = vunpack.c.l.b16 %v3481
    %v3509 = vunpack.c.h.b16 %v3481
    %v3510 = vunpack.c.l.b16 %v3482
    %v3511 = vunpack.c.l.b16 %v3483
    %v3512 = vunpack.c.h.b16 %v3483
    %v3513 = vunpack.c.l.b16 %v3484
    %v3514 = vpack.c.b16 %v3505, %v3502
    %v3515 = vpack.c.b16 %v3506, %v3503
    %v3516 = vpack.c.b16 %v3507, %v3504
    %v3517 = vpack.c.b16 %v3511, %v3508
    %v3518 = vpack.c.b16 %v3512, %v3509
    %v3519 = vpack.c.b16 %v3513, %v3510
    %v3527 = vsel %vm95, %v3487, 0
    %3529 = vmatpush.bf16.msra.mxu0 0
    %3530 = vmatpush.bf16.msra.mxu0 0
    %3531 = vmatpush.bf16.msra.mxu0 0
    %3532 = vmatpush.bf16.msra.mxu0 0
    %3533 = vmatpush.bf16.msra.mxu0 0
    %3534 = vmatpush.bf16.msra.mxu0 0
    %3535 = vmatpush.bf16.msra.mxu0 %v3517
    %3536 = vmatpush.bf16.msra.mxu0 %v3514
    %3537 = vmatmul.bf16.gmra.mxu0 %v3527
    %v3538 = vpop.f32.mrf.mxu0
    %v3539 = vadd.f32 %v3491, %v3538
    %v3540 = vpop.f32.mrf.mxu0
    %v3541 = vadd.f32 %v3491, %v3540
    %3542 = vdwg.mxu0
    %3543 = vmatpush.bf16.msra.mxu0 0
    %3544 = vmatpush.bf16.msra.mxu0 0
    %3545 = vmatpush.bf16.msra.mxu0 0
    %3546 = vmatpush.bf16.msra.mxu0 0
    %3547 = vmatpush.bf16.msra.mxu0 0
    %3548 = vmatpush.bf16.msra.mxu0 0
    %3549 = vmatpush.bf16.msra.mxu0 %v3518
    %3550 = vmatpush.bf16.msra.mxu0 %v3515
    %3551 = vmatmul.bf16.gmra.mxu0 %v3527
    %v3552 = vpop.f32.mrf.mxu0
    %v3553 = vadd.f32 %v3492, %v3552
    %v3554 = vpop.f32.mrf.mxu0
    %v3555 = vadd.f32 %v3492, %v3554
    %3556 = vdwg.mxu0
    %3557 = vmatpush.bf16.msra.mxu0 0
    %3558 = vmatpush.bf16.msra.mxu0 0
    %3559 = vmatpush.bf16.msra.mxu0 0
    %3560 = vmatpush.bf16.msra.mxu0 0
    %3561 = vmatpush.bf16.msra.mxu0 0
    %3562 = vmatpush.bf16.msra.mxu0 0
    %3563 = vmatpush.bf16.msra.mxu0 %v3519
    %3564 = vmatpush.bf16.msra.mxu0 %v3516
    %3565 = vmatmul.bf16.gmra.mxu0 %v3527
    %v3566 = vpop.f32.mrf.mxu0
    %v3567 = vadd.f32 %v3493, %v3566
    %v3568 = vpop.f32.mrf.mxu0
    %v3569 = vadd.f32 %v3493, %v3568
    %3570 = vdwg.mxu0
    %3573 = vrot.lane.b32.xlu0 %v3539, 120
    %v3574 = vpop.permute.xlu0 %3573
    %3575 = vrot.lane.b32.xlu0 %v3541, 120
    %v3576 = vpop.permute.xlu0 %3575
    %3577 = vrot.lane.b32.xlu0 %v3539, 112
    %v3578 = vpop.permute.xlu0 %3577
    %3579 = vrot.lane.b32.xlu0 %v3541, 112
    %v3580 = vpop.permute.xlu0 %3579
    %3581 = vrot.lane.b32.xlu0 %v3539, 104
    %v3582 = vpop.permute.xlu0 %3581
    %3583 = vrot.lane.b32.xlu0 %v3541, 104
    %v3584 = vpop.permute.xlu0 %3583
    %3587 = vrot.lane.b32.xlu0 %v3553, 120
    %v3588 = vpop.permute.xlu0 %3587
    %3589 = vrot.lane.b32.xlu0 %v3555, 120
    %v3590 = vpop.permute.xlu0 %3589
    %3593 = vrot.lane.b32.xlu0 %v3553, 112
    %v3594 = vpop.permute.xlu0 %3593
    %3595 = vrot.lane.b32.xlu0 %v3555, 112
    %v3596 = vpop.permute.xlu0 %3595
    %3599 = vrot.lane.b32.xlu0 %v3553, 104
    %v3600 = vpop.permute.xlu0 %3599
    %3601 = vrot.lane.b32.xlu0 %v3555, 104
    %v3602 = vpop.permute.xlu0 %3601
    %3607 = vrot.lane.b32.xlu0 %v3567, 120
    %v3608 = vpop.permute.xlu0 %3607
    %3609 = vrot.lane.b32.xlu0 %v3569, 120
    %v3610 = vpop.permute.xlu0 %3609
    %3613 = vrot.lane.b32.xlu0 %v3567, 112
    %v3614 = vpop.permute.xlu0 %3613
    %3615 = vrot.lane.b32.xlu0 %v3569, 112
    %v3616 = vpop.permute.xlu0 %3615
    %3619 = vrot.lane.b32.xlu0 %v3567, 104
    %v3620 = vpop.permute.xlu0 %3619
    %3621 = vrot.lane.b32.xlu0 %v3569, 104
    %v3622 = vpop.permute.xlu0 %3621
    %v3625 = vrot.slane %v3539, 1
    %v3626 = vrot.slane %v3539, 2
    %v3627 = vrot.slane %v3539, 3
    %v3628 = vrot.slane %v3539, 4
    %v3629 = vrot.slane %v3539, 5
    %v3630 = vrot.slane %v3539, 6
    %v3631 = vrot.slane %v3539, 7
    %v3632 = vrot.slane %v3574, 1
    %v3633 = vrot.slane %v3574, 2
    %v3634 = vrot.slane %v3574, 3
    %v3635 = vrot.slane %v3574, 4
    %v3636 = vrot.slane %v3574, 5
    %v3637 = vrot.slane %v3574, 6
    %v3638 = vrot.slane %v3574, 7
    %v3639 = vrot.slane %v3578, 1
    %v3640 = vrot.slane %v3578, 2
    %v3641 = vrot.slane %v3578, 3
    %v3642 = vrot.slane %v3578, 4
    %v3643 = vrot.slane %v3578, 5
    %v3644 = vrot.slane %v3578, 6
    %v3645 = vrot.slane %v3578, 7
    %v3646 = vrot.slane %v3582, 1
    %v3647 = vrot.slane %v3582, 2
    %v3648 = vrot.slane %v3582, 3
    %v3649 = vrot.slane %v3582, 4
    %v3650 = vrot.slane %v3582, 5
    %v3651 = vrot.slane %v3582, 6
    %v3652 = vrot.slane %v3582, 7
    %v3653 = vrot.slane %v3541, 1
    %v3654 = vrot.slane %v3541, 2
    %v3655 = vrot.slane %v3541, 3
    %v3656 = vrot.slane %v3541, 4
    %v3657 = vrot.slane %v3541, 5
    %v3658 = vrot.slane %v3541, 6
    %v3659 = vrot.slane %v3541, 7
    %v3660 = vrot.slane %v3576, 1
    %v3661 = vrot.slane %v3576, 2
    %v3662 = vrot.slane %v3576, 3
    %v3663 = vrot.slane %v3576, 4
    %v3664 = vrot.slane %v3576, 5
    %v3665 = vrot.slane %v3576, 6
    %v3666 = vrot.slane %v3576, 7
    %v3667 = vrot.slane %v3580, 1
    %v3668 = vrot.slane %v3580, 2
    %v3669 = vrot.slane %v3580, 3
    %v3670 = vrot.slane %v3580, 4
    %v3671 = vrot.slane %v3580, 5
    %v3672 = vrot.slane %v3580, 6
    %v3673 = vrot.slane %v3580, 7
    %v3674 = vrot.slane %v3584, 1
    %v3675 = vrot.slane %v3584, 2
    %v3676 = vrot.slane %v3584, 3
    %v3677 = vrot.slane %v3584, 4
    %v3678 = vrot.slane %v3584, 5
    %v3679 = vrot.slane %v3584, 6
    %v3680 = vrot.slane %v3584, 7
    %v3681 = vperm.slane %v3539, 0
    %v3682 = vperm.slane %v3625, 0
    %v3683 = vperm.slane %v3626, 0
    %v3684 = vperm.slane %v3627, 0
    %v3685 = vperm.slane %v3628, 0
    %v3686 = vperm.slane %v3629, 0
    %v3687 = vperm.slane %v3630, 0
    %v3688 = vperm.slane %v3631, 0
    %v3689 = vperm.slane %v3574, 0
    %v3690 = vperm.slane %v3632, 0
    %v3691 = vperm.slane %v3633, 0
    %v3692 = vperm.slane %v3634, 0
    %v3693 = vperm.slane %v3635, 0
    %v3694 = vperm.slane %v3636, 0
    %v3695 = vperm.slane %v3637, 0
    %v3696 = vperm.slane %v3638, 0
    %v3697 = vperm.slane %v3578, 0
    %v3698 = vperm.slane %v3639, 0
    %v3699 = vperm.slane %v3640, 0
    %v3700 = vperm.slane %v3641, 0
    %v3701 = vperm.slane %v3642, 0
    %v3702 = vperm.slane %v3643, 0
    %v3703 = vperm.slane %v3644, 0
    %v3704 = vperm.slane %v3645, 0
    %v3705 = vperm.slane %v3582, 0
    %v3706 = vperm.slane %v3646, 0
    %v3707 = vperm.slane %v3647, 0
    %v3708 = vperm.slane %v3648, 0
    %v3709 = vperm.slane %v3649, 0
    %v3710 = vperm.slane %v3650, 0
    %v3711 = vperm.slane %v3651, 0
    %v3712 = vperm.slane %v3652, 0
    %v3713 = vperm.slane %v3541, 0
    %v3714 = vperm.slane %v3653, 0
    %v3715 = vperm.slane %v3654, 0
    %v3716 = vperm.slane %v3655, 0
    %v3717 = vperm.slane %v3656, 0
    %v3718 = vperm.slane %v3657, 0
    %v3719 = vperm.slane %v3658, 0
    %v3720 = vperm.slane %v3659, 0
    %v3721 = vperm.slane %v3576, 0
    %v3722 = vperm.slane %v3660, 0
    %v3723 = vperm.slane %v3661, 0
    %v3724 = vperm.slane %v3662, 0
    %v3725 = vperm.slane %v3663, 0
    %v3726 = vperm.slane %v3664, 0
    %v3727 = vperm.slane %v3665, 0
    %v3728 = vperm.slane %v3666, 0
    %v3729 = vperm.slane %v3580, 0
    %v3730 = vperm.slane %v3667, 0
    %v3731 = vperm.slane %v3668, 0
    %v3732 = vperm.slane %v3669, 0
    %v3733 = vperm.slane %v3670, 0
    %v3734 = vperm.slane %v3671, 0
    %v3735 = vperm.slane %v3672, 0
    %v3736 = vperm.slane %v3673, 0
    %v3737 = vperm.slane %v3584, 0
    %v3738 = vperm.slane %v3674, 0
    %v3739 = vperm.slane %v3675, 0
    %v3740 = vperm.slane %v3676, 0
    %v3741 = vperm.slane %v3677, 0
    %v3742 = vperm.slane %v3678, 0
    %v3743 = vperm.slane %v3679, 0
    %v3744 = vperm.slane %v3680, 0
    %v3809 = vmul.f32 %v3681, %v3553
    %v3810 = vmul.f32 %v3682, %v3553
    %v3811 = vmul.f32 %v3683, %v3553
    %v3812 = vmul.f32 %v3684, %v3553
    %v3813 = vmul.f32 %v3685, %v3553
    %v3814 = vmul.f32 %v3686, %v3553
    %v3815 = vmul.f32 %v3687, %v3553
    %v3816 = vmul.f32 %v3688, %v3553
    %v3817 = vmul.f32 %v3689, %v3588
    %v3818 = vmul.f32 %v3690, %v3588
    %v3819 = vmul.f32 %v3691, %v3588
    %v3820 = vmul.f32 %v3692, %v3588
    %v3821 = vmul.f32 %v3693, %v3588
    %v3822 = vmul.f32 %v3694, %v3588
    %v3823 = vmul.f32 %v3695, %v3588
    %v3824 = vmul.f32 %v3696, %v3588
    %v3825 = vmul.f32 %v3697, %v3594
    %v3826 = vmul.f32 %v3698, %v3594
    %v3827 = vmul.f32 %v3699, %v3594
    %v3828 = vmul.f32 %v3700, %v3594
    %v3829 = vmul.f32 %v3701, %v3594
    %v3830 = vmul.f32 %v3702, %v3594
    %v3831 = vmul.f32 %v3703, %v3594
    %v3832 = vmul.f32 %v3704, %v3594
    %v3833 = vmul.f32 %v3705, %v3600
    %v3834 = vmul.f32 %v3706, %v3600
    %v3835 = vmul.f32 %v3707, %v3600
    %v3836 = vmul.f32 %v3708, %v3600
    %v3837 = vmul.f32 %v3709, %v3600
    %v3838 = vmul.f32 %v3710, %v3600
    %v3839 = vmul.f32 %v3711, %v3600
    %v3840 = vmul.f32 %v3712, %v3600
    %v3841 = vmul.f32 %v3713, %v3555
    %v3842 = vmul.f32 %v3714, %v3555
    %v3843 = vmul.f32 %v3715, %v3555
    %v3844 = vmul.f32 %v3716, %v3555
    %v3845 = vmul.f32 %v3717, %v3555
    %v3846 = vmul.f32 %v3718, %v3555
    %v3847 = vmul.f32 %v3719, %v3555
    %v3848 = vmul.f32 %v3720, %v3555
    %v3849 = vmul.f32 %v3721, %v3590
    %v3850 = vmul.f32 %v3722, %v3590
    %v3851 = vmul.f32 %v3723, %v3590
    %v3852 = vmul.f32 %v3724, %v3590
    %v3853 = vmul.f32 %v3725, %v3590
    %v3854 = vmul.f32 %v3726, %v3590
    %v3855 = vmul.f32 %v3727, %v3590
    %v3856 = vmul.f32 %v3728, %v3590
    %v3857 = vmul.f32 %v3729, %v3596
    %v3858 = vmul.f32 %v3730, %v3596
    %v3859 = vmul.f32 %v3731, %v3596
    %v3860 = vmul.f32 %v3732, %v3596
    %v3861 = vmul.f32 %v3733, %v3596
    %v3862 = vmul.f32 %v3734, %v3596
    %v3863 = vmul.f32 %v3735, %v3596
    %v3864 = vmul.f32 %v3736, %v3596
    %v3865 = vmul.f32 %v3737, %v3602
    %v3866 = vmul.f32 %v3738, %v3602
    %v3867 = vmul.f32 %v3739, %v3602
    %v3868 = vmul.f32 %v3740, %v3602
    %v3869 = vmul.f32 %v3741, %v3602
    %v3870 = vmul.f32 %v3742, %v3602
    %v3871 = vmul.f32 %v3743, %v3602
    %v3872 = vmul.f32 %v3744, %v3602
    %v3873 = vsel %vm556, %v3809, 0.0
    %3874 = vadd.xlane.f32.xlu0 %v3873
    %v3875 = vpop.xlane.xlu0 %3874
    %v3876 = vsel %vm556, %v3810, 0.0
    %3877 = vadd.xlane.f32.xlu0 %v3876
    %v3878 = vpop.xlane.xlu0 %3877
    %v3879 = vsel %vm556, %v3811, 0.0
    %3880 = vadd.xlane.f32.xlu0 %v3879
    %v3881 = vpop.xlane.xlu0 %3880
    %v3882 = vsel %vm556, %v3812, 0.0
    %3883 = vadd.xlane.f32.xlu0 %v3882
    %v3884 = vpop.xlane.xlu0 %3883
    %v3885 = vsel %vm556, %v3813, 0.0
    %3886 = vadd.xlane.f32.xlu0 %v3885
    %v3887 = vpop.xlane.xlu0 %3886
    %v3888 = vsel %vm556, %v3814, 0.0
    %3889 = vadd.xlane.f32.xlu0 %v3888
    %v3890 = vpop.xlane.xlu0 %3889
    %v3891 = vsel %vm556, %v3815, 0.0
    %3892 = vadd.xlane.f32.xlu0 %v3891
    %v3893 = vpop.xlane.xlu0 %3892
    %v3894 = vsel %vm556, %v3816, 0.0
    %3895 = vadd.xlane.f32.xlu0 %v3894
    %v3896 = vpop.xlane.xlu0 %3895
    %v3897 = vsel %vm556, %v3817, 0.0
    %3898 = vadd.xlane.f32.xlu0 %v3897
    %v3899 = vpop.xlane.xlu0 %3898
    %v3900 = vsel %vm556, %v3818, 0.0
    %3901 = vadd.xlane.f32.xlu0 %v3900
    %v3902 = vpop.xlane.xlu0 %3901
    %v3903 = vsel %vm556, %v3819, 0.0
    %3904 = vadd.xlane.f32.xlu0 %v3903
    %v3905 = vpop.xlane.xlu0 %3904
    %v3906 = vsel %vm556, %v3820, 0.0
    %3907 = vadd.xlane.f32.xlu0 %v3906
    %v3908 = vpop.xlane.xlu0 %3907
    %v3909 = vsel %vm556, %v3821, 0.0
    %3910 = vadd.xlane.f32.xlu0 %v3909
    %v3911 = vpop.xlane.xlu0 %3910
    %v3912 = vsel %vm556, %v3822, 0.0
    %3913 = vadd.xlane.f32.xlu0 %v3912
    %v3914 = vpop.xlane.xlu0 %3913
    %v3915 = vsel %vm556, %v3823, 0.0
    %3916 = vadd.xlane.f32.xlu0 %v3915
    %v3917 = vpop.xlane.xlu0 %3916
    %v3918 = vsel %vm556, %v3824, 0.0
    %3919 = vadd.xlane.f32.xlu0 %v3918
    %v3920 = vpop.xlane.xlu0 %3919
    %v3921 = vsel %vm556, %v3825, 0.0
    %3922 = vadd.xlane.f32.xlu0 %v3921
    %v3923 = vpop.xlane.xlu0 %3922
    %v3924 = vsel %vm556, %v3826, 0.0
    %3925 = vadd.xlane.f32.xlu0 %v3924
    %v3926 = vpop.xlane.xlu0 %3925
    %v3927 = vsel %vm556, %v3827, 0.0
    %3928 = vadd.xlane.f32.xlu0 %v3927
    %v3929 = vpop.xlane.xlu0 %3928
    %v3930 = vsel %vm556, %v3828, 0.0
    %3931 = vadd.xlane.f32.xlu0 %v3930
    %v3932 = vpop.xlane.xlu0 %3931
    %v3933 = vsel %vm556, %v3829, 0.0
    %3934 = vadd.xlane.f32.xlu0 %v3933
    %v3935 = vpop.xlane.xlu0 %3934
    %v3936 = vsel %vm556, %v3830, 0.0
    %3937 = vadd.xlane.f32.xlu0 %v3936
    %v3938 = vpop.xlane.xlu0 %3937
    %v3939 = vsel %vm556, %v3831, 0.0
    %3940 = vadd.xlane.f32.xlu0 %v3939
    %v3941 = vpop.xlane.xlu0 %3940
    %v3942 = vsel %vm556, %v3832, 0.0
    %3943 = vadd.xlane.f32.xlu0 %v3942
    %v3944 = vpop.xlane.xlu0 %3943
    %v3945 = vsel %vm556, %v3833, 0.0
    %3946 = vadd.xlane.f32.xlu0 %v3945
    %v3947 = vpop.xlane.xlu0 %3946
    %v3948 = vsel %vm556, %v3834, 0.0
    %3949 = vadd.xlane.f32.xlu0 %v3948
    %v3950 = vpop.xlane.xlu0 %3949
    %v3951 = vsel %vm556, %v3835, 0.0
    %3952 = vadd.xlane.f32.xlu0 %v3951
    %v3953 = vpop.xlane.xlu0 %3952
    %v3954 = vsel %vm556, %v3836, 0.0
    %3955 = vadd.xlane.f32.xlu0 %v3954
    %v3956 = vpop.xlane.xlu0 %3955
    %v3957 = vsel %vm556, %v3837, 0.0
    %3958 = vadd.xlane.f32.xlu0 %v3957
    %v3959 = vpop.xlane.xlu0 %3958
    %v3960 = vsel %vm556, %v3838, 0.0
    %3961 = vadd.xlane.f32.xlu0 %v3960
    %v3962 = vpop.xlane.xlu0 %3961
    %v3963 = vsel %vm556, %v3839, 0.0
    %3964 = vadd.xlane.f32.xlu0 %v3963
    %v3965 = vpop.xlane.xlu0 %3964
    %v3966 = vsel %vm556, %v3840, 0.0
    %3967 = vadd.xlane.f32.xlu0 %v3966
    %v3968 = vpop.xlane.xlu0 %3967
    %v3969 = vsel %vm556, %v3841, 0.0
    %3970 = vadd.xlane.f32.xlu0 %v3969
    %v3971 = vpop.xlane.xlu0 %3970
    %v3972 = vsel %vm556, %v3842, 0.0
    %3973 = vadd.xlane.f32.xlu0 %v3972
    %v3974 = vpop.xlane.xlu0 %3973
    %v3975 = vsel %vm556, %v3843, 0.0
    %3976 = vadd.xlane.f32.xlu0 %v3975
    %v3977 = vpop.xlane.xlu0 %3976
    %v3978 = vsel %vm556, %v3844, 0.0
    %3979 = vadd.xlane.f32.xlu0 %v3978
    %v3980 = vpop.xlane.xlu0 %3979
    %v3981 = vsel %vm556, %v3845, 0.0
    %3982 = vadd.xlane.f32.xlu0 %v3981
    %v3983 = vpop.xlane.xlu0 %3982
    %v3984 = vsel %vm556, %v3846, 0.0
    %3985 = vadd.xlane.f32.xlu0 %v3984
    %v3986 = vpop.xlane.xlu0 %3985
    %v3987 = vsel %vm556, %v3847, 0.0
    %3988 = vadd.xlane.f32.xlu0 %v3987
    %v3989 = vpop.xlane.xlu0 %3988
    %v3990 = vsel %vm556, %v3848, 0.0
    %3991 = vadd.xlane.f32.xlu0 %v3990
    %v3992 = vpop.xlane.xlu0 %3991
    %v3993 = vsel %vm556, %v3849, 0.0
    %3994 = vadd.xlane.f32.xlu0 %v3993
    %v3995 = vpop.xlane.xlu0 %3994
    %v3996 = vsel %vm556, %v3850, 0.0
    %3997 = vadd.xlane.f32.xlu0 %v3996
    %v3998 = vpop.xlane.xlu0 %3997
    %v3999 = vsel %vm556, %v3851, 0.0
    %4000 = vadd.xlane.f32.xlu0 %v3999
    %v4001 = vpop.xlane.xlu0 %4000
    %v4002 = vsel %vm556, %v3852, 0.0
    %4003 = vadd.xlane.f32.xlu0 %v4002
    %v4004 = vpop.xlane.xlu0 %4003
    %v4005 = vsel %vm556, %v3853, 0.0
    %4006 = vadd.xlane.f32.xlu0 %v4005
    %v4007 = vpop.xlane.xlu0 %4006
    %v4008 = vsel %vm556, %v3854, 0.0
    %4009 = vadd.xlane.f32.xlu0 %v4008
    %v4010 = vpop.xlane.xlu0 %4009
    %v4011 = vsel %vm556, %v3855, 0.0
    %4012 = vadd.xlane.f32.xlu0 %v4011
    %v4013 = vpop.xlane.xlu0 %4012
    %v4014 = vsel %vm556, %v3856, 0.0
    %4015 = vadd.xlane.f32.xlu0 %v4014
    %v4016 = vpop.xlane.xlu0 %4015
    %v4017 = vsel %vm556, %v3857, 0.0
    %4018 = vadd.xlane.f32.xlu0 %v4017
    %v4019 = vpop.xlane.xlu0 %4018
    %v4020 = vsel %vm556, %v3858, 0.0
    %4021 = vadd.xlane.f32.xlu0 %v4020
    %v4022 = vpop.xlane.xlu0 %4021
    %v4023 = vsel %vm556, %v3859, 0.0
    %4024 = vadd.xlane.f32.xlu0 %v4023
    %v4025 = vpop.xlane.xlu0 %4024
    %v4026 = vsel %vm556, %v3860, 0.0
    %4027 = vadd.xlane.f32.xlu0 %v4026
    %v4028 = vpop.xlane.xlu0 %4027
    %v4029 = vsel %vm556, %v3861, 0.0
    %4030 = vadd.xlane.f32.xlu0 %v4029
    %v4031 = vpop.xlane.xlu0 %4030
    %v4032 = vsel %vm556, %v3862, 0.0
    %4033 = vadd.xlane.f32.xlu0 %v4032
    %v4034 = vpop.xlane.xlu0 %4033
    %v4035 = vsel %vm556, %v3863, 0.0
    %4036 = vadd.xlane.f32.xlu0 %v4035
    %v4037 = vpop.xlane.xlu0 %4036
    %v4038 = vsel %vm556, %v3864, 0.0
    %4039 = vadd.xlane.f32.xlu0 %v4038
    %v4040 = vpop.xlane.xlu0 %4039
    %v4041 = vsel %vm556, %v3865, 0.0
    %4042 = vadd.xlane.f32.xlu0 %v4041
    %v4043 = vpop.xlane.xlu0 %4042
    %v4044 = vsel %vm556, %v3866, 0.0
    %4045 = vadd.xlane.f32.xlu0 %v4044
    %v4046 = vpop.xlane.xlu0 %4045
    %v4047 = vsel %vm556, %v3867, 0.0
    %4048 = vadd.xlane.f32.xlu0 %v4047
    %v4049 = vpop.xlane.xlu0 %4048
    %v4050 = vsel %vm556, %v3868, 0.0
    %4051 = vadd.xlane.f32.xlu0 %v4050
    %v4052 = vpop.xlane.xlu0 %4051
    %v4053 = vsel %vm556, %v3869, 0.0
    %4054 = vadd.xlane.f32.xlu0 %v4053
    %v4055 = vpop.xlane.xlu0 %4054
    %v4056 = vsel %vm556, %v3870, 0.0
    %4057 = vadd.xlane.f32.xlu0 %v4056
    %v4058 = vpop.xlane.xlu0 %4057
    %v4059 = vsel %vm556, %v3871, 0.0
    %4060 = vadd.xlane.f32.xlu0 %v4059
    %v4061 = vpop.xlane.xlu0 %4060
    %v4062 = vsel %vm556, %v3872, 0.0
    %4063 = vadd.xlane.f32.xlu0 %v4062
    %v4064 = vpop.xlane.xlu0 %4063
    %v4065 = vmul.f32 %v3875, 0.35355338
    %v4066 = vmul.f32 %v3878, 0.35355338
    %v4067 = vmul.f32 %v3881, 0.35355338
    %v4068 = vmul.f32 %v3884, 0.35355338
    %v4069 = vmul.f32 %v3887, 0.35355338
    %v4070 = vmul.f32 %v3890, 0.35355338
    %v4071 = vmul.f32 %v3893, 0.35355338
    %v4072 = vmul.f32 %v3896, 0.35355338
    %v4073 = vmul.f32 %v3899, 0.35355338
    %v4074 = vmul.f32 %v3902, 0.35355338
    %v4075 = vmul.f32 %v3905, 0.35355338
    %v4076 = vmul.f32 %v3908, 0.35355338
    %v4077 = vmul.f32 %v3911, 0.35355338
    %v4078 = vmul.f32 %v3914, 0.35355338
    %v4079 = vmul.f32 %v3917, 0.35355338
    %v4080 = vmul.f32 %v3920, 0.35355338
    %v4081 = vmul.f32 %v3923, 0.35355338
    %v4082 = vmul.f32 %v3926, 0.35355338
    %v4083 = vmul.f32 %v3929, 0.35355338
    %v4084 = vmul.f32 %v3932, 0.35355338
    %v4085 = vmul.f32 %v3935, 0.35355338
    %v4086 = vmul.f32 %v3938, 0.35355338
    %v4087 = vmul.f32 %v3941, 0.35355338
    %v4088 = vmul.f32 %v3944, 0.35355338
    %v4089 = vmul.f32 %v3947, 0.35355338
    %v4090 = vmul.f32 %v3950, 0.35355338
    %v4091 = vmul.f32 %v3953, 0.35355338
    %v4092 = vmul.f32 %v3956, 0.35355338
    %v4093 = vmul.f32 %v3959, 0.35355338
    %v4094 = vmul.f32 %v3962, 0.35355338
    %v4095 = vmul.f32 %v3965, 0.35355338
    %v4096 = vmul.f32 %v3968, 0.35355338
    %v4097 = vmul.f32 %v3971, 0.35355338
    %v4098 = vmul.f32 %v3974, 0.35355338
    %v4099 = vmul.f32 %v3977, 0.35355338
    %v4100 = vmul.f32 %v3980, 0.35355338
    %v4101 = vmul.f32 %v3983, 0.35355338
    %v4102 = vmul.f32 %v3986, 0.35355338
    %v4103 = vmul.f32 %v3989, 0.35355338
    %v4104 = vmul.f32 %v3992, 0.35355338
    %v4105 = vmul.f32 %v3995, 0.35355338
    %v4106 = vmul.f32 %v3998, 0.35355338
    %v4107 = vmul.f32 %v4001, 0.35355338
    %v4108 = vmul.f32 %v4004, 0.35355338
    %v4109 = vmul.f32 %v4007, 0.35355338
    %v4110 = vmul.f32 %v4010, 0.35355338
    %v4111 = vmul.f32 %v4013, 0.35355338
    %v4112 = vmul.f32 %v4016, 0.35355338
    %v4113 = vmul.f32 %v4019, 0.35355338
    %v4114 = vmul.f32 %v4022, 0.35355338
    %v4115 = vmul.f32 %v4025, 0.35355338
    %v4116 = vmul.f32 %v4028, 0.35355338
    %v4117 = vmul.f32 %v4031, 0.35355338
    %v4118 = vmul.f32 %v4034, 0.35355338
    %v4119 = vmul.f32 %v4037, 0.35355338
    %v4120 = vmul.f32 %v4040, 0.35355338
    %v4121 = vmul.f32 %v4043, 0.35355338
    %v4122 = vmul.f32 %v4046, 0.35355338
    %v4123 = vmul.f32 %v4049, 0.35355338
    %v4124 = vmul.f32 %v4052, 0.35355338
    %v4125 = vmul.f32 %v4055, 0.35355338
    %v4126 = vmul.f32 %v4058, 0.35355338
    %v4127 = vmul.f32 %v4061, 0.35355338
    %v4128 = vmul.f32 %v4064, 0.35355338
    %v4129 = vadd.f32 %v4065, %v818
    %v4130 = vadd.f32 %v4066, %v818
    %v4131 = vadd.f32 %v4067, %v818
    %v4132 = vadd.f32 %v4068, %v818
    %v4133 = vadd.f32 %v4069, %v818
    %v4134 = vadd.f32 %v4070, %v818
    %v4135 = vadd.f32 %v4071, %v818
    %v4136 = vadd.f32 %v4072, %v818
    %v4137 = vadd.f32 %v4073, %v818
    %v4138 = vadd.f32 %v4074, %v818
    %v4139 = vadd.f32 %v4075, %v818
    %v4140 = vadd.f32 %v4076, %v818
    %v4141 = vadd.f32 %v4077, %v818
    %v4142 = vadd.f32 %v4078, %v818
    %v4143 = vadd.f32 %v4079, %v818
    %v4144 = vadd.f32 %v4080, %v818
    %v4145 = vadd.f32 %v4081, %v818
    %v4146 = vadd.f32 %v4082, %v818
    %v4147 = vadd.f32 %v4083, %v818
    %v4148 = vadd.f32 %v4084, %v818
    %v4149 = vadd.f32 %v4085, %v818
    %v4150 = vadd.f32 %v4086, %v818
    %v4151 = vadd.f32 %v4087, %v818
    %v4152 = vadd.f32 %v4088, %v818
    %v4153 = vadd.f32 %v4089, %v818
    %v4154 = vadd.f32 %v4090, %v818
    %v4155 = vadd.f32 %v4091, %v818
    %v4156 = vadd.f32 %v4092, %v818
    %v4157 = vadd.f32 %v4093, %v818
    %v4158 = vadd.f32 %v4094, %v818
    %v4159 = vadd.f32 %v4095, %v818
    %v4160 = vadd.f32 %v4096, %v818
    %v4161 = vadd.f32 %v4097, %v824
    %v4162 = vadd.f32 %v4098, %v824
    %v4163 = vadd.f32 %v4099, %v824
    %v4164 = vadd.f32 %v4100, %v824
    %v4165 = vadd.f32 %v4101, %v824
    %v4166 = vadd.f32 %v4102, %v824
    %v4167 = vadd.f32 %v4103, %v824
    %v4168 = vadd.f32 %v4104, %v824
    %v4169 = vadd.f32 %v4105, %v824
    %v4170 = vadd.f32 %v4106, %v824
    %v4171 = vadd.f32 %v4107, %v824
    %v4172 = vadd.f32 %v4108, %v824
    %v4173 = vadd.f32 %v4109, %v824
    %v4174 = vadd.f32 %v4110, %v824
    %v4175 = vadd.f32 %v4111, %v824
    %v4176 = vadd.f32 %v4112, %v824
    %v4177 = vadd.f32 %v4113, %v824
    %v4178 = vadd.f32 %v4114, %v824
    %v4179 = vadd.f32 %v4115, %v824
    %v4180 = vadd.f32 %v4116, %v824
    %v4181 = vadd.f32 %v4117, %v824
    %v4182 = vadd.f32 %v4118, %v824
    %v4183 = vadd.f32 %v4119, %v824
    %v4184 = vadd.f32 %v4120, %v824
    %v4185 = vadd.f32 %v4121, %v824
    %v4186 = vadd.f32 %v4122, %v824
    %v4187 = vadd.f32 %v4123, %v824
    %v4188 = vadd.f32 %v4124, %v824
    %v4189 = vadd.f32 %v4125, %v824
    %v4190 = vadd.f32 %v4126, %v824
    %v4191 = vadd.f32 %v4127, %v824
    %v4192 = vadd.f32 %v4128, %v824
    %4257 = vset.pattern.permute.xlu0 0
    %4258 = vperm.xlu0 %4257, %v4129
    %v4259 = vpop.permute.xlu0 %4258
    %4260 = vset.pattern.permute.xlu0 0
    %4261 = vperm.xlu0 %4260, %v4130
    %v4262 = vpop.permute.xlu0 %4261
    %4263 = vset.pattern.permute.xlu0 0
    %4264 = vperm.xlu0 %4263, %v4131
    %v4265 = vpop.permute.xlu0 %4264
    %4266 = vset.pattern.permute.xlu0 0
    %4267 = vperm.xlu0 %4266, %v4132
    %v4268 = vpop.permute.xlu0 %4267
    %4269 = vset.pattern.permute.xlu0 0
    %4270 = vperm.xlu0 %4269, %v4133
    %v4271 = vpop.permute.xlu0 %4270
    %4272 = vset.pattern.permute.xlu0 0
    %4273 = vperm.xlu0 %4272, %v4134
    %v4274 = vpop.permute.xlu0 %4273
    %4275 = vset.pattern.permute.xlu0 0
    %4276 = vperm.xlu0 %4275, %v4135
    %v4277 = vpop.permute.xlu0 %4276
    %4278 = vset.pattern.permute.xlu0 0
    %4279 = vperm.xlu0 %4278, %v4136
    %v4280 = vpop.permute.xlu0 %4279
    %4281 = vset.pattern.permute.xlu0 0
    %4282 = vperm.xlu0 %4281, %v4137
    %v4283 = vpop.permute.xlu0 %4282
    %4284 = vset.pattern.permute.xlu0 0
    %4285 = vperm.xlu0 %4284, %v4138
    %v4286 = vpop.permute.xlu0 %4285
    %4287 = vset.pattern.permute.xlu0 0
    %4288 = vperm.xlu0 %4287, %v4139
    %v4289 = vpop.permute.xlu0 %4288
    %4290 = vset.pattern.permute.xlu0 0
    %4291 = vperm.xlu0 %4290, %v4140
    %v4292 = vpop.permute.xlu0 %4291
    %4293 = vset.pattern.permute.xlu0 0
    %4294 = vperm.xlu0 %4293, %v4141
    %v4295 = vpop.permute.xlu0 %4294
    %4296 = vset.pattern.permute.xlu0 0
    %4297 = vperm.xlu0 %4296, %v4142
    %v4298 = vpop.permute.xlu0 %4297
    %4299 = vset.pattern.permute.xlu0 0
    %4300 = vperm.xlu0 %4299, %v4143
    %v4301 = vpop.permute.xlu0 %4300
    %4302 = vset.pattern.permute.xlu0 0
    %4303 = vperm.xlu0 %4302, %v4144
    %v4304 = vpop.permute.xlu0 %4303
    %4305 = vset.pattern.permute.xlu0 0
    %4306 = vperm.xlu0 %4305, %v4145
    %v4307 = vpop.permute.xlu0 %4306
    %4308 = vset.pattern.permute.xlu0 0
    %4309 = vperm.xlu0 %4308, %v4146
    %v4310 = vpop.permute.xlu0 %4309
    %4311 = vset.pattern.permute.xlu0 0
    %4312 = vperm.xlu0 %4311, %v4147
    %v4313 = vpop.permute.xlu0 %4312
    %4314 = vset.pattern.permute.xlu0 0
    %4315 = vperm.xlu0 %4314, %v4148
    %v4316 = vpop.permute.xlu0 %4315
    %4317 = vset.pattern.permute.xlu0 0
    %4318 = vperm.xlu0 %4317, %v4149
    %v4319 = vpop.permute.xlu0 %4318
    %4320 = vset.pattern.permute.xlu0 0
    %4321 = vperm.xlu0 %4320, %v4150
    %v4322 = vpop.permute.xlu0 %4321
    %4323 = vset.pattern.permute.xlu0 0
    %4324 = vperm.xlu0 %4323, %v4151
    %v4325 = vpop.permute.xlu0 %4324
    %4326 = vset.pattern.permute.xlu0 0
    %4327 = vperm.xlu0 %4326, %v4152
    %v4328 = vpop.permute.xlu0 %4327
    %4329 = vset.pattern.permute.xlu0 0
    %4330 = vperm.xlu0 %4329, %v4153
    %v4331 = vpop.permute.xlu0 %4330
    %4332 = vset.pattern.permute.xlu0 0
    %4333 = vperm.xlu0 %4332, %v4154
    %v4334 = vpop.permute.xlu0 %4333
    %4335 = vset.pattern.permute.xlu0 0
    %4336 = vperm.xlu0 %4335, %v4155
    %v4337 = vpop.permute.xlu0 %4336
    %4338 = vset.pattern.permute.xlu0 0
    %4339 = vperm.xlu0 %4338, %v4156
    %v4340 = vpop.permute.xlu0 %4339
    %4341 = vset.pattern.permute.xlu0 0
    %4342 = vperm.xlu0 %4341, %v4157
    %v4343 = vpop.permute.xlu0 %4342
    %4344 = vset.pattern.permute.xlu0 0
    %4345 = vperm.xlu0 %4344, %v4158
    %v4346 = vpop.permute.xlu0 %4345
    %4347 = vset.pattern.permute.xlu0 0
    %4348 = vperm.xlu0 %4347, %v4159
    %v4349 = vpop.permute.xlu0 %4348
    %4350 = vset.pattern.permute.xlu0 0
    %4351 = vperm.xlu0 %4350, %v4160
    %v4352 = vpop.permute.xlu0 %4351
    %4353 = vset.pattern.permute.xlu0 0
    %4354 = vperm.xlu0 %4353, %v4161
    %v4355 = vpop.permute.xlu0 %4354
    %4356 = vset.pattern.permute.xlu0 0
    %4357 = vperm.xlu0 %4356, %v4162
    %v4358 = vpop.permute.xlu0 %4357
    %4359 = vset.pattern.permute.xlu0 0
    %4360 = vperm.xlu0 %4359, %v4163
    %v4361 = vpop.permute.xlu0 %4360
    %4362 = vset.pattern.permute.xlu0 0
    %4363 = vperm.xlu0 %4362, %v4164
    %v4364 = vpop.permute.xlu0 %4363
    %4365 = vset.pattern.permute.xlu0 0
    %4366 = vperm.xlu0 %4365, %v4165
    %v4367 = vpop.permute.xlu0 %4366
    %4368 = vset.pattern.permute.xlu0 0
    %4369 = vperm.xlu0 %4368, %v4166
    %v4370 = vpop.permute.xlu0 %4369
    %4371 = vset.pattern.permute.xlu0 0
    %4372 = vperm.xlu0 %4371, %v4167
    %v4373 = vpop.permute.xlu0 %4372
    %4374 = vset.pattern.permute.xlu0 0
    %4375 = vperm.xlu0 %4374, %v4168
    %v4376 = vpop.permute.xlu0 %4375
    %4377 = vset.pattern.permute.xlu0 0
    %4378 = vperm.xlu0 %4377, %v4169
    %v4379 = vpop.permute.xlu0 %4378
    %4380 = vset.pattern.permute.xlu0 0
    %4381 = vperm.xlu0 %4380, %v4170
    %v4382 = vpop.permute.xlu0 %4381
    %4383 = vset.pattern.permute.xlu0 0
    %4384 = vperm.xlu0 %4383, %v4171
    %v4385 = vpop.permute.xlu0 %4384
    %4386 = vset.pattern.permute.xlu0 0
    %4387 = vperm.xlu0 %4386, %v4172
    %v4388 = vpop.permute.xlu0 %4387
    %4389 = vset.pattern.permute.xlu0 0
    %4390 = vperm.xlu0 %4389, %v4173
    %v4391 = vpop.permute.xlu0 %4390
    %4392 = vset.pattern.permute.xlu0 0
    %4393 = vperm.xlu0 %4392, %v4174
    %v4394 = vpop.permute.xlu0 %4393
    %4395 = vset.pattern.permute.xlu0 0
    %4396 = vperm.xlu0 %4395, %v4175
    %v4397 = vpop.permute.xlu0 %4396
    %4398 = vset.pattern.permute.xlu0 0
    %4399 = vperm.xlu0 %4398, %v4176
    %v4400 = vpop.permute.xlu0 %4399
    %4401 = vset.pattern.permute.xlu0 0
    %4402 = vperm.xlu0 %4401, %v4177
    %v4403 = vpop.permute.xlu0 %4402
    %4404 = vset.pattern.permute.xlu0 0
    %4405 = vperm.xlu0 %4404, %v4178
    %v4406 = vpop.permute.xlu0 %4405
    %4407 = vset.pattern.permute.xlu0 0
    %4408 = vperm.xlu0 %4407, %v4179
    %v4409 = vpop.permute.xlu0 %4408
    %4410 = vset.pattern.permute.xlu0 0
    %4411 = vperm.xlu0 %4410, %v4180
    %v4412 = vpop.permute.xlu0 %4411
    %4413 = vset.pattern.permute.xlu0 0
    %4414 = vperm.xlu0 %4413, %v4181
    %v4415 = vpop.permute.xlu0 %4414
    %4416 = vset.pattern.permute.xlu0 0
    %4417 = vperm.xlu0 %4416, %v4182
    %v4418 = vpop.permute.xlu0 %4417
    %4419 = vset.pattern.permute.xlu0 0
    %4420 = vperm.xlu0 %4419, %v4183
    %v4421 = vpop.permute.xlu0 %4420
    %4422 = vset.pattern.permute.xlu0 0
    %4423 = vperm.xlu0 %4422, %v4184
    %v4424 = vpop.permute.xlu0 %4423
    %4425 = vset.pattern.permute.xlu0 0
    %4426 = vperm.xlu0 %4425, %v4185
    %v4427 = vpop.permute.xlu0 %4426
    %4428 = vset.pattern.permute.xlu0 0
    %4429 = vperm.xlu0 %4428, %v4186
    %v4430 = vpop.permute.xlu0 %4429
    %4431 = vset.pattern.permute.xlu0 0
    %4432 = vperm.xlu0 %4431, %v4187
    %v4433 = vpop.permute.xlu0 %4432
    %4434 = vset.pattern.permute.xlu0 0
    %4435 = vperm.xlu0 %4434, %v4188
    %v4436 = vpop.permute.xlu0 %4435
    %4437 = vset.pattern.permute.xlu0 0
    %4438 = vperm.xlu0 %4437, %v4189
    %v4439 = vpop.permute.xlu0 %4438
    %4440 = vset.pattern.permute.xlu0 0
    %4441 = vperm.xlu0 %4440, %v4190
    %v4442 = vpop.permute.xlu0 %4441
    %4443 = vset.pattern.permute.xlu0 0
    %4444 = vperm.xlu0 %4443, %v4191
    %v4445 = vpop.permute.xlu0 %4444
    %4446 = vset.pattern.permute.xlu0 0
    %4447 = vperm.xlu0 %4446, %v4192
    %v4448 = vpop.permute.xlu0 %4447
    %v4449 = vperm.slane %v4259, %v41
    %v4450 = vperm.slane %v4262, %v41
    %v4451 = vperm.slane %v4265, %v41
    %v4452 = vperm.slane %v4268, %v41
    %v4453 = vperm.slane %v4271, %v41
    %v4454 = vperm.slane %v4274, %v41
    %v4455 = vperm.slane %v4277, %v41
    %v4456 = vperm.slane %v4280, %v41
    %v4457 = vperm.slane %v4283, %v41
    %v4458 = vperm.slane %v4286, %v41
    %v4459 = vperm.slane %v4289, %v41
    %v4460 = vperm.slane %v4292, %v41
    %v4461 = vperm.slane %v4295, %v41
    %v4462 = vperm.slane %v4298, %v41
    %v4463 = vperm.slane %v4301, %v41
    %v4464 = vperm.slane %v4304, %v41
    %v4465 = vperm.slane %v4307, %v41
    %v4466 = vperm.slane %v4310, %v41
    %v4467 = vperm.slane %v4313, %v41
    %v4468 = vperm.slane %v4316, %v41
    %v4469 = vperm.slane %v4319, %v41
    %v4470 = vperm.slane %v4322, %v41
    %v4471 = vperm.slane %v4325, %v41
    %v4472 = vperm.slane %v4328, %v41
    %v4473 = vperm.slane %v4331, %v41
    %v4474 = vperm.slane %v4334, %v41
    %v4475 = vperm.slane %v4337, %v41
    %v4476 = vperm.slane %v4340, %v41
    %v4477 = vperm.slane %v4343, %v41
    %v4478 = vperm.slane %v4346, %v41
    %v4479 = vperm.slane %v4349, %v41
    %v4480 = vperm.slane %v4352, %v41
    %v4481 = vperm.slane %v4355, %v41
    %v4482 = vperm.slane %v4358, %v41
    %v4483 = vperm.slane %v4361, %v41
    %v4484 = vperm.slane %v4364, %v41
    %v4485 = vperm.slane %v4367, %v41
    %v4486 = vperm.slane %v4370, %v41
    %v4487 = vperm.slane %v4373, %v41
    %v4488 = vperm.slane %v4376, %v41
    %v4489 = vperm.slane %v4379, %v41
    %v4490 = vperm.slane %v4382, %v41
    %v4491 = vperm.slane %v4385, %v41
    %v4492 = vperm.slane %v4388, %v41
    %v4493 = vperm.slane %v4391, %v41
    %v4494 = vperm.slane %v4394, %v41
    %v4495 = vperm.slane %v4397, %v41
    %v4496 = vperm.slane %v4400, %v41
    %v4497 = vperm.slane %v4403, %v41
    %v4498 = vperm.slane %v4406, %v41
    %v4499 = vperm.slane %v4409, %v41
    %v4500 = vperm.slane %v4412, %v41
    %v4501 = vperm.slane %v4415, %v41
    %v4502 = vperm.slane %v4418, %v41
    %v4503 = vperm.slane %v4421, %v41
    %v4504 = vperm.slane %v4424, %v41
    %v4505 = vperm.slane %v4427, %v41
    %v4506 = vperm.slane %v4430, %v41
    %v4507 = vperm.slane %v4433, %v41
    %v4508 = vperm.slane %v4436, %v41
    %v4509 = vperm.slane %v4439, %v41
    %v4510 = vperm.slane %v4442, %v41
    %v4511 = vperm.slane %v4445, %v41
    %v4512 = vperm.slane %v4448, %v41
    %v4513 = vsel %vm1211, %v4450, %v4449
    %v4514 = vsel %vm1213, %v4451, %v4513
    %v4515 = vsel %vm1215, %v4452, %v4514
    %v4516 = vsel %vm1217, %v4453, %v4515
    %v4517 = vsel %vm1219, %v4454, %v4516
    %v4518 = vsel %vm1221, %v4455, %v4517
    %v4519 = vsel %vm1223, %v4456, %v4518
    %v4520 = vsel %vm1211, %v4458, %v4457
    %v4521 = vsel %vm1213, %v4459, %v4520
    %v4522 = vsel %vm1215, %v4460, %v4521
    %v4523 = vsel %vm1217, %v4461, %v4522
    %v4524 = vsel %vm1219, %v4462, %v4523
    %v4525 = vsel %vm1221, %v4463, %v4524
    %v4526 = vsel %vm1223, %v4464, %v4525
    %v4527 = vsel %vm1211, %v4466, %v4465
    %v4528 = vsel %vm1213, %v4467, %v4527
    %v4529 = vsel %vm1215, %v4468, %v4528
    %v4530 = vsel %vm1217, %v4469, %v4529
    %v4531 = vsel %vm1219, %v4470, %v4530
    %v4532 = vsel %vm1221, %v4471, %v4531
    %v4533 = vsel %vm1223, %v4472, %v4532
    %v4534 = vsel %vm1211, %v4474, %v4473
    %v4535 = vsel %vm1213, %v4475, %v4534
    %v4536 = vsel %vm1215, %v4476, %v4535
    %v4537 = vsel %vm1217, %v4477, %v4536
    %v4538 = vsel %vm1219, %v4478, %v4537
    %v4539 = vsel %vm1221, %v4479, %v4538
    %v4540 = vsel %vm1223, %v4480, %v4539
    %v4541 = vsel %vm1211, %v4482, %v4481
    %v4542 = vsel %vm1213, %v4483, %v4541
    %v4543 = vsel %vm1215, %v4484, %v4542
    %v4544 = vsel %vm1217, %v4485, %v4543
    %v4545 = vsel %vm1219, %v4486, %v4544
    %v4546 = vsel %vm1221, %v4487, %v4545
    %v4547 = vsel %vm1223, %v4488, %v4546
    %v4548 = vsel %vm1211, %v4490, %v4489
    %v4549 = vsel %vm1213, %v4491, %v4548
    %v4550 = vsel %vm1215, %v4492, %v4549
    %v4551 = vsel %vm1217, %v4493, %v4550
    %v4552 = vsel %vm1219, %v4494, %v4551
    %v4553 = vsel %vm1221, %v4495, %v4552
    %v4554 = vsel %vm1223, %v4496, %v4553
    %v4555 = vsel %vm1211, %v4498, %v4497
    %v4556 = vsel %vm1213, %v4499, %v4555
    %v4557 = vsel %vm1215, %v4500, %v4556
    %v4558 = vsel %vm1217, %v4501, %v4557
    %v4559 = vsel %vm1219, %v4502, %v4558
    %v4560 = vsel %vm1221, %v4503, %v4559
    %v4561 = vsel %vm1223, %v4504, %v4560
    %v4562 = vsel %vm1211, %v4506, %v4505
    %v4563 = vsel %vm1213, %v4507, %v4562
    %v4564 = vsel %vm1215, %v4508, %v4563
    %v4565 = vsel %vm1217, %v4509, %v4564
    %v4566 = vsel %vm1219, %v4510, %v4565
    %v4567 = vsel %vm1221, %v4511, %v4566
    %v4568 = vsel %vm1223, %v4512, %v4567
    %v4577 = vsel %vm556, %v4519, -inf
    %4578 = vmax.xlane.f32.xlu0 %v4577
    %v4579 = vpop.xlane.xlu0 %4578
    %v4580 = vsel %vm556, %v4526, -inf
    %4581 = vmax.xlane.f32.xlu0 %v4580
    %v4582 = vpop.xlane.xlu0 %4581
    %v4583 = vsel %vm556, %v4533, -inf
    %4584 = vmax.xlane.f32.xlu0 %v4583
    %v4585 = vpop.xlane.xlu0 %4584
    %v4586 = vsel %vm556, %v4540, -inf
    %4587 = vmax.xlane.f32.xlu0 %v4586
    %v4588 = vpop.xlane.xlu0 %4587
    %v4589 = vsel %vm556, %v4547, -inf
    %4590 = vmax.xlane.f32.xlu0 %v4589
    %v4591 = vpop.xlane.xlu0 %4590
    %v4592 = vsel %vm556, %v4554, -inf
    %4593 = vmax.xlane.f32.xlu0 %v4592
    %v4594 = vpop.xlane.xlu0 %4593
    %v4595 = vsel %vm556, %v4561, -inf
    %4596 = vmax.xlane.f32.xlu0 %v4595
    %v4597 = vpop.xlane.xlu0 %4596
    %v4598 = vsel %vm556, %v4568, -inf
    %4599 = vmax.xlane.f32.xlu0 %v4598
    %v4600 = vpop.xlane.xlu0 %4599
    %v4609 = vperm.slane %v4579, 0
    %v4610 = vperm.slane %v4579, 1
    %v4611 = vperm.slane %v4579, 2
    %v4612 = vperm.slane %v4579, 3
    %v4613 = vperm.slane %v4579, 4
    %v4614 = vperm.slane %v4579, 5
    %v4615 = vperm.slane %v4579, 6
    %v4616 = vperm.slane %v4579, 7
    %v4617 = vperm.slane %v4582, 0
    %v4618 = vperm.slane %v4582, 1
    %v4619 = vperm.slane %v4582, 2
    %v4620 = vperm.slane %v4582, 3
    %v4621 = vperm.slane %v4582, 4
    %v4622 = vperm.slane %v4582, 5
    %v4623 = vperm.slane %v4582, 6
    %v4624 = vperm.slane %v4582, 7
    %v4625 = vperm.slane %v4585, 0
    %v4626 = vperm.slane %v4585, 1
    %v4627 = vperm.slane %v4585, 2
    %v4628 = vperm.slane %v4585, 3
    %v4629 = vperm.slane %v4585, 4
    %v4630 = vperm.slane %v4585, 5
    %v4631 = vperm.slane %v4585, 6
    %v4632 = vperm.slane %v4585, 7
    %v4633 = vperm.slane %v4588, 0
    %v4634 = vperm.slane %v4588, 1
    %v4635 = vperm.slane %v4588, 2
    %v4636 = vperm.slane %v4588, 3
    %v4637 = vperm.slane %v4588, 4
    %v4638 = vperm.slane %v4588, 5
    %v4639 = vperm.slane %v4588, 6
    %v4640 = vperm.slane %v4588, 7
    %v4641 = vperm.slane %v4591, 0
    %v4642 = vperm.slane %v4591, 1
    %v4643 = vperm.slane %v4591, 2
    %v4644 = vperm.slane %v4591, 3
    %v4645 = vperm.slane %v4591, 4
    %v4646 = vperm.slane %v4591, 5
    %v4647 = vperm.slane %v4591, 6
    %v4648 = vperm.slane %v4591, 7
    %v4649 = vperm.slane %v4594, 0
    %v4650 = vperm.slane %v4594, 1
    %v4651 = vperm.slane %v4594, 2
    %v4652 = vperm.slane %v4594, 3
    %v4653 = vperm.slane %v4594, 4
    %v4654 = vperm.slane %v4594, 5
    %v4655 = vperm.slane %v4594, 6
    %v4656 = vperm.slane %v4594, 7
    %v4657 = vperm.slane %v4597, 0
    %v4658 = vperm.slane %v4597, 1
    %v4659 = vperm.slane %v4597, 2
    %v4660 = vperm.slane %v4597, 3
    %v4661 = vperm.slane %v4597, 4
    %v4662 = vperm.slane %v4597, 5
    %v4663 = vperm.slane %v4597, 6
    %v4664 = vperm.slane %v4597, 7
    %v4665 = vperm.slane %v4600, 0
    %v4666 = vperm.slane %v4600, 1
    %v4667 = vperm.slane %v4600, 2
    %v4668 = vperm.slane %v4600, 3
    %v4669 = vperm.slane %v4600, 4
    %v4670 = vperm.slane %v4600, 5
    %v4671 = vperm.slane %v4600, 6
    %v4672 = vperm.slane %v4600, 7
    %v4737 = vsub.f32 %v4129, %v4609
    %v4738 = vsub.f32 %v4130, %v4610
    %v4739 = vsub.f32 %v4131, %v4611
    %v4740 = vsub.f32 %v4132, %v4612
    %v4741 = vsub.f32 %v4133, %v4613
    %v4742 = vsub.f32 %v4134, %v4614
    %v4743 = vsub.f32 %v4135, %v4615
    %v4744 = vsub.f32 %v4136, %v4616
    %v4745 = vsub.f32 %v4137, %v4617
    %v4746 = vsub.f32 %v4138, %v4618
    %v4747 = vsub.f32 %v4139, %v4619
    %v4748 = vsub.f32 %v4140, %v4620
    %v4749 = vsub.f32 %v4141, %v4621
    %v4750 = vsub.f32 %v4142, %v4622
    %v4751 = vsub.f32 %v4143, %v4623
    %v4752 = vsub.f32 %v4144, %v4624
    %v4753 = vsub.f32 %v4145, %v4625
    %v4754 = vsub.f32 %v4146, %v4626
    %v4755 = vsub.f32 %v4147, %v4627
    %v4756 = vsub.f32 %v4148, %v4628
    %v4757 = vsub.f32 %v4149, %v4629
    %v4758 = vsub.f32 %v4150, %v4630
    %v4759 = vsub.f32 %v4151, %v4631
    %v4760 = vsub.f32 %v4152, %v4632
    %v4761 = vsub.f32 %v4153, %v4633
    %v4762 = vsub.f32 %v4154, %v4634
    %v4763 = vsub.f32 %v4155, %v4635
    %v4764 = vsub.f32 %v4156, %v4636
    %v4765 = vsub.f32 %v4157, %v4637
    %v4766 = vsub.f32 %v4158, %v4638
    %v4767 = vsub.f32 %v4159, %v4639
    %v4768 = vsub.f32 %v4160, %v4640
    %v4769 = vsub.f32 %v4161, %v4641
    %v4770 = vsub.f32 %v4162, %v4642
    %v4771 = vsub.f32 %v4163, %v4643
    %v4772 = vsub.f32 %v4164, %v4644
    %v4773 = vsub.f32 %v4165, %v4645
    %v4774 = vsub.f32 %v4166, %v4646
    %v4775 = vsub.f32 %v4167, %v4647
    %v4776 = vsub.f32 %v4168, %v4648
    %v4777 = vsub.f32 %v4169, %v4649
    %v4778 = vsub.f32 %v4170, %v4650
    %v4779 = vsub.f32 %v4171, %v4651
    %v4780 = vsub.f32 %v4172, %v4652
    %v4781 = vsub.f32 %v4173, %v4653
    %v4782 = vsub.f32 %v4174, %v4654
    %v4783 = vsub.f32 %v4175, %v4655
    %v4784 = vsub.f32 %v4176, %v4656
    %v4785 = vsub.f32 %v4177, %v4657
    %v4786 = vsub.f32 %v4178, %v4658
    %v4787 = vsub.f32 %v4179, %v4659
    %v4788 = vsub.f32 %v4180, %v4660
    %v4789 = vsub.f32 %v4181, %v4661
    %v4790 = vsub.f32 %v4182, %v4662
    %v4791 = vsub.f32 %v4183, %v4663
    %v4792 = vsub.f32 %v4184, %v4664
    %v4793 = vsub.f32 %v4185, %v4665
    %v4794 = vsub.f32 %v4186, %v4666
    %v4795 = vsub.f32 %v4187, %v4667
    %v4796 = vsub.f32 %v4188, %v4668
    %v4797 = vsub.f32 %v4189, %v4669
    %v4798 = vsub.f32 %v4190, %v4670
    %v4799 = vsub.f32 %v4191, %v4671
    %v4800 = vsub.f32 %v4192, %v4672
    %v4801 = vmul.f32 %v4737, 1.442695
    %v4802 = vpow.pop %v4801
    %v4803 = vmul.f32 %v4738, 1.442695
    %v4804 = vpow.pop %v4803
    %v4805 = vmul.f32 %v4739, 1.442695
    %v4806 = vpow.pop %v4805
    %v4807 = vmul.f32 %v4740, 1.442695
    %v4808 = vpow.pop %v4807
    %v4809 = vmul.f32 %v4741, 1.442695
    %v4810 = vpow.pop %v4809
    %v4811 = vmul.f32 %v4742, 1.442695
    %v4812 = vpow.pop %v4811
    %v4813 = vmul.f32 %v4743, 1.442695
    %v4814 = vpow.pop %v4813
    %v4815 = vmul.f32 %v4744, 1.442695
    %v4816 = vpow.pop %v4815
    %v4817 = vmul.f32 %v4745, 1.442695
    %v4818 = vpow.pop %v4817
    %v4819 = vmul.f32 %v4746, 1.442695
    %v4820 = vpow.pop %v4819
    %v4821 = vmul.f32 %v4747, 1.442695
    %v4822 = vpow.pop %v4821
    %v4823 = vmul.f32 %v4748, 1.442695
    %v4824 = vpow.pop %v4823
    %v4825 = vmul.f32 %v4749, 1.442695
    %v4826 = vpow.pop %v4825
    %v4827 = vmul.f32 %v4750, 1.442695
    %v4828 = vpow.pop %v4827
    %v4829 = vmul.f32 %v4751, 1.442695
    %v4830 = vpow.pop %v4829
    %v4831 = vmul.f32 %v4752, 1.442695
    %v4832 = vpow.pop %v4831
    %v4833 = vmul.f32 %v4753, 1.442695
    %v4834 = vpow.pop %v4833
    %v4835 = vmul.f32 %v4754, 1.442695
    %v4836 = vpow.pop %v4835
    %v4837 = vmul.f32 %v4755, 1.442695
    %v4838 = vpow.pop %v4837
    %v4839 = vmul.f32 %v4756, 1.442695
    %v4840 = vpow.pop %v4839
    %v4841 = vmul.f32 %v4757, 1.442695
    %v4842 = vpow.pop %v4841
    %v4843 = vmul.f32 %v4758, 1.442695
    %v4844 = vpow.pop %v4843
    %v4845 = vmul.f32 %v4759, 1.442695
    %v4846 = vpow.pop %v4845
    %v4847 = vmul.f32 %v4760, 1.442695
    %v4848 = vpow.pop %v4847
    %v4849 = vmul.f32 %v4761, 1.442695
    %v4850 = vpow.pop %v4849
    %v4851 = vmul.f32 %v4762, 1.442695
    %v4852 = vpow.pop %v4851
    %v4853 = vmul.f32 %v4763, 1.442695
    %v4854 = vpow.pop %v4853
    %v4855 = vmul.f32 %v4764, 1.442695
    %v4856 = vpow.pop %v4855
    %v4857 = vmul.f32 %v4765, 1.442695
    %v4858 = vpow.pop %v4857
    %v4859 = vmul.f32 %v4766, 1.442695
    %v4860 = vpow.pop %v4859
    %v4861 = vmul.f32 %v4767, 1.442695
    %v4862 = vpow.pop %v4861
    %v4863 = vmul.f32 %v4768, 1.442695
    %v4864 = vpow.pop %v4863
    %v4865 = vmul.f32 %v4769, 1.442695
    %v4866 = vpow.pop %v4865
    %v4867 = vmul.f32 %v4770, 1.442695
    %v4868 = vpow.pop %v4867
    %v4869 = vmul.f32 %v4771, 1.442695
    %v4870 = vpow.pop %v4869
    %v4871 = vmul.f32 %v4772, 1.442695
    %v4872 = vpow.pop %v4871
    %v4873 = vmul.f32 %v4773, 1.442695
    %v4874 = vpow.pop %v4873
    %v4875 = vmul.f32 %v4774, 1.442695
    %v4876 = vpow.pop %v4875
    %v4877 = vmul.f32 %v4775, 1.442695
    %v4878 = vpow.pop %v4877
    %v4879 = vmul.f32 %v4776, 1.442695
    %v4880 = vpow.pop %v4879
    %v4881 = vmul.f32 %v4777, 1.442695
    %v4882 = vpow.pop %v4881
    %v4883 = vmul.f32 %v4778, 1.442695
    %v4884 = vpow.pop %v4883
    %v4885 = vmul.f32 %v4779, 1.442695
    %v4886 = vpow.pop %v4885
    %v4887 = vmul.f32 %v4780, 1.442695
    %v4888 = vpow.pop %v4887
    %v4889 = vmul.f32 %v4781, 1.442695
    %v4890 = vpow.pop %v4889
    %v4891 = vmul.f32 %v4782, 1.442695
    %v4892 = vpow.pop %v4891
    %v4893 = vmul.f32 %v4783, 1.442695
    %v4894 = vpow.pop %v4893
    %v4895 = vmul.f32 %v4784, 1.442695
    %v4896 = vpow.pop %v4895
    %v4897 = vmul.f32 %v4785, 1.442695
    %v4898 = vpow.pop %v4897
    %v4899 = vmul.f32 %v4786, 1.442695
    %v4900 = vpow.pop %v4899
    %v4901 = vmul.f32 %v4787, 1.442695
    %v4902 = vpow.pop %v4901
    %v4903 = vmul.f32 %v4788, 1.442695
    %v4904 = vpow.pop %v4903
    %v4905 = vmul.f32 %v4789, 1.442695
    %v4906 = vpow.pop %v4905
    %v4907 = vmul.f32 %v4790, 1.442695
    %v4908 = vpow.pop %v4907
    %v4909 = vmul.f32 %v4791, 1.442695
    %v4910 = vpow.pop %v4909
    %v4911 = vmul.f32 %v4792, 1.442695
    %v4912 = vpow.pop %v4911
    %v4913 = vmul.f32 %v4793, 1.442695
    %v4914 = vpow.pop %v4913
    %v4915 = vmul.f32 %v4794, 1.442695
    %v4916 = vpow.pop %v4915
    %v4917 = vmul.f32 %v4795, 1.442695
    %v4918 = vpow.pop %v4917
    %v4919 = vmul.f32 %v4796, 1.442695
    %v4920 = vpow.pop %v4919
    %v4921 = vmul.f32 %v4797, 1.442695
    %v4922 = vpow.pop %v4921
    %v4923 = vmul.f32 %v4798, 1.442695
    %v4924 = vpow.pop %v4923
    %v4925 = vmul.f32 %v4799, 1.442695
    %v4926 = vpow.pop %v4925
    %v4927 = vmul.f32 %v4800, 1.442695
    %v4928 = vpow.pop %v4927
    %4993 = vset.pattern.permute.xlu0 0
    %4994 = vperm.xlu0 %4993, %v4802
    %v4995 = vpop.permute.xlu0 %4994
    %4996 = vset.pattern.permute.xlu0 0
    %4997 = vperm.xlu0 %4996, %v4804
    %v4998 = vpop.permute.xlu0 %4997
    %4999 = vset.pattern.permute.xlu0 0
    %5000 = vperm.xlu0 %4999, %v4806
    %v5001 = vpop.permute.xlu0 %5000
    %5002 = vset.pattern.permute.xlu0 0
    %5003 = vperm.xlu0 %5002, %v4808
    %v5004 = vpop.permute.xlu0 %5003
    %5005 = vset.pattern.permute.xlu0 0
    %5006 = vperm.xlu0 %5005, %v4810
    %v5007 = vpop.permute.xlu0 %5006
    %5008 = vset.pattern.permute.xlu0 0
    %5009 = vperm.xlu0 %5008, %v4812
    %v5010 = vpop.permute.xlu0 %5009
    %5011 = vset.pattern.permute.xlu0 0
    %5012 = vperm.xlu0 %5011, %v4814
    %v5013 = vpop.permute.xlu0 %5012
    %5014 = vset.pattern.permute.xlu0 0
    %5015 = vperm.xlu0 %5014, %v4816
    %v5016 = vpop.permute.xlu0 %5015
    %5017 = vset.pattern.permute.xlu0 0
    %5018 = vperm.xlu0 %5017, %v4818
    %v5019 = vpop.permute.xlu0 %5018
    %5020 = vset.pattern.permute.xlu0 0
    %5021 = vperm.xlu0 %5020, %v4820
    %v5022 = vpop.permute.xlu0 %5021
    %5023 = vset.pattern.permute.xlu0 0
    %5024 = vperm.xlu0 %5023, %v4822
    %v5025 = vpop.permute.xlu0 %5024
    %5026 = vset.pattern.permute.xlu0 0
    %5027 = vperm.xlu0 %5026, %v4824
    %v5028 = vpop.permute.xlu0 %5027
    %5029 = vset.pattern.permute.xlu0 0
    %5030 = vperm.xlu0 %5029, %v4826
    %v5031 = vpop.permute.xlu0 %5030
    %5032 = vset.pattern.permute.xlu0 0
    %5033 = vperm.xlu0 %5032, %v4828
    %v5034 = vpop.permute.xlu0 %5033
    %5035 = vset.pattern.permute.xlu0 0
    %5036 = vperm.xlu0 %5035, %v4830
    %v5037 = vpop.permute.xlu0 %5036
    %5038 = vset.pattern.permute.xlu0 0
    %5039 = vperm.xlu0 %5038, %v4832
    %v5040 = vpop.permute.xlu0 %5039
    %5041 = vset.pattern.permute.xlu0 0
    %5042 = vperm.xlu0 %5041, %v4834
    %v5043 = vpop.permute.xlu0 %5042
    %5044 = vset.pattern.permute.xlu0 0
    %5045 = vperm.xlu0 %5044, %v4836
    %v5046 = vpop.permute.xlu0 %5045
    %5047 = vset.pattern.permute.xlu0 0
    %5048 = vperm.xlu0 %5047, %v4838
    %v5049 = vpop.permute.xlu0 %5048
    %5050 = vset.pattern.permute.xlu0 0
    %5051 = vperm.xlu0 %5050, %v4840
    %v5052 = vpop.permute.xlu0 %5051
    %5053 = vset.pattern.permute.xlu0 0
    %5054 = vperm.xlu0 %5053, %v4842
    %v5055 = vpop.permute.xlu0 %5054
    %5056 = vset.pattern.permute.xlu0 0
    %5057 = vperm.xlu0 %5056, %v4844
    %v5058 = vpop.permute.xlu0 %5057
    %5059 = vset.pattern.permute.xlu0 0
    %5060 = vperm.xlu0 %5059, %v4846
    %v5061 = vpop.permute.xlu0 %5060
    %5062 = vset.pattern.permute.xlu0 0
    %5063 = vperm.xlu0 %5062, %v4848
    %v5064 = vpop.permute.xlu0 %5063
    %5065 = vset.pattern.permute.xlu0 0
    %5066 = vperm.xlu0 %5065, %v4850
    %v5067 = vpop.permute.xlu0 %5066
    %5068 = vset.pattern.permute.xlu0 0
    %5069 = vperm.xlu0 %5068, %v4852
    %v5070 = vpop.permute.xlu0 %5069
    %5071 = vset.pattern.permute.xlu0 0
    %5072 = vperm.xlu0 %5071, %v4854
    %v5073 = vpop.permute.xlu0 %5072
    %5074 = vset.pattern.permute.xlu0 0
    %5075 = vperm.xlu0 %5074, %v4856
    %v5076 = vpop.permute.xlu0 %5075
    %5077 = vset.pattern.permute.xlu0 0
    %5078 = vperm.xlu0 %5077, %v4858
    %v5079 = vpop.permute.xlu0 %5078
    %5080 = vset.pattern.permute.xlu0 0
    %5081 = vperm.xlu0 %5080, %v4860
    %v5082 = vpop.permute.xlu0 %5081
    %5083 = vset.pattern.permute.xlu0 0
    %5084 = vperm.xlu0 %5083, %v4862
    %v5085 = vpop.permute.xlu0 %5084
    %5086 = vset.pattern.permute.xlu0 0
    %5087 = vperm.xlu0 %5086, %v4864
    %v5088 = vpop.permute.xlu0 %5087
    %5089 = vset.pattern.permute.xlu0 0
    %5090 = vperm.xlu0 %5089, %v4866
    %v5091 = vpop.permute.xlu0 %5090
    %5092 = vset.pattern.permute.xlu0 0
    %5093 = vperm.xlu0 %5092, %v4868
    %v5094 = vpop.permute.xlu0 %5093
    %5095 = vset.pattern.permute.xlu0 0
    %5096 = vperm.xlu0 %5095, %v4870
    %v5097 = vpop.permute.xlu0 %5096
    %5098 = vset.pattern.permute.xlu0 0
    %5099 = vperm.xlu0 %5098, %v4872
    %v5100 = vpop.permute.xlu0 %5099
    %5101 = vset.pattern.permute.xlu0 0
    %5102 = vperm.xlu0 %5101, %v4874
    %v5103 = vpop.permute.xlu0 %5102
    %5104 = vset.pattern.permute.xlu0 0
    %5105 = vperm.xlu0 %5104, %v4876
    %v5106 = vpop.permute.xlu0 %5105
    %5107 = vset.pattern.permute.xlu0 0
    %5108 = vperm.xlu0 %5107, %v4878
    %v5109 = vpop.permute.xlu0 %5108
    %5110 = vset.pattern.permute.xlu0 0
    %5111 = vperm.xlu0 %5110, %v4880
    %v5112 = vpop.permute.xlu0 %5111
    %5113 = vset.pattern.permute.xlu0 0
    %5114 = vperm.xlu0 %5113, %v4882
    %v5115 = vpop.permute.xlu0 %5114
    %5116 = vset.pattern.permute.xlu0 0
    %5117 = vperm.xlu0 %5116, %v4884
    %v5118 = vpop.permute.xlu0 %5117
    %5119 = vset.pattern.permute.xlu0 0
    %5120 = vperm.xlu0 %5119, %v4886
    %v5121 = vpop.permute.xlu0 %5120
    %5122 = vset.pattern.permute.xlu0 0
    %5123 = vperm.xlu0 %5122, %v4888
    %v5124 = vpop.permute.xlu0 %5123
    %5125 = vset.pattern.permute.xlu0 0
    %5126 = vperm.xlu0 %5125, %v4890
    %v5127 = vpop.permute.xlu0 %5126
    %5128 = vset.pattern.permute.xlu0 0
    %5129 = vperm.xlu0 %5128, %v4892
    %v5130 = vpop.permute.xlu0 %5129
    %5131 = vset.pattern.permute.xlu0 0
    %5132 = vperm.xlu0 %5131, %v4894
    %v5133 = vpop.permute.xlu0 %5132
    %5134 = vset.pattern.permute.xlu0 0
    %5135 = vperm.xlu0 %5134, %v4896
    %v5136 = vpop.permute.xlu0 %5135
    %5137 = vset.pattern.permute.xlu0 0
    %5138 = vperm.xlu0 %5137, %v4898
    %v5139 = vpop.permute.xlu0 %5138
    %5140 = vset.pattern.permute.xlu0 0
    %5141 = vperm.xlu0 %5140, %v4900
    %v5142 = vpop.permute.xlu0 %5141
    %5143 = vset.pattern.permute.xlu0 0
    %5144 = vperm.xlu0 %5143, %v4902
    %v5145 = vpop.permute.xlu0 %5144
    %5146 = vset.pattern.permute.xlu0 0
    %5147 = vperm.xlu0 %5146, %v4904
    %v5148 = vpop.permute.xlu0 %5147
    %5149 = vset.pattern.permute.xlu0 0
    %5150 = vperm.xlu0 %5149, %v4906
    %v5151 = vpop.permute.xlu0 %5150
    %5152 = vset.pattern.permute.xlu0 0
    %5153 = vperm.xlu0 %5152, %v4908
    %v5154 = vpop.permute.xlu0 %5153
    %5155 = vset.pattern.permute.xlu0 0
    %5156 = vperm.xlu0 %5155, %v4910
    %v5157 = vpop.permute.xlu0 %5156
    %5158 = vset.pattern.permute.xlu0 0
    %5159 = vperm.xlu0 %5158, %v4912
    %v5160 = vpop.permute.xlu0 %5159
    %5161 = vset.pattern.permute.xlu0 0
    %5162 = vperm.xlu0 %5161, %v4914
    %v5163 = vpop.permute.xlu0 %5162
    %5164 = vset.pattern.permute.xlu0 0
    %5165 = vperm.xlu0 %5164, %v4916
    %v5166 = vpop.permute.xlu0 %5165
    %5167 = vset.pattern.permute.xlu0 0
    %5168 = vperm.xlu0 %5167, %v4918
    %v5169 = vpop.permute.xlu0 %5168
    %5170 = vset.pattern.permute.xlu0 0
    %5171 = vperm.xlu0 %5170, %v4920
    %v5172 = vpop.permute.xlu0 %5171
    %5173 = vset.pattern.permute.xlu0 0
    %5174 = vperm.xlu0 %5173, %v4922
    %v5175 = vpop.permute.xlu0 %5174
    %5176 = vset.pattern.permute.xlu0 0
    %5177 = vperm.xlu0 %5176, %v4924
    %v5178 = vpop.permute.xlu0 %5177
    %5179 = vset.pattern.permute.xlu0 0
    %5180 = vperm.xlu0 %5179, %v4926
    %v5181 = vpop.permute.xlu0 %5180
    %5182 = vset.pattern.permute.xlu0 0
    %5183 = vperm.xlu0 %5182, %v4928
    %v5184 = vpop.permute.xlu0 %5183
    %v5185 = vperm.slane %v4995, %v41
    %v5186 = vperm.slane %v4998, %v41
    %v5187 = vperm.slane %v5001, %v41
    %v5188 = vperm.slane %v5004, %v41
    %v5189 = vperm.slane %v5007, %v41
    %v5190 = vperm.slane %v5010, %v41
    %v5191 = vperm.slane %v5013, %v41
    %v5192 = vperm.slane %v5016, %v41
    %v5193 = vperm.slane %v5019, %v41
    %v5194 = vperm.slane %v5022, %v41
    %v5195 = vperm.slane %v5025, %v41
    %v5196 = vperm.slane %v5028, %v41
    %v5197 = vperm.slane %v5031, %v41
    %v5198 = vperm.slane %v5034, %v41
    %v5199 = vperm.slane %v5037, %v41
    %v5200 = vperm.slane %v5040, %v41
    %v5201 = vperm.slane %v5043, %v41
    %v5202 = vperm.slane %v5046, %v41
    %v5203 = vperm.slane %v5049, %v41
    %v5204 = vperm.slane %v5052, %v41
    %v5205 = vperm.slane %v5055, %v41
    %v5206 = vperm.slane %v5058, %v41
    %v5207 = vperm.slane %v5061, %v41
    %v5208 = vperm.slane %v5064, %v41
    %v5209 = vperm.slane %v5067, %v41
    %v5210 = vperm.slane %v5070, %v41
    %v5211 = vperm.slane %v5073, %v41
    %v5212 = vperm.slane %v5076, %v41
    %v5213 = vperm.slane %v5079, %v41
    %v5214 = vperm.slane %v5082, %v41
    %v5215 = vperm.slane %v5085, %v41
    %v5216 = vperm.slane %v5088, %v41
    %v5217 = vperm.slane %v5091, %v41
    %v5218 = vperm.slane %v5094, %v41
    %v5219 = vperm.slane %v5097, %v41
    %v5220 = vperm.slane %v5100, %v41
    %v5221 = vperm.slane %v5103, %v41
    %v5222 = vperm.slane %v5106, %v41
    %v5223 = vperm.slane %v5109, %v41
    %v5224 = vperm.slane %v5112, %v41
    %v5225 = vperm.slane %v5115, %v41
    %v5226 = vperm.slane %v5118, %v41
    %v5227 = vperm.slane %v5121, %v41
    %v5228 = vperm.slane %v5124, %v41
    %v5229 = vperm.slane %v5127, %v41
    %v5230 = vperm.slane %v5130, %v41
    %v5231 = vperm.slane %v5133, %v41
    %v5232 = vperm.slane %v5136, %v41
    %v5233 = vperm.slane %v5139, %v41
    %v5234 = vperm.slane %v5142, %v41
    %v5235 = vperm.slane %v5145, %v41
    %v5236 = vperm.slane %v5148, %v41
    %v5237 = vperm.slane %v5151, %v41
    %v5238 = vperm.slane %v5154, %v41
    %v5239 = vperm.slane %v5157, %v41
    %v5240 = vperm.slane %v5160, %v41
    %v5241 = vperm.slane %v5163, %v41
    %v5242 = vperm.slane %v5166, %v41
    %v5243 = vperm.slane %v5169, %v41
    %v5244 = vperm.slane %v5172, %v41
    %v5245 = vperm.slane %v5175, %v41
    %v5246 = vperm.slane %v5178, %v41
    %v5247 = vperm.slane %v5181, %v41
    %v5248 = vperm.slane %v5184, %v41
    %v5249 = vsel %vm1211, %v5186, %v5185
    %v5250 = vsel %vm1213, %v5187, %v5249
    %v5251 = vsel %vm1215, %v5188, %v5250
    %v5252 = vsel %vm1217, %v5189, %v5251
    %v5253 = vsel %vm1219, %v5190, %v5252
    %v5254 = vsel %vm1221, %v5191, %v5253
    %v5255 = vsel %vm1223, %v5192, %v5254
    %v5256 = vsel %vm1211, %v5194, %v5193
    %v5257 = vsel %vm1213, %v5195, %v5256
    %v5258 = vsel %vm1215, %v5196, %v5257
    %v5259 = vsel %vm1217, %v5197, %v5258
    %v5260 = vsel %vm1219, %v5198, %v5259
    %v5261 = vsel %vm1221, %v5199, %v5260
    %v5262 = vsel %vm1223, %v5200, %v5261
    %v5263 = vsel %vm1211, %v5202, %v5201
    %v5264 = vsel %vm1213, %v5203, %v5263
    %v5265 = vsel %vm1215, %v5204, %v5264
    %v5266 = vsel %vm1217, %v5205, %v5265
    %v5267 = vsel %vm1219, %v5206, %v5266
    %v5268 = vsel %vm1221, %v5207, %v5267
    %v5269 = vsel %vm1223, %v5208, %v5268
    %v5270 = vsel %vm1211, %v5210, %v5209
    %v5271 = vsel %vm1213, %v5211, %v5270
    %v5272 = vsel %vm1215, %v5212, %v5271
    %v5273 = vsel %vm1217, %v5213, %v5272
    %v5274 = vsel %vm1219, %v5214, %v5273
    %v5275 = vsel %vm1221, %v5215, %v5274
    %v5276 = vsel %vm1223, %v5216, %v5275
    %v5277 = vsel %vm1211, %v5218, %v5217
    %v5278 = vsel %vm1213, %v5219, %v5277
    %v5279 = vsel %vm1215, %v5220, %v5278
    %v5280 = vsel %vm1217, %v5221, %v5279
    %v5281 = vsel %vm1219, %v5222, %v5280
    %v5282 = vsel %vm1221, %v5223, %v5281
    %v5283 = vsel %vm1223, %v5224, %v5282
    %v5284 = vsel %vm1211, %v5226, %v5225
    %v5285 = vsel %vm1213, %v5227, %v5284
    %v5286 = vsel %vm1215, %v5228, %v5285
    %v5287 = vsel %vm1217, %v5229, %v5286
    %v5288 = vsel %vm1219, %v5230, %v5287
    %v5289 = vsel %vm1221, %v5231, %v5288
    %v5290 = vsel %vm1223, %v5232, %v5289
    %v5291 = vsel %vm1211, %v5234, %v5233
    %v5292 = vsel %vm1213, %v5235, %v5291
    %v5293 = vsel %vm1215, %v5236, %v5292
    %v5294 = vsel %vm1217, %v5237, %v5293
    %v5295 = vsel %vm1219, %v5238, %v5294
    %v5296 = vsel %vm1221, %v5239, %v5295
    %v5297 = vsel %vm1223, %v5240, %v5296
    %v5298 = vsel %vm1211, %v5242, %v5241
    %v5299 = vsel %vm1213, %v5243, %v5298
    %v5300 = vsel %vm1215, %v5244, %v5299
    %v5301 = vsel %vm1217, %v5245, %v5300
    %v5302 = vsel %vm1219, %v5246, %v5301
    %v5303 = vsel %vm1221, %v5247, %v5302
    %v5304 = vsel %vm1223, %v5248, %v5303
    %v5313 = vsel %vm556, %v5255, 0.0
    %5314 = vadd.xlane.f32.xlu0 %v5313
    %v5315 = vpop.xlane.xlu0 %5314
    %v5316 = vsel %vm556, %v5262, 0.0
    %5317 = vadd.xlane.f32.xlu0 %v5316
    %v5318 = vpop.xlane.xlu0 %5317
    %v5319 = vsel %vm556, %v5269, 0.0
    %5320 = vadd.xlane.f32.xlu0 %v5319
    %v5321 = vpop.xlane.xlu0 %5320
    %v5322 = vsel %vm556, %v5276, 0.0
    %5323 = vadd.xlane.f32.xlu0 %v5322
    %v5324 = vpop.xlane.xlu0 %5323
    %v5325 = vsel %vm556, %v5283, 0.0
    %5326 = vadd.xlane.f32.xlu0 %v5325
    %v5327 = vpop.xlane.xlu0 %5326
    %v5328 = vsel %vm556, %v5290, 0.0
    %5329 = vadd.xlane.f32.xlu0 %v5328
    %v5330 = vpop.xlane.xlu0 %5329
    %v5331 = vsel %vm556, %v5297, 0.0
    %5332 = vadd.xlane.f32.xlu0 %v5331
    %v5333 = vpop.xlane.xlu0 %5332
    %v5334 = vsel %vm556, %v5304, 0.0
    %5335 = vadd.xlane.f32.xlu0 %v5334
    %v5336 = vpop.xlane.xlu0 %5335
    %v5337 = vrcp.pop %v5315
    %v5338 = vrcp.pop %v5318
    %v5339 = vrcp.pop %v5321
    %v5340 = vrcp.pop %v5324
    %v5341 = vrcp.pop %v5327
    %v5342 = vrcp.pop %v5330
    %v5343 = vrcp.pop %v5333
    %v5344 = vrcp.pop %v5336
    %v5353 = vperm.slane %v5337, 0
    %v5354 = vperm.slane %v5337, 1
    %v5355 = vperm.slane %v5337, 2
    %v5356 = vperm.slane %v5337, 3
    %v5357 = vperm.slane %v5337, 4
    %v5358 = vperm.slane %v5337, 5
    %v5359 = vperm.slane %v5337, 6
    %v5360 = vperm.slane %v5337, 7
    %v5361 = vperm.slane %v5338, 0
    %v5362 = vperm.slane %v5338, 1
    %v5363 = vperm.slane %v5338, 2
    %v5364 = vperm.slane %v5338, 3
    %v5365 = vperm.slane %v5338, 4
    %v5366 = vperm.slane %v5338, 5
    %v5367 = vperm.slane %v5338, 6
    %v5368 = vperm.slane %v5338, 7
    %v5369 = vperm.slane %v5339, 0
    %v5370 = vperm.slane %v5339, 1
    %v5371 = vperm.slane %v5339, 2
    %v5372 = vperm.slane %v5339, 3
    %v5373 = vperm.slane %v5339, 4
    %v5374 = vperm.slane %v5339, 5
    %v5375 = vperm.slane %v5339, 6
    %v5376 = vperm.slane %v5339, 7
    %v5377 = vperm.slane %v5340, 0
    %v5378 = vperm.slane %v5340, 1
    %v5379 = vperm.slane %v5340, 2
    %v5380 = vperm.slane %v5340, 3
    %v5381 = vperm.slane %v5340, 4
    %v5382 = vperm.slane %v5340, 5
    %v5383 = vperm.slane %v5340, 6
    %v5384 = vperm.slane %v5340, 7
    %v5385 = vperm.slane %v5341, 0
    %v5386 = vperm.slane %v5341, 1
    %v5387 = vperm.slane %v5341, 2
    %v5388 = vperm.slane %v5341, 3
    %v5389 = vperm.slane %v5341, 4
    %v5390 = vperm.slane %v5341, 5
    %v5391 = vperm.slane %v5341, 6
    %v5392 = vperm.slane %v5341, 7
    %v5393 = vperm.slane %v5342, 0
    %v5394 = vperm.slane %v5342, 1
    %v5395 = vperm.slane %v5342, 2
    %v5396 = vperm.slane %v5342, 3
    %v5397 = vperm.slane %v5342, 4
    %v5398 = vperm.slane %v5342, 5
    %v5399 = vperm.slane %v5342, 6
    %v5400 = vperm.slane %v5342, 7
    %v5401 = vperm.slane %v5343, 0
    %v5402 = vperm.slane %v5343, 1
    %v5403 = vperm.slane %v5343, 2
    %v5404 = vperm.slane %v5343, 3
    %v5405 = vperm.slane %v5343, 4
    %v5406 = vperm.slane %v5343, 5
    %v5407 = vperm.slane %v5343, 6
    %v5408 = vperm.slane %v5343, 7
    %v5409 = vperm.slane %v5344, 0
    %v5410 = vperm.slane %v5344, 1
    %v5411 = vperm.slane %v5344, 2
    %v5412 = vperm.slane %v5344, 3
    %v5413 = vperm.slane %v5344, 4
    %v5414 = vperm.slane %v5344, 5
    %v5415 = vperm.slane %v5344, 6
    %v5416 = vperm.slane %v5344, 7
    %v5481 = vmul.f32 %v4802, %v5353
    %v5482 = vmul.f32 %v4804, %v5354
    %v5483 = vmul.f32 %v4806, %v5355
    %v5484 = vmul.f32 %v4808, %v5356
    %v5485 = vmul.f32 %v4810, %v5357
    %v5486 = vmul.f32 %v4812, %v5358
    %v5487 = vmul.f32 %v4814, %v5359
    %v5488 = vmul.f32 %v4816, %v5360
    %v5489 = vmul.f32 %v4818, %v5361
    %v5490 = vmul.f32 %v4820, %v5362
    %v5491 = vmul.f32 %v4822, %v5363
    %v5492 = vmul.f32 %v4824, %v5364
    %v5493 = vmul.f32 %v4826, %v5365
    %v5494 = vmul.f32 %v4828, %v5366
    %v5495 = vmul.f32 %v4830, %v5367
    %v5496 = vmul.f32 %v4832, %v5368
    %v5497 = vmul.f32 %v4834, %v5369
    %v5498 = vmul.f32 %v4836, %v5370
    %v5499 = vmul.f32 %v4838, %v5371
    %v5500 = vmul.f32 %v4840, %v5372
    %v5501 = vmul.f32 %v4842, %v5373
    %v5502 = vmul.f32 %v4844, %v5374
    %v5503 = vmul.f32 %v4846, %v5375
    %v5504 = vmul.f32 %v4848, %v5376
    %v5505 = vmul.f32 %v4850, %v5377
    %v5506 = vmul.f32 %v4852, %v5378
    %v5507 = vmul.f32 %v4854, %v5379
    %v5508 = vmul.f32 %v4856, %v5380
    %v5509 = vmul.f32 %v4858, %v5381
    %v5510 = vmul.f32 %v4860, %v5382
    %v5511 = vmul.f32 %v4862, %v5383
    %v5512 = vmul.f32 %v4864, %v5384
    %v5513 = vmul.f32 %v4866, %v5385
    %v5514 = vmul.f32 %v4868, %v5386
    %v5515 = vmul.f32 %v4870, %v5387
    %v5516 = vmul.f32 %v4872, %v5388
    %v5517 = vmul.f32 %v4874, %v5389
    %v5518 = vmul.f32 %v4876, %v5390
    %v5519 = vmul.f32 %v4878, %v5391
    %v5520 = vmul.f32 %v4880, %v5392
    %v5521 = vmul.f32 %v4882, %v5393
    %v5522 = vmul.f32 %v4884, %v5394
    %v5523 = vmul.f32 %v4886, %v5395
    %v5524 = vmul.f32 %v4888, %v5396
    %v5525 = vmul.f32 %v4890, %v5397
    %v5526 = vmul.f32 %v4892, %v5398
    %v5527 = vmul.f32 %v4894, %v5399
    %v5528 = vmul.f32 %v4896, %v5400
    %v5529 = vmul.f32 %v4898, %v5401
    %v5530 = vmul.f32 %v4900, %v5402
    %v5531 = vmul.f32 %v4902, %v5403
    %v5532 = vmul.f32 %v4904, %v5404
    %v5533 = vmul.f32 %v4906, %v5405
    %v5534 = vmul.f32 %v4908, %v5406
    %v5535 = vmul.f32 %v4910, %v5407
    %v5536 = vmul.f32 %v4912, %v5408
    %v5537 = vmul.f32 %v4914, %v5409
    %v5538 = vmul.f32 %v4916, %v5410
    %v5539 = vmul.f32 %v4918, %v5411
    %v5540 = vmul.f32 %v4920, %v5412
    %v5541 = vmul.f32 %v4922, %v5413
    %v5542 = vmul.f32 %v4924, %v5414
    %v5543 = vmul.f32 %v4926, %v5415
    %v5544 = vmul.f32 %v4928, %v5416
    %5546 = vset.pattern.permute.xlu0 0
    %5547 = vperm.xlu0 %5546, %v5481
    %v5548 = vpop.permute.xlu0 %5547
    %5551 = vset.pattern.permute.xlu0 0
    %5552 = vperm.xlu0 %5551, %v5482
    %v5553 = vpop.permute.xlu0 %5552
    %5556 = vset.pattern.permute.xlu0 0
    %5557 = vperm.xlu0 %5556, %v5483
    %v5558 = vpop.permute.xlu0 %5557
    %5561 = vset.pattern.permute.xlu0 0
    %5562 = vperm.xlu0 %5561, %v5484
    %v5563 = vpop.permute.xlu0 %5562
    %5566 = vset.pattern.permute.xlu0 0
    %5567 = vperm.xlu0 %5566, %v5485
    %v5568 = vpop.permute.xlu0 %5567
    %5571 = vset.pattern.permute.xlu0 0
    %5572 = vperm.xlu0 %5571, %v5486
    %v5573 = vpop.permute.xlu0 %5572
    %5576 = vset.pattern.permute.xlu0 0
    %5577 = vperm.xlu0 %5576, %v5487
    %v5578 = vpop.permute.xlu0 %5577
    %5581 = vset.pattern.permute.xlu0 0
    %5582 = vperm.xlu0 %5581, %v5488
    %v5583 = vpop.permute.xlu0 %5582
    %5586 = vset.pattern.permute.xlu0 0
    %5587 = vperm.xlu0 %5586, %v5489
    %v5588 = vpop.permute.xlu0 %5587
    %5591 = vset.pattern.permute.xlu0 0
    %5592 = vperm.xlu0 %5591, %v5490
    %v5593 = vpop.permute.xlu0 %5592
    %5596 = vset.pattern.permute.xlu0 0
    %5597 = vperm.xlu0 %5596, %v5491
    %v5598 = vpop.permute.xlu0 %5597
    %5601 = vset.pattern.permute.xlu0 0
    %5602 = vperm.xlu0 %5601, %v5492
    %v5603 = vpop.permute.xlu0 %5602
    %5606 = vset.pattern.permute.xlu0 0
    %5607 = vperm.xlu0 %5606, %v5493
    %v5608 = vpop.permute.xlu0 %5607
    %5611 = vset.pattern.permute.xlu0 0
    %5612 = vperm.xlu0 %5611, %v5494
    %v5613 = vpop.permute.xlu0 %5612
    %5616 = vset.pattern.permute.xlu0 0
    %5617 = vperm.xlu0 %5616, %v5495
    %v5618 = vpop.permute.xlu0 %5617
    %5621 = vset.pattern.permute.xlu0 0
    %5622 = vperm.xlu0 %5621, %v5496
    %v5623 = vpop.permute.xlu0 %5622
    %5626 = vset.pattern.permute.xlu0 0
    %5627 = vperm.xlu0 %5626, %v5497
    %v5628 = vpop.permute.xlu0 %5627
    %5631 = vset.pattern.permute.xlu0 0
    %5632 = vperm.xlu0 %5631, %v5498
    %v5633 = vpop.permute.xlu0 %5632
    %5636 = vset.pattern.permute.xlu0 0
    %5637 = vperm.xlu0 %5636, %v5499
    %v5638 = vpop.permute.xlu0 %5637
    %5641 = vset.pattern.permute.xlu0 0
    %5642 = vperm.xlu0 %5641, %v5500
    %v5643 = vpop.permute.xlu0 %5642
    %5646 = vset.pattern.permute.xlu0 0
    %5647 = vperm.xlu0 %5646, %v5501
    %v5648 = vpop.permute.xlu0 %5647
    %5651 = vset.pattern.permute.xlu0 0
    %5652 = vperm.xlu0 %5651, %v5502
    %v5653 = vpop.permute.xlu0 %5652
    %5656 = vset.pattern.permute.xlu0 0
    %5657 = vperm.xlu0 %5656, %v5503
    %v5658 = vpop.permute.xlu0 %5657
    %5661 = vset.pattern.permute.xlu0 0
    %5662 = vperm.xlu0 %5661, %v5504
    %v5663 = vpop.permute.xlu0 %5662
    %5666 = vset.pattern.permute.xlu0 0
    %5667 = vperm.xlu0 %5666, %v5505
    %v5668 = vpop.permute.xlu0 %5667
    %5671 = vset.pattern.permute.xlu0 0
    %5672 = vperm.xlu0 %5671, %v5506
    %v5673 = vpop.permute.xlu0 %5672
    %5676 = vset.pattern.permute.xlu0 0
    %5677 = vperm.xlu0 %5676, %v5507
    %v5678 = vpop.permute.xlu0 %5677
    %5681 = vset.pattern.permute.xlu0 0
    %5682 = vperm.xlu0 %5681, %v5508
    %v5683 = vpop.permute.xlu0 %5682
    %5686 = vset.pattern.permute.xlu0 0
    %5687 = vperm.xlu0 %5686, %v5509
    %v5688 = vpop.permute.xlu0 %5687
    %5691 = vset.pattern.permute.xlu0 0
    %5692 = vperm.xlu0 %5691, %v5510
    %v5693 = vpop.permute.xlu0 %5692
    %5696 = vset.pattern.permute.xlu0 0
    %5697 = vperm.xlu0 %5696, %v5511
    %v5698 = vpop.permute.xlu0 %5697
    %5701 = vset.pattern.permute.xlu0 0
    %5702 = vperm.xlu0 %5701, %v5512
    %v5703 = vpop.permute.xlu0 %5702
    %5706 = vset.pattern.permute.xlu0 0
    %5707 = vperm.xlu0 %5706, %v5513
    %v5708 = vpop.permute.xlu0 %5707
    %5711 = vset.pattern.permute.xlu0 0
    %5712 = vperm.xlu0 %5711, %v5514
    %v5713 = vpop.permute.xlu0 %5712
    %5716 = vset.pattern.permute.xlu0 0
    %5717 = vperm.xlu0 %5716, %v5515
    %v5718 = vpop.permute.xlu0 %5717
    %5721 = vset.pattern.permute.xlu0 0
    %5722 = vperm.xlu0 %5721, %v5516
    %v5723 = vpop.permute.xlu0 %5722
    %5726 = vset.pattern.permute.xlu0 0
    %5727 = vperm.xlu0 %5726, %v5517
    %v5728 = vpop.permute.xlu0 %5727
    %5731 = vset.pattern.permute.xlu0 0
    %5732 = vperm.xlu0 %5731, %v5518
    %v5733 = vpop.permute.xlu0 %5732
    %5736 = vset.pattern.permute.xlu0 0
    %5737 = vperm.xlu0 %5736, %v5519
    %v5738 = vpop.permute.xlu0 %5737
    %5741 = vset.pattern.permute.xlu0 0
    %5742 = vperm.xlu0 %5741, %v5520
    %v5743 = vpop.permute.xlu0 %5742
    %5746 = vset.pattern.permute.xlu0 0
    %5747 = vperm.xlu0 %5746, %v5521
    %v5748 = vpop.permute.xlu0 %5747
    %5751 = vset.pattern.permute.xlu0 0
    %5752 = vperm.xlu0 %5751, %v5522
    %v5753 = vpop.permute.xlu0 %5752
    %5756 = vset.pattern.permute.xlu0 0
    %5757 = vperm.xlu0 %5756, %v5523
    %v5758 = vpop.permute.xlu0 %5757
    %5761 = vset.pattern.permute.xlu0 0
    %5762 = vperm.xlu0 %5761, %v5524
    %v5763 = vpop.permute.xlu0 %5762
    %5766 = vset.pattern.permute.xlu0 0
    %5767 = vperm.xlu0 %5766, %v5525
    %v5768 = vpop.permute.xlu0 %5767
    %5771 = vset.pattern.permute.xlu0 0
    %5772 = vperm.xlu0 %5771, %v5526
    %v5773 = vpop.permute.xlu0 %5772
    %5776 = vset.pattern.permute.xlu0 0
    %5777 = vperm.xlu0 %5776, %v5527
    %v5778 = vpop.permute.xlu0 %5777
    %5781 = vset.pattern.permute.xlu0 0
    %5782 = vperm.xlu0 %5781, %v5528
    %v5783 = vpop.permute.xlu0 %5782
    %5786 = vset.pattern.permute.xlu0 0
    %5787 = vperm.xlu0 %5786, %v5529
    %v5788 = vpop.permute.xlu0 %5787
    %5791 = vset.pattern.permute.xlu0 0
    %5792 = vperm.xlu0 %5791, %v5530
    %v5793 = vpop.permute.xlu0 %5792
    %5796 = vset.pattern.permute.xlu0 0
    %5797 = vperm.xlu0 %5796, %v5531
    %v5798 = vpop.permute.xlu0 %5797
    %5801 = vset.pattern.permute.xlu0 0
    %5802 = vperm.xlu0 %5801, %v5532
    %v5803 = vpop.permute.xlu0 %5802
    %5806 = vset.pattern.permute.xlu0 0
    %5807 = vperm.xlu0 %5806, %v5533
    %v5808 = vpop.permute.xlu0 %5807
    %5811 = vset.pattern.permute.xlu0 0
    %5812 = vperm.xlu0 %5811, %v5534
    %v5813 = vpop.permute.xlu0 %5812
    %5816 = vset.pattern.permute.xlu0 0
    %5817 = vperm.xlu0 %5816, %v5535
    %v5818 = vpop.permute.xlu0 %5817
    %5821 = vset.pattern.permute.xlu0 0
    %5822 = vperm.xlu0 %5821, %v5536
    %v5823 = vpop.permute.xlu0 %5822
    %5826 = vset.pattern.permute.xlu0 0
    %5827 = vperm.xlu0 %5826, %v5537
    %v5828 = vpop.permute.xlu0 %5827
    %5831 = vset.pattern.permute.xlu0 0
    %5832 = vperm.xlu0 %5831, %v5538
    %v5833 = vpop.permute.xlu0 %5832
    %5836 = vset.pattern.permute.xlu0 0
    %5837 = vperm.xlu0 %5836, %v5539
    %v5838 = vpop.permute.xlu0 %5837
    %5841 = vset.pattern.permute.xlu0 0
    %5842 = vperm.xlu0 %5841, %v5540
    %v5843 = vpop.permute.xlu0 %5842
    %5846 = vset.pattern.permute.xlu0 0
    %5847 = vperm.xlu0 %5846, %v5541
    %v5848 = vpop.permute.xlu0 %5847
    %5851 = vset.pattern.permute.xlu0 0
    %5852 = vperm.xlu0 %5851, %v5542
    %v5853 = vpop.permute.xlu0 %5852
    %5856 = vset.pattern.permute.xlu0 0
    %5857 = vperm.xlu0 %5856, %v5543
    %v5858 = vpop.permute.xlu0 %5857
    %5861 = vset.pattern.permute.xlu0 0
    %5862 = vperm.xlu0 %5861, %v5544
    %v5863 = vpop.permute.xlu0 %5862
    %v5865 = vmul.f32 %v5548, %v3567
    %v5866 = vmul.f32 %v5553, %v3567
    %v5867 = vmul.f32 %v5558, %v3567
    %v5868 = vmul.f32 %v5563, %v3567
    %v5869 = vmul.f32 %v5568, %v3567
    %v5870 = vmul.f32 %v5573, %v3567
    %v5871 = vmul.f32 %v5578, %v3567
    %v5872 = vmul.f32 %v5583, %v3567
    %v5873 = vmul.f32 %v5588, %v3608
    %v5874 = vmul.f32 %v5593, %v3608
    %v5875 = vmul.f32 %v5598, %v3608
    %v5876 = vmul.f32 %v5603, %v3608
    %v5877 = vmul.f32 %v5608, %v3608
    %v5878 = vmul.f32 %v5613, %v3608
    %v5879 = vmul.f32 %v5618, %v3608
    %v5880 = vmul.f32 %v5623, %v3608
    %v5881 = vmul.f32 %v5628, %v3614
    %v5882 = vmul.f32 %v5633, %v3614
    %v5883 = vmul.f32 %v5638, %v3614
    %v5884 = vmul.f32 %v5643, %v3614
    %v5885 = vmul.f32 %v5648, %v3614
    %v5886 = vmul.f32 %v5653, %v3614
    %v5887 = vmul.f32 %v5658, %v3614
    %v5888 = vmul.f32 %v5663, %v3614
    %v5889 = vmul.f32 %v5668, %v3620
    %v5890 = vmul.f32 %v5673, %v3620
    %v5891 = vmul.f32 %v5678, %v3620
    %v5892 = vmul.f32 %v5683, %v3620
    %v5893 = vmul.f32 %v5688, %v3620
    %v5894 = vmul.f32 %v5693, %v3620
    %v5895 = vmul.f32 %v5698, %v3620
    %v5896 = vmul.f32 %v5703, %v3620
    %v5897 = vmul.f32 %v5708, %v3569
    %v5898 = vmul.f32 %v5713, %v3569
    %v5899 = vmul.f32 %v5718, %v3569
    %v5900 = vmul.f32 %v5723, %v3569
    %v5901 = vmul.f32 %v5728, %v3569
    %v5902 = vmul.f32 %v5733, %v3569
    %v5903 = vmul.f32 %v5738, %v3569
    %v5904 = vmul.f32 %v5743, %v3569
    %v5905 = vmul.f32 %v5748, %v3610
    %v5906 = vmul.f32 %v5753, %v3610
    %v5907 = vmul.f32 %v5758, %v3610
    %v5908 = vmul.f32 %v5763, %v3610
    %v5909 = vmul.f32 %v5768, %v3610
    %v5910 = vmul.f32 %v5773, %v3610
    %v5911 = vmul.f32 %v5778, %v3610
    %v5912 = vmul.f32 %v5783, %v3610
    %v5913 = vmul.f32 %v5788, %v3616
    %v5914 = vmul.f32 %v5793, %v3616
    %v5915 = vmul.f32 %v5798, %v3616
    %v5916 = vmul.f32 %v5803, %v3616
    %v5917 = vmul.f32 %v5808, %v3616
    %v5918 = vmul.f32 %v5813, %v3616
    %v5919 = vmul.f32 %v5818, %v3616
    %v5920 = vmul.f32 %v5823, %v3616
    %v5921 = vmul.f32 %v5828, %v3622
    %v5922 = vmul.f32 %v5833, %v3622
    %v5923 = vmul.f32 %v5838, %v3622
    %v5924 = vmul.f32 %v5843, %v3622
    %v5925 = vmul.f32 %v5848, %v3622
    %v5926 = vmul.f32 %v5853, %v3622
    %v5927 = vmul.f32 %v5858, %v3622
    %v5928 = vmul.f32 %v5863, %v3622
    %v5929 = vsel %vm556, %v5865, 0.0
    %v5930 = vrot.slane %v5929, 4
    %v5931 = vadd.f32 %v5929, %v5930
    %v5932 = vrot.slane %v5931, 2
    %v5933 = vadd.f32 %v5931, %v5932
    %v5934 = vrot.slane %v5933, 1
    %v5935 = vadd.f32 %v5933, %v5934
    %v5936 = vsel %vm556, %v5866, 0.0
    %v5937 = vrot.slane %v5936, 4
    %v5938 = vadd.f32 %v5936, %v5937
    %v5939 = vrot.slane %v5938, 2
    %v5940 = vadd.f32 %v5938, %v5939
    %v5941 = vrot.slane %v5940, 1
    %v5942 = vadd.f32 %v5940, %v5941
    %v5943 = vsel %vm556, %v5867, 0.0
    %v5944 = vrot.slane %v5943, 4
    %v5945 = vadd.f32 %v5943, %v5944
    %v5946 = vrot.slane %v5945, 2
    %v5947 = vadd.f32 %v5945, %v5946
    %v5948 = vrot.slane %v5947, 1
    %v5949 = vadd.f32 %v5947, %v5948
    %v5950 = vsel %vm556, %v5868, 0.0
    %v5951 = vrot.slane %v5950, 4
    %v5952 = vadd.f32 %v5950, %v5951
    %v5953 = vrot.slane %v5952, 2
    %v5954 = vadd.f32 %v5952, %v5953
    %v5955 = vrot.slane %v5954, 1
    %v5956 = vadd.f32 %v5954, %v5955
    %v5957 = vsel %vm556, %v5869, 0.0
    %v5958 = vrot.slane %v5957, 4
    %v5959 = vadd.f32 %v5957, %v5958
    %v5960 = vrot.slane %v5959, 2
    %v5961 = vadd.f32 %v5959, %v5960
    %v5962 = vrot.slane %v5961, 1
    %v5963 = vadd.f32 %v5961, %v5962
    %v5964 = vsel %vm556, %v5870, 0.0
    %v5965 = vrot.slane %v5964, 4
    %v5966 = vadd.f32 %v5964, %v5965
    %v5967 = vrot.slane %v5966, 2
    %v5968 = vadd.f32 %v5966, %v5967
    %v5969 = vrot.slane %v5968, 1
    %v5970 = vadd.f32 %v5968, %v5969
    %v5971 = vsel %vm556, %v5871, 0.0
    %v5972 = vrot.slane %v5971, 4
    %v5973 = vadd.f32 %v5971, %v5972
    %v5974 = vrot.slane %v5973, 2
    %v5975 = vadd.f32 %v5973, %v5974
    %v5976 = vrot.slane %v5975, 1
    %v5977 = vadd.f32 %v5975, %v5976
    %v5978 = vsel %vm556, %v5872, 0.0
    %v5979 = vrot.slane %v5978, 4
    %v5980 = vadd.f32 %v5978, %v5979
    %v5981 = vrot.slane %v5980, 2
    %v5982 = vadd.f32 %v5980, %v5981
    %v5983 = vrot.slane %v5982, 1
    %v5984 = vadd.f32 %v5982, %v5983
    %v5985 = vsel %vm556, %v5873, 0.0
    %v5986 = vrot.slane %v5985, 4
    %v5987 = vadd.f32 %v5985, %v5986
    %v5988 = vrot.slane %v5987, 2
    %v5989 = vadd.f32 %v5987, %v5988
    %v5990 = vrot.slane %v5989, 1
    %v5991 = vadd.f32 %v5989, %v5990
    %v5992 = vsel %vm556, %v5874, 0.0
    %v5993 = vrot.slane %v5992, 4
    %v5994 = vadd.f32 %v5992, %v5993
    %v5995 = vrot.slane %v5994, 2
    %v5996 = vadd.f32 %v5994, %v5995
    %v5997 = vrot.slane %v5996, 1
    %v5998 = vadd.f32 %v5996, %v5997
    %v5999 = vsel %vm556, %v5875, 0.0
    %v6000 = vrot.slane %v5999, 4
    %v6001 = vadd.f32 %v5999, %v6000
    %v6002 = vrot.slane %v6001, 2
    %v6003 = vadd.f32 %v6001, %v6002
    %v6004 = vrot.slane %v6003, 1
    %v6005 = vadd.f32 %v6003, %v6004
    %v6006 = vsel %vm556, %v5876, 0.0
    %v6007 = vrot.slane %v6006, 4
    %v6008 = vadd.f32 %v6006, %v6007
    %v6009 = vrot.slane %v6008, 2
    %v6010 = vadd.f32 %v6008, %v6009
    %v6011 = vrot.slane %v6010, 1
    %v6012 = vadd.f32 %v6010, %v6011
    %v6013 = vsel %vm556, %v5877, 0.0
    %v6014 = vrot.slane %v6013, 4
    %v6015 = vadd.f32 %v6013, %v6014
    %v6016 = vrot.slane %v6015, 2
    %v6017 = vadd.f32 %v6015, %v6016
    %v6018 = vrot.slane %v6017, 1
    %v6019 = vadd.f32 %v6017, %v6018
    %v6020 = vsel %vm556, %v5878, 0.0
    %v6021 = vrot.slane %v6020, 4
    %v6022 = vadd.f32 %v6020, %v6021
    %v6023 = vrot.slane %v6022, 2
    %v6024 = vadd.f32 %v6022, %v6023
    %v6025 = vrot.slane %v6024, 1
    %v6026 = vadd.f32 %v6024, %v6025
    %v6027 = vsel %vm556, %v5879, 0.0
    %v6028 = vrot.slane %v6027, 4
    %v6029 = vadd.f32 %v6027, %v6028
    %v6030 = vrot.slane %v6029, 2
    %v6031 = vadd.f32 %v6029, %v6030
    %v6032 = vrot.slane %v6031, 1
    %v6033 = vadd.f32 %v6031, %v6032
    %v6034 = vsel %vm556, %v5880, 0.0
    %v6035 = vrot.slane %v6034, 4
    %v6036 = vadd.f32 %v6034, %v6035
    %v6037 = vrot.slane %v6036, 2
    %v6038 = vadd.f32 %v6036, %v6037
    %v6039 = vrot.slane %v6038, 1
    %v6040 = vadd.f32 %v6038, %v6039
    %v6041 = vsel %vm556, %v5881, 0.0
    %v6042 = vrot.slane %v6041, 4
    %v6043 = vadd.f32 %v6041, %v6042
    %v6044 = vrot.slane %v6043, 2
    %v6045 = vadd.f32 %v6043, %v6044
    %v6046 = vrot.slane %v6045, 1
    %v6047 = vadd.f32 %v6045, %v6046
    %v6048 = vsel %vm556, %v5882, 0.0
    %v6049 = vrot.slane %v6048, 4
    %v6050 = vadd.f32 %v6048, %v6049
    %v6051 = vrot.slane %v6050, 2
    %v6052 = vadd.f32 %v6050, %v6051
    %v6053 = vrot.slane %v6052, 1
    %v6054 = vadd.f32 %v6052, %v6053
    %v6055 = vsel %vm556, %v5883, 0.0
    %v6056 = vrot.slane %v6055, 4
    %v6057 = vadd.f32 %v6055, %v6056
    %v6058 = vrot.slane %v6057, 2
    %v6059 = vadd.f32 %v6057, %v6058
    %v6060 = vrot.slane %v6059, 1
    %v6061 = vadd.f32 %v6059, %v6060
    %v6062 = vsel %vm556, %v5884, 0.0
    %v6063 = vrot.slane %v6062, 4
    %v6064 = vadd.f32 %v6062, %v6063
    %v6065 = vrot.slane %v6064, 2
    %v6066 = vadd.f32 %v6064, %v6065
    %v6067 = vrot.slane %v6066, 1
    %v6068 = vadd.f32 %v6066, %v6067
    %v6069 = vsel %vm556, %v5885, 0.0
    %v6070 = vrot.slane %v6069, 4
    %v6071 = vadd.f32 %v6069, %v6070
    %v6072 = vrot.slane %v6071, 2
    %v6073 = vadd.f32 %v6071, %v6072
    %v6074 = vrot.slane %v6073, 1
    %v6075 = vadd.f32 %v6073, %v6074
    %v6076 = vsel %vm556, %v5886, 0.0
    %v6077 = vrot.slane %v6076, 4
    %v6078 = vadd.f32 %v6076, %v6077
    %v6079 = vrot.slane %v6078, 2
    %v6080 = vadd.f32 %v6078, %v6079
    %v6081 = vrot.slane %v6080, 1
    %v6082 = vadd.f32 %v6080, %v6081
    %v6083 = vsel %vm556, %v5887, 0.0
    %v6084 = vrot.slane %v6083, 4
    %v6085 = vadd.f32 %v6083, %v6084
    %v6086 = vrot.slane %v6085, 2
    %v6087 = vadd.f32 %v6085, %v6086
    %v6088 = vrot.slane %v6087, 1
    %v6089 = vadd.f32 %v6087, %v6088
    %v6090 = vsel %vm556, %v5888, 0.0
    %v6091 = vrot.slane %v6090, 4
    %v6092 = vadd.f32 %v6090, %v6091
    %v6093 = vrot.slane %v6092, 2
    %v6094 = vadd.f32 %v6092, %v6093
    %v6095 = vrot.slane %v6094, 1
    %v6096 = vadd.f32 %v6094, %v6095
    %v6097 = vsel %vm556, %v5889, 0.0
    %v6098 = vrot.slane %v6097, 4
    %v6099 = vadd.f32 %v6097, %v6098
    %v6100 = vrot.slane %v6099, 2
    %v6101 = vadd.f32 %v6099, %v6100
    %v6102 = vrot.slane %v6101, 1
    %v6103 = vadd.f32 %v6101, %v6102
    %v6104 = vsel %vm556, %v5890, 0.0
    %v6105 = vrot.slane %v6104, 4
    %v6106 = vadd.f32 %v6104, %v6105
    %v6107 = vrot.slane %v6106, 2
    %v6108 = vadd.f32 %v6106, %v6107
    %v6109 = vrot.slane %v6108, 1
    %v6110 = vadd.f32 %v6108, %v6109
    %v6111 = vsel %vm556, %v5891, 0.0
    %v6112 = vrot.slane %v6111, 4
    %v6113 = vadd.f32 %v6111, %v6112
    %v6114 = vrot.slane %v6113, 2
    %v6115 = vadd.f32 %v6113, %v6114
    %v6116 = vrot.slane %v6115, 1
    %v6117 = vadd.f32 %v6115, %v6116
    %v6118 = vsel %vm556, %v5892, 0.0
    %v6119 = vrot.slane %v6118, 4
    %v6120 = vadd.f32 %v6118, %v6119
    %v6121 = vrot.slane %v6120, 2
    %v6122 = vadd.f32 %v6120, %v6121
    %v6123 = vrot.slane %v6122, 1
    %v6124 = vadd.f32 %v6122, %v6123
    %v6125 = vsel %vm556, %v5893, 0.0
    %v6126 = vrot.slane %v6125, 4
    %v6127 = vadd.f32 %v6125, %v6126
    %v6128 = vrot.slane %v6127, 2
    %v6129 = vadd.f32 %v6127, %v6128
    %v6130 = vrot.slane %v6129, 1
    %v6131 = vadd.f32 %v6129, %v6130
    %v6132 = vsel %vm556, %v5894, 0.0
    %v6133 = vrot.slane %v6132, 4
    %v6134 = vadd.f32 %v6132, %v6133
    %v6135 = vrot.slane %v6134, 2
    %v6136 = vadd.f32 %v6134, %v6135
    %v6137 = vrot.slane %v6136, 1
    %v6138 = vadd.f32 %v6136, %v6137
    %v6139 = vsel %vm556, %v5895, 0.0
    %v6140 = vrot.slane %v6139, 4
    %v6141 = vadd.f32 %v6139, %v6140
    %v6142 = vrot.slane %v6141, 2
    %v6143 = vadd.f32 %v6141, %v6142
    %v6144 = vrot.slane %v6143, 1
    %v6145 = vadd.f32 %v6143, %v6144
    %v6146 = vsel %vm556, %v5896, 0.0
    %v6147 = vrot.slane %v6146, 4
    %v6148 = vadd.f32 %v6146, %v6147
    %v6149 = vrot.slane %v6148, 2
    %v6150 = vadd.f32 %v6148, %v6149
    %v6151 = vrot.slane %v6150, 1
    %v6152 = vadd.f32 %v6150, %v6151
    %v6153 = vsel %vm556, %v5897, 0.0
    %v6154 = vrot.slane %v6153, 4
    %v6155 = vadd.f32 %v6153, %v6154
    %v6156 = vrot.slane %v6155, 2
    %v6157 = vadd.f32 %v6155, %v6156
    %v6158 = vrot.slane %v6157, 1
    %v6159 = vadd.f32 %v6157, %v6158
    %v6160 = vsel %vm556, %v5898, 0.0
    %v6161 = vrot.slane %v6160, 4
    %v6162 = vadd.f32 %v6160, %v6161
    %v6163 = vrot.slane %v6162, 2
    %v6164 = vadd.f32 %v6162, %v6163
    %v6165 = vrot.slane %v6164, 1
    %v6166 = vadd.f32 %v6164, %v6165
    %v6167 = vsel %vm556, %v5899, 0.0
    %v6168 = vrot.slane %v6167, 4
    %v6169 = vadd.f32 %v6167, %v6168
    %v6170 = vrot.slane %v6169, 2
    %v6171 = vadd.f32 %v6169, %v6170
    %v6172 = vrot.slane %v6171, 1
    %v6173 = vadd.f32 %v6171, %v6172
    %v6174 = vsel %vm556, %v5900, 0.0
    %v6175 = vrot.slane %v6174, 4
    %v6176 = vadd.f32 %v6174, %v6175
    %v6177 = vrot.slane %v6176, 2
    %v6178 = vadd.f32 %v6176, %v6177
    %v6179 = vrot.slane %v6178, 1
    %v6180 = vadd.f32 %v6178, %v6179
    %v6181 = vsel %vm556, %v5901, 0.0
    %v6182 = vrot.slane %v6181, 4
    %v6183 = vadd.f32 %v6181, %v6182
    %v6184 = vrot.slane %v6183, 2
    %v6185 = vadd.f32 %v6183, %v6184
    %v6186 = vrot.slane %v6185, 1
    %v6187 = vadd.f32 %v6185, %v6186
    %v6188 = vsel %vm556, %v5902, 0.0
    %v6189 = vrot.slane %v6188, 4
    %v6190 = vadd.f32 %v6188, %v6189
    %v6191 = vrot.slane %v6190, 2
    %v6192 = vadd.f32 %v6190, %v6191
    %v6193 = vrot.slane %v6192, 1
    %v6194 = vadd.f32 %v6192, %v6193
    %v6195 = vsel %vm556, %v5903, 0.0
    %v6196 = vrot.slane %v6195, 4
    %v6197 = vadd.f32 %v6195, %v6196
    %v6198 = vrot.slane %v6197, 2
    %v6199 = vadd.f32 %v6197, %v6198
    %v6200 = vrot.slane %v6199, 1
    %v6201 = vadd.f32 %v6199, %v6200
    %v6202 = vsel %vm556, %v5904, 0.0
    %v6203 = vrot.slane %v6202, 4
    %v6204 = vadd.f32 %v6202, %v6203
    %v6205 = vrot.slane %v6204, 2
    %v6206 = vadd.f32 %v6204, %v6205
    %v6207 = vrot.slane %v6206, 1
    %v6208 = vadd.f32 %v6206, %v6207
    %v6209 = vsel %vm556, %v5905, 0.0
    %v6210 = vrot.slane %v6209, 4
    %v6211 = vadd.f32 %v6209, %v6210
    %v6212 = vrot.slane %v6211, 2
    %v6213 = vadd.f32 %v6211, %v6212
    %v6214 = vrot.slane %v6213, 1
    %v6215 = vadd.f32 %v6213, %v6214
    %v6216 = vsel %vm556, %v5906, 0.0
    %v6217 = vrot.slane %v6216, 4
    %v6218 = vadd.f32 %v6216, %v6217
    %v6219 = vrot.slane %v6218, 2
    %v6220 = vadd.f32 %v6218, %v6219
    %v6221 = vrot.slane %v6220, 1
    %v6222 = vadd.f32 %v6220, %v6221
    %v6223 = vsel %vm556, %v5907, 0.0
    %v6224 = vrot.slane %v6223, 4
    %v6225 = vadd.f32 %v6223, %v6224
    %v6226 = vrot.slane %v6225, 2
    %v6227 = vadd.f32 %v6225, %v6226
    %v6228 = vrot.slane %v6227, 1
    %v6229 = vadd.f32 %v6227, %v6228
    %v6230 = vsel %vm556, %v5908, 0.0
    %v6231 = vrot.slane %v6230, 4
    %v6232 = vadd.f32 %v6230, %v6231
    %v6233 = vrot.slane %v6232, 2
    %v6234 = vadd.f32 %v6232, %v6233
    %v6235 = vrot.slane %v6234, 1
    %v6236 = vadd.f32 %v6234, %v6235
    %v6237 = vsel %vm556, %v5909, 0.0
    %v6238 = vrot.slane %v6237, 4
    %v6239 = vadd.f32 %v6237, %v6238
    %v6240 = vrot.slane %v6239, 2
    %v6241 = vadd.f32 %v6239, %v6240
    %v6242 = vrot.slane %v6241, 1
    %v6243 = vadd.f32 %v6241, %v6242
    %v6244 = vsel %vm556, %v5910, 0.0
    %v6245 = vrot.slane %v6244, 4
    %v6246 = vadd.f32 %v6244, %v6245
    %v6247 = vrot.slane %v6246, 2
    %v6248 = vadd.f32 %v6246, %v6247
    %v6249 = vrot.slane %v6248, 1
    %v6250 = vadd.f32 %v6248, %v6249
    %v6251 = vsel %vm556, %v5911, 0.0
    %v6252 = vrot.slane %v6251, 4
    %v6253 = vadd.f32 %v6251, %v6252
    %v6254 = vrot.slane %v6253, 2
    %v6255 = vadd.f32 %v6253, %v6254
    %v6256 = vrot.slane %v6255, 1
    %v6257 = vadd.f32 %v6255, %v6256
    %v6258 = vsel %vm556, %v5912, 0.0
    %v6259 = vrot.slane %v6258, 4
    %v6260 = vadd.f32 %v6258, %v6259
    %v6261 = vrot.slane %v6260, 2
    %v6262 = vadd.f32 %v6260, %v6261
    %v6263 = vrot.slane %v6262, 1
    %v6264 = vadd.f32 %v6262, %v6263
    %v6265 = vsel %vm556, %v5913, 0.0
    %v6266 = vrot.slane %v6265, 4
    %v6267 = vadd.f32 %v6265, %v6266
    %v6268 = vrot.slane %v6267, 2
    %v6269 = vadd.f32 %v6267, %v6268
    %v6270 = vrot.slane %v6269, 1
    %v6271 = vadd.f32 %v6269, %v6270
    %v6272 = vsel %vm556, %v5914, 0.0
    %v6273 = vrot.slane %v6272, 4
    %v6274 = vadd.f32 %v6272, %v6273
    %v6275 = vrot.slane %v6274, 2
    %v6276 = vadd.f32 %v6274, %v6275
    %v6277 = vrot.slane %v6276, 1
    %v6278 = vadd.f32 %v6276, %v6277
    %v6279 = vsel %vm556, %v5915, 0.0
    %v6280 = vrot.slane %v6279, 4
    %v6281 = vadd.f32 %v6279, %v6280
    %v6282 = vrot.slane %v6281, 2
    %v6283 = vadd.f32 %v6281, %v6282
    %v6284 = vrot.slane %v6283, 1
    %v6285 = vadd.f32 %v6283, %v6284
    %v6286 = vsel %vm556, %v5916, 0.0
    %v6287 = vrot.slane %v6286, 4
    %v6288 = vadd.f32 %v6286, %v6287
    %v6289 = vrot.slane %v6288, 2
    %v6290 = vadd.f32 %v6288, %v6289
    %v6291 = vrot.slane %v6290, 1
    %v6292 = vadd.f32 %v6290, %v6291
    %v6293 = vsel %vm556, %v5917, 0.0
    %v6294 = vrot.slane %v6293, 4
    %v6295 = vadd.f32 %v6293, %v6294
    %v6296 = vrot.slane %v6295, 2
    %v6297 = vadd.f32 %v6295, %v6296
    %v6298 = vrot.slane %v6297, 1
    %v6299 = vadd.f32 %v6297, %v6298
    %v6300 = vsel %vm556, %v5918, 0.0
    %v6301 = vrot.slane %v6300, 4
    %v6302 = vadd.f32 %v6300, %v6301
    %v6303 = vrot.slane %v6302, 2
    %v6304 = vadd.f32 %v6302, %v6303
    %v6305 = vrot.slane %v6304, 1
    %v6306 = vadd.f32 %v6304, %v6305
    %v6307 = vsel %vm556, %v5919, 0.0
    %v6308 = vrot.slane %v6307, 4
    %v6309 = vadd.f32 %v6307, %v6308
    %v6310 = vrot.slane %v6309, 2
    %v6311 = vadd.f32 %v6309, %v6310
    %v6312 = vrot.slane %v6311, 1
    %v6313 = vadd.f32 %v6311, %v6312
    %v6314 = vsel %vm556, %v5920, 0.0
    %v6315 = vrot.slane %v6314, 4
    %v6316 = vadd.f32 %v6314, %v6315
    %v6317 = vrot.slane %v6316, 2
    %v6318 = vadd.f32 %v6316, %v6317
    %v6319 = vrot.slane %v6318, 1
    %v6320 = vadd.f32 %v6318, %v6319
    %v6321 = vsel %vm556, %v5921, 0.0
    %v6322 = vrot.slane %v6321, 4
    %v6323 = vadd.f32 %v6321, %v6322
    %v6324 = vrot.slane %v6323, 2
    %v6325 = vadd.f32 %v6323, %v6324
    %v6326 = vrot.slane %v6325, 1
    %v6327 = vadd.f32 %v6325, %v6326
    %v6328 = vsel %vm556, %v5922, 0.0
    %v6329 = vrot.slane %v6328, 4
    %v6330 = vadd.f32 %v6328, %v6329
    %v6331 = vrot.slane %v6330, 2
    %v6332 = vadd.f32 %v6330, %v6331
    %v6333 = vrot.slane %v6332, 1
    %v6334 = vadd.f32 %v6332, %v6333
    %v6335 = vsel %vm556, %v5923, 0.0
    %v6336 = vrot.slane %v6335, 4
    %v6337 = vadd.f32 %v6335, %v6336
    %v6338 = vrot.slane %v6337, 2
    %v6339 = vadd.f32 %v6337, %v6338
    %v6340 = vrot.slane %v6339, 1
    %v6341 = vadd.f32 %v6339, %v6340
    %v6342 = vsel %vm556, %v5924, 0.0
    %v6343 = vrot.slane %v6342, 4
    %v6344 = vadd.f32 %v6342, %v6343
    %v6345 = vrot.slane %v6344, 2
    %v6346 = vadd.f32 %v6344, %v6345
    %v6347 = vrot.slane %v6346, 1
    %v6348 = vadd.f32 %v6346, %v6347
    %v6349 = vsel %vm556, %v5925, 0.0
    %v6350 = vrot.slane %v6349, 4
    %v6351 = vadd.f32 %v6349, %v6350
    %v6352 = vrot.slane %v6351, 2
    %v6353 = vadd.f32 %v6351, %v6352
    %v6354 = vrot.slane %v6353, 1
    %v6355 = vadd.f32 %v6353, %v6354
    %v6356 = vsel %vm556, %v5926, 0.0
    %v6357 = vrot.slane %v6356, 4
    %v6358 = vadd.f32 %v6356, %v6357
    %v6359 = vrot.slane %v6358, 2
    %v6360 = vadd.f32 %v6358, %v6359
    %v6361 = vrot.slane %v6360, 1
    %v6362 = vadd.f32 %v6360, %v6361
    %v6363 = vsel %vm556, %v5927, 0.0
    %v6364 = vrot.slane %v6363, 4
    %v6365 = vadd.f32 %v6363, %v6364
    %v6366 = vrot.slane %v6365, 2
    %v6367 = vadd.f32 %v6365, %v6366
    %v6368 = vrot.slane %v6367, 1
    %v6369 = vadd.f32 %v6367, %v6368
    %v6370 = vsel %vm556, %v5928, 0.0
    %v6371 = vrot.slane %v6370, 4
    %v6372 = vadd.f32 %v6370, %v6371
    %v6373 = vrot.slane %v6372, 2
    %v6374 = vadd.f32 %v6372, %v6373
    %v6375 = vrot.slane %v6374, 1
    %v6376 = vadd.f32 %v6374, %v6375
    %v6393 = vsel %vm1211, %v5942, %v5935
    %v6394 = vsel %vm1213, %v5949, %v6393
    %v6395 = vsel %vm1215, %v5956, %v6394
    %v6396 = vsel %vm1217, %v5963, %v6395
    %v6397 = vsel %vm1219, %v5970, %v6396
    %v6398 = vsel %vm1221, %v5977, %v6397
    %v6399 = vsel %vm1223, %v5984, %v6398
    %v6400 = vsel %vm1211, %v6166, %v6159
    %v6401 = vsel %vm1213, %v6173, %v6400
    %v6402 = vsel %vm1215, %v6180, %v6401
    %v6403 = vsel %vm1217, %v6187, %v6402
    %v6404 = vsel %vm1219, %v6194, %v6403
    %v6405 = vsel %vm1221, %v6201, %v6404
    %v6406 = vsel %vm1223, %v6208, %v6405
    %v6425 = vsel %vm1211, %v5998, %v5991
    %v6426 = vsel %vm1213, %v6005, %v6425
    %v6427 = vsel %vm1215, %v6012, %v6426
    %v6428 = vsel %vm1217, %v6019, %v6427
    %v6429 = vsel %vm1219, %v6026, %v6428
    %v6430 = vsel %vm1221, %v6033, %v6429
    %v6431 = vsel %vm1223, %v6040, %v6430
    %v6432 = vsel %vm1211, %v6222, %v6215
    %v6433 = vsel %vm1213, %v6229, %v6432
    %v6434 = vsel %vm1215, %v6236, %v6433
    %v6435 = vsel %vm1217, %v6243, %v6434
    %v6436 = vsel %vm1219, %v6250, %v6435
    %v6437 = vsel %vm1221, %v6257, %v6436
    %v6438 = vsel %vm1223, %v6264, %v6437
    %6439 = vrot.lane.b32.xlu0 %v6431, 8
    %v6440 = vpop.permute.xlu0 %6439
    %6441 = vrot.lane.b32.xlu0 %v6438, 8
    %v6442 = vpop.permute.xlu0 %6441
    %v6461 = vsel %vm1211, %v6054, %v6047
    %v6462 = vsel %vm1213, %v6061, %v6461
    %v6463 = vsel %vm1215, %v6068, %v6462
    %v6464 = vsel %vm1217, %v6075, %v6463
    %v6465 = vsel %vm1219, %v6082, %v6464
    %v6466 = vsel %vm1221, %v6089, %v6465
    %v6467 = vsel %vm1223, %v6096, %v6466
    %v6468 = vsel %vm1211, %v6278, %v6271
    %v6469 = vsel %vm1213, %v6285, %v6468
    %v6470 = vsel %vm1215, %v6292, %v6469
    %v6471 = vsel %vm1217, %v6299, %v6470
    %v6472 = vsel %vm1219, %v6306, %v6471
    %v6473 = vsel %vm1221, %v6313, %v6472
    %v6474 = vsel %vm1223, %v6320, %v6473
    %6475 = vrot.lane.b32.xlu0 %v6467, 16
    %v6476 = vpop.permute.xlu0 %6475
    %6477 = vrot.lane.b32.xlu0 %v6474, 16
    %v6478 = vpop.permute.xlu0 %6477
    %v6497 = vsel %vm1211, %v6110, %v6103
    %v6498 = vsel %vm1213, %v6117, %v6497
    %v6499 = vsel %vm1215, %v6124, %v6498
    %v6500 = vsel %vm1217, %v6131, %v6499
    %v6501 = vsel %vm1219, %v6138, %v6500
    %v6502 = vsel %vm1221, %v6145, %v6501
    %v6503 = vsel %vm1223, %v6152, %v6502
    %v6504 = vsel %vm1211, %v6334, %v6327
    %v6505 = vsel %vm1213, %v6341, %v6504
    %v6506 = vsel %vm1215, %v6348, %v6505
    %v6507 = vsel %vm1217, %v6355, %v6506
    %v6508 = vsel %vm1219, %v6362, %v6507
    %v6509 = vsel %vm1221, %v6369, %v6508
    %v6510 = vsel %vm1223, %v6376, %v6509
    %6511 = vrot.lane.b32.xlu0 %v6503, 24
    %v6512 = vpop.permute.xlu0 %6511
    %6513 = vrot.lane.b32.xlu0 %v6510, 24
    %v6514 = vpop.permute.xlu0 %6513
    %v6517 = vsel %vm556, %v6399, %v6440
    %v6518 = vsel %vm556, %v6406, %v6442
    %v6519 = vsel %vm3224, %v6517, %v6476
    %v6520 = vsel %vm3224, %v6518, %v6478
    %v6521 = vsel %vm3227, %v6519, %v6512
    %v6522 = vsel %vm3227, %v6520, %v6514
    %v6523 = vpack.c.bf16 %v6522, %v6521
    %v6525 = vrot.slane %v3486, 4
    %v6527 = vunpack.c.l.bf16 %v6525
    %v6528 = vperm.slane %v6527, 0
    %v6529 = vunpack.c.h.b16 %v3478
    %v6530 = vunpack.c.h.b16 %v3480
    %v6531 = vunpack.c.h.b16 %v3482
    %v6532 = vunpack.c.h.b16 %v3484
    %v6533 = vpack.c.b16 %v6530, %v6529
    %v6534 = vpack.c.b16 %v6532, %v6531
    %v6538 = vsel %vm95, %v6523, 0
    %6540 = vmatpush.bf16.msra.mxu0 0
    %6541 = vmatpush.bf16.msra.mxu0 0
    %6542 = vmatpush.bf16.msra.mxu0 0
    %6543 = vmatpush.bf16.msra.mxu0 0
    %6544 = vmatpush.bf16.msra.mxu0 0
    %6545 = vmatpush.bf16.msra.mxu0 0
    %6546 = vmatpush.bf16.msra.mxu0 %v6534
    %6547 = vmatpush.bf16.msra.mxu0 %v6533
    %6548 = vmatmul.bf16.gmra.mxu0 %v6538
    %v6549 = vpop.f32.mrf.mxu0
    %v6550 = vadd.f32 %v6528, %v6549
    %v6551 = vpop.f32.mrf.mxu0
    %v6552 = vadd.f32 %v6528, %v6551
    %6553 = vdwg.mxu0
    %v6554 = vadd.f32 %v3474, %v6550
    %v6555 = vadd.f32 %v3475, %v6552
    %v6556 = vld [vmem:[%s4 + $0x8a] sm:$0x1]
    %v6557 = vld [vmem:[%s4 + $0x8b] sm:$0x1]
    %v6558 = vsel %vm95, %v6554, 0.0
    %6559 = vadd.xlane.f32.xlu0 %v6558
    %v6560 = vpop.xlane.xlu0 %6559
    %v6561 = vsel %vm95, %v6555, 0.0
    %6562 = vadd.xlane.f32.xlu0 %v6561
    %v6563 = vpop.xlane.xlu0 %6562
    %v6564 = vmul.f32 %v6560, %v108
    %v6565 = vmul.f32 %v6563, %v108
    %v6566 = vsub.f32 %v6554, %v6564
    %v6567 = vsub.f32 %v6555, %v6565
    %v6568 = vmul.f32 %v6566, %v6566
    %v6569 = vmul.f32 %v6567, %v6567
    %v6570 = vsel %vm95, %v6568, 0.0
    %6571 = vadd.xlane.f32.xlu0 %v6570
    %v6572 = vpop.xlane.xlu0 %6571
    %v6573 = vsel %vm95, %v6569, 0.0
    %6574 = vadd.xlane.f32.xlu0 %v6573
    %v6575 = vpop.xlane.xlu0 %6574
    %v6576 = vmul.f32 %v6572, %v108
    %v6577 = vmul.f32 %v6575, %v108
    %v6578 = vadd.f32 %v6576, 1e-07
    %v6579 = vadd.f32 %v6577, 1e-07
    %v6580 = vrsqrt.pop %v6578
    %v6581 = vmul.f32 %v6580, %v6578
    %v6582 = vmul.f32 %v6581, %v6580
    %v6583 = vmul.f32 0.5, %v6582
    %v6584 = vsub.f32 1.5, %v6583
    %v6585 = vmul.f32 %v6580, %v6584
    %vm6586 = vweird.f32 %v6578
    %vm6587 = vweird.f32 %v6580
    %vm6588 = vmor %vm6586, %vm6587
    %v6589 = vsel %vm6588, %v6580, %v6585
    %v6590 = vrsqrt.pop %v6579
    %v6591 = vmul.f32 %v6590, %v6579
    %v6592 = vmul.f32 %v6591, %v6590
    %v6593 = vmul.f32 0.5, %v6592
    %v6594 = vsub.f32 1.5, %v6593
    %v6595 = vmul.f32 %v6590, %v6594
    %vm6596 = vweird.f32 %v6579
    %vm6597 = vweird.f32 %v6590
    %vm6598 = vmor %vm6596, %vm6597
    %v6599 = vsel %vm6598, %v6590, %v6595
    %v6600 = vmul.f32 %v6566, %v6589
    %v6601 = vmul.f32 %v6567, %v6599
    %v6602 = vperm.slane %v6556, 0
    %v6603 = vmul.f32 %v6600, %v6602
    %v6604 = vmul.f32 %v6601, %v6602
    %v6605 = vperm.slane %v6557, 0
    %v6606 = vadd.f32 %v6603, %v6605
    %v6607 = vadd.f32 %v6604, %v6605
    %s6608 = scalar_lea.vmem %s3, 48
    %v6609 = vld [vmem:[%s6608] sm:$0xf]
    %v6610 = vld [vmem:[%s6608 + $0x4] sm:$0xf]
    %v6611 = vld [vmem:[%s6608 + $0x8] sm:$0xf]
    %v6612 = vld [vmem:[%s6608 + $0xc] sm:$0xf]
    %v6613 = vld [vmem:[%s6608 + $0x10] sm:$0xf]
    %v6614 = vld [vmem:[%s6608 + $0x14] sm:$0xf]
    %v6615 = vld [vmem:[%s6608 + $0x18] sm:$0xf]
    %v6616 = vld [vmem:[%s6608 + $0x1c] sm:$0xf]
    %v6617 = vld [vmem:[%s6608 + $0x20] sm:$0xf]
    %v6618 = vld [vmem:[%s6608 + $0x24] sm:$0xf]
    %v6619 = vld [vmem:[%s6608 + $0x28] sm:$0xf]
    %v6620 = vld [vmem:[%s6608 + $0x2c] sm:$0xf]
    %v6621 = vpack.c.bf16 %v6607, %v6606
    %v6622 = vld [vmem:[%s4 + $0x8f] sm:$0x1]
    %v6623 = vperm.slane %v6622, 0
    %v6628 = vunpack.c.l.b16 %v6609
    %v6629 = vunpack.c.l.b16 %v6610
    %v6630 = vunpack.c.l.b16 %v6611
    %v6631 = vunpack.c.l.b16 %v6612
    %v6632 = vpack.c.b16 %v6629, %v6628
    %v6633 = vpack.c.b16 %v6631, %v6630
    %v6637 = vsel %vm95, %v6621, 0
    %6639 = vmatpush.bf16.msra.mxu0 0
    %6640 = vmatpush.bf16.msra.mxu0 0
    %6641 = vmatpush.bf16.msra.mxu0 0
    %6642 = vmatpush.bf16.msra.mxu0 0
    %6643 = vmatpush.bf16.msra.mxu0 0
    %6644 = vmatpush.bf16.msra.mxu0 0
    %6645 = vmatpush.bf16.msra.mxu0 %v6633
    %6646 = vmatpush.bf16.msra.mxu0 %v6632
    %6647 = vmatmul.bf16.gmra.mxu0 %v6637
    %v6648 = vpop.f32.mrf.mxu0
    %v6649 = vadd.f32 %v6623, %v6648
    %v6650 = vpop.f32.mrf.mxu0
    %v6651 = vadd.f32 %v6623, %v6650
    %6652 = vdwg.mxu0
    %v6653 = vmul.f32 %v6649, 0.5
    %v6654 = vmul.f32 %v6651, 0.5
    %v6655 = vmul.f32 %v6649, 0.044715
    %v6656 = vmul.f32 %v6651, 0.044715
    %v6657 = vmul.f32 %v6655, %v6649
    %v6658 = vmul.f32 %v6656, %v6651
    %v6659 = vmul.f32 %v6657, %v6649
    %v6660 = vmul.f32 %v6658, %v6651
    %v6661 = vadd.f32 %v6649, %v6659
    %v6662 = vadd.f32 %v6651, %v6660
    %v6663 = vmul.f32 %v6661, 0.7978846
    %v6664 = vmul.f32 %v6662, 0.7978846
    %v6665 = vtanh.pop %v6663
    %v6666 = vtanh.pop %v6664
    %v6667 = vadd.f32 %v6665, 1.0
    %v6668 = vadd.f32 %v6666, 1.0
    %v6669 = vmul.f32 %v6653, %v6667
    %v6670 = vmul.f32 %v6654, %v6668
    %v6671 = vpack.c.bf16 %v6670, %v6669
    %v6672 = vld [vmem:[%s4 + $0x8e] sm:$0x1]
    %v6673 = vperm.slane %v6672, 0
    %v6682 = vunpack.c.l.b16 %v6613
    %v6683 = vunpack.c.l.b16 %v6614
    %v6684 = vunpack.c.l.b16 %v6615
    %v6685 = vunpack.c.l.b16 %v6616
    %v6686 = vunpack.c.l.b16 %v6617
    %v6687 = vunpack.c.l.b16 %v6618
    %v6688 = vunpack.c.l.b16 %v6619
    %v6689 = vunpack.c.l.b16 %v6620
    %v6690 = vpack.c.b16 %v6683, %v6682
    %v6691 = vpack.c.b16 %v6685, %v6684
    %v6692 = vpack.c.b16 %v6687, %v6686
    %v6693 = vpack.c.b16 %v6689, %v6688
    %v6699 = vsel %vm3404, %v6671, 0
    %6701 = vmatpush.bf16.msra.mxu0 0
    %6702 = vmatpush.bf16.msra.mxu0 0
    %6703 = vmatpush.bf16.msra.mxu0 0
    %6704 = vmatpush.bf16.msra.mxu0 0
    %6705 = vmatpush.bf16.msra.mxu0 %v6693
    %6706 = vmatpush.bf16.msra.mxu0 %v6692
    %6707 = vmatpush.bf16.msra.mxu0 %v6691
    %6708 = vmatpush.bf16.msra.mxu0 %v6690
    %6709 = vmatmul.bf16.gmra.mxu0 %v6699
    %v6710 = vpop.f32.mrf.mxu0
    %v6711 = vadd.f32 %v6673, %v6710
    %v6712 = vpop.f32.mrf.mxu0
    %v6713 = vadd.f32 %v6673, %v6712
    %6714 = vdwg.mxu0
    %v6715 = vadd.f32 %v6606, %v6711
    %v6716 = vadd.f32 %v6607, %v6713
    %v6717 = vld [vmem:[%s4 + $0x8c] sm:$0x1]
    %v6718 = vld [vmem:[%s4 + $0x8d] sm:$0x1]
    %v6719 = vsel %vm95, %v6715, 0.0
    %6720 = vadd.xlane.f32.xlu0 %v6719
    %v6721 = vpop.xlane.xlu0 %6720
    %v6722 = vsel %vm95, %v6716, 0.0
    %6723 = vadd.xlane.f32.xlu0 %v6722
    %v6724 = vpop.xlane.xlu0 %6723
    %v6725 = vmul.f32 %v6721, %v108
    %v6726 = vmul.f32 %v6724, %v108
    %v6727 = vsub.f32 %v6715, %v6725
    %v6728 = vsub.f32 %v6716, %v6726
    %v6729 = vmul.f32 %v6727, %v6727
    %v6730 = vmul.f32 %v6728, %v6728
    %v6731 = vsel %vm95, %v6729, 0.0
    %6732 = vadd.xlane.f32.xlu0 %v6731
    %v6733 = vpop.xlane.xlu0 %6732
    %v6734 = vsel %vm95, %v6730, 0.0
    %6735 = vadd.xlane.f32.xlu0 %v6734
    %v6736 = vpop.xlane.xlu0 %6735
    %v6737 = vmul.f32 %v6733, %v108
    %v6738 = vmul.f32 %v6736, %v108
    %v6739 = vadd.f32 %v6737, 1e-07
    %v6740 = vadd.f32 %v6738, 1e-07
    %v6741 = vrsqrt.pop %v6739
    %v6742 = vmul.f32 %v6741, %v6739
    %v6743 = vmul.f32 %v6742, %v6741
    %v6744 = vmul.f32 0.5, %v6743
    %v6745 = vsub.f32 1.5, %v6744
    %v6746 = vmul.f32 %v6741, %v6745
    %vm6747 = vweird.f32 %v6739
    %vm6748 = vweird.f32 %v6741
    %vm6749 = vmor %vm6747, %vm6748
    %v6750 = vsel %vm6749, %v6741, %v6746
    %v6751 = vrsqrt.pop %v6740
    %v6752 = vmul.f32 %v6751, %v6740
    %v6753 = vmul.f32 %v6752, %v6751
    %v6754 = vmul.f32 0.5, %v6753
    %v6755 = vsub.f32 1.5, %v6754
    %v6756 = vmul.f32 %v6751, %v6755
    %vm6757 = vweird.f32 %v6740
    %vm6758 = vweird.f32 %v6751
    %vm6759 = vmor %vm6757, %vm6758
    %v6760 = vsel %vm6759, %v6751, %v6756
    %v6761 = vmul.f32 %v6727, %v6750
    %v6762 = vmul.f32 %v6728, %v6760
    %v6763 = vperm.slane %v6717, 0
    %v6764 = vmul.f32 %v6761, %v6763
    %v6765 = vmul.f32 %v6762, %v6763
    %v6766 = vperm.slane %v6718, 0
    %v6767 = vadd.f32 %v6764, %v6766
    %v6768 = vadd.f32 %v6765, %v6766
    %s6769 = scalar_lea.vmem [#allocation2], 160
    %v6770 = vld [vmem:[%s6769] sm:$0xff]
    %v6771 = vld [vmem:[%s6769 + $0x8] sm:$0xff]
    %v6772 = vld [vmem:[%s6769 + $0x10] sm:$0xff]
    %v6773 = vld [vmem:[%s6769 + $0x18] sm:$0xff]
    %v6774 = vld [vmem:[%s6769 + $0x20] sm:$0xff]
    %v6775 = vld [vmem:[%s6769 + $0x28] sm:$0xff]
    %v6776 = vld [vmem:[%s6769 + $0x30] sm:$0xff]
    %v6777 = vld [vmem:[%s6769 + $0x38] sm:$0xff]
    %v6778 = vld [vmem:[%s6769 + $0x40] sm:$0x11]
    %v6779 = vld [vmem:[%s6769 + $0x48] sm:$0x11]
    %v6780 = vpack.c.bf16 %v6768, %v6767
    %v6781 = vunpack.c.l.bf16 %v6778
    %v6782 = vunpack.c.h.bf16 %v6778
    %v6783 = vunpack.c.l.bf16 %v6779
    %v6784 = vunpack.c.h.bf16 %v6779
    %v6785 = vperm.slane %v6781, 0
    %v6786 = vperm.slane %v6782, 0
    %v6787 = vperm.slane %v6783, 0
    %v6788 = vperm.slane %v6784, 0
    %v6797 = vunpack.c.l.b16 %v6770
    %v6798 = vunpack.c.h.b16 %v6770
    %v6799 = vunpack.c.l.b16 %v6771
    %v6800 = vunpack.c.h.b16 %v6771
    %v6801 = vunpack.c.l.b16 %v6772
    %v6802 = vunpack.c.h.b16 %v6772
    %v6803 = vunpack.c.l.b16 %v6773
    %v6804 = vunpack.c.h.b16 %v6773
    %v6805 = vunpack.c.l.b16 %v6774
    %v6806 = vunpack.c.h.b16 %v6774
    %v6807 = vunpack.c.l.b16 %v6775
    %v6808 = vunpack.c.h.b16 %v6775
    %v6809 = vunpack.c.l.b16 %v6776
    %v6810 = vunpack.c.h.b16 %v6776
    %v6811 = vunpack.c.l.b16 %v6777
    %v6812 = vunpack.c.h.b16 %v6777
    %v6813 = vpack.c.b16 %v6801, %v6797
    %v6814 = vpack.c.b16 %v6802, %v6798
    %v6815 = vpack.c.b16 %v6803, %v6799
    %v6816 = vpack.c.b16 %v6804, %v6800
    %v6817 = vpack.c.b16 %v6809, %v6805
    %v6818 = vpack.c.b16 %v6810, %v6806
    %v6819 = vpack.c.b16 %v6811, %v6807
    %v6820 = vpack.c.b16 %v6812, %v6808
    %v6830 = vsel %vm95, %v6780, 0
    %6832 = vmatpush.bf16.msra.mxu0 0
    %6833 = vmatpush.bf16.msra.mxu0 0
    %6834 = vmatpush.bf16.msra.mxu0 0
    %6835 = vmatpush.bf16.msra.mxu0 0
    %6836 = vmatpush.bf16.msra.mxu0 0
    %6837 = vmatpush.bf16.msra.mxu0 0
    %6838 = vmatpush.bf16.msra.mxu0 %v6817
    %6839 = vmatpush.bf16.msra.mxu0 %v6813
    %6840 = vmatmul.bf16.gmra.mxu0 %v6830
    %v6841 = vpop.f32.mrf.mxu0
    %v6842 = vadd.f32 %v6785, %v6841
    %v6843 = vpop.f32.mrf.mxu0
    %v6844 = vadd.f32 %v6785, %v6843
    %6845 = vdwg.mxu0
    %6846 = vmatpush.bf16.msra.mxu0 0
    %6847 = vmatpush.bf16.msra.mxu0 0
    %6848 = vmatpush.bf16.msra.mxu0 0
    %6849 = vmatpush.bf16.msra.mxu0 0
    %6850 = vmatpush.bf16.msra.mxu0 0
    %6851 = vmatpush.bf16.msra.mxu0 0
    %6852 = vmatpush.bf16.msra.mxu0 %v6818
    %6853 = vmatpush.bf16.msra.mxu0 %v6814
    %6854 = vmatmul.bf16.gmra.mxu0 %v6830
    %v6855 = vpop.f32.mrf.mxu0
    %v6856 = vadd.f32 %v6786, %v6855
    %v6857 = vpop.f32.mrf.mxu0
    %v6858 = vadd.f32 %v6786, %v6857
    %6859 = vdwg.mxu0
    %6860 = vmatpush.bf16.msra.mxu0 0
    %6861 = vmatpush.bf16.msra.mxu0 0
    %6862 = vmatpush.bf16.msra.mxu0 0
    %6863 = vmatpush.bf16.msra.mxu0 0
    %6864 = vmatpush.bf16.msra.mxu0 0
    %6865 = vmatpush.bf16.msra.mxu0 0
    %6866 = vmatpush.bf16.msra.mxu0 %v6819
    %6867 = vmatpush.bf16.msra.mxu0 %v6815
    %6868 = vmatmul.bf16.gmra.mxu0 %v6830
    %v6869 = vpop.f32.mrf.mxu0
    %v6870 = vadd.f32 %v6787, %v6869
    %v6871 = vpop.f32.mrf.mxu0
    %v6872 = vadd.f32 %v6787, %v6871
    %6873 = vdwg.mxu0
    %6874 = vmatpush.bf16.msra.mxu0 0
    %6875 = vmatpush.bf16.msra.mxu0 0
    %6876 = vmatpush.bf16.msra.mxu0 0
    %6877 = vmatpush.bf16.msra.mxu0 0
    %6878 = vmatpush.bf16.msra.mxu0 0
    %6879 = vmatpush.bf16.msra.mxu0 0
    %6880 = vmatpush.bf16.msra.mxu0 %v6820
    %6881 = vmatpush.bf16.msra.mxu0 %v6816
    %6882 = vmatmul.bf16.gmra.mxu0 %v6830
    %v6883 = vpop.f32.mrf.mxu0
    %v6884 = vadd.f32 %v6788, %v6883
    %v6885 = vpop.f32.mrf.mxu0
    %v6886 = vadd.f32 %v6788, %v6885
    %6887 = vdwg.mxu0
    %v6888 = vtanh.pop %v6842
    %v6889 = vtanh.pop %v6856
    %v6890 = vtanh.pop %v6870
    %v6891 = vtanh.pop %v6884
    %v6892 = vtanh.pop %v6844
    %v6893 = vtanh.pop %v6858
    %v6894 = vtanh.pop %v6872
    %v6895 = vtanh.pop %v6886
    %v6896 = vperm.slane %v6781, 1
    %v6897 = vperm.slane %v6782, 1
    %v6898 = vperm.slane %v6783, 1
    %v6899 = vperm.slane %v6784, 1
    %v6900 = vmul.f32 %v6888, %v6896
    %v6901 = vmul.f32 %v6889, %v6897
    %v6902 = vmul.f32 %v6890, %v6898
    %v6903 = vmul.f32 %v6891, %v6899
    %v6904 = vmul.f32 %v6892, %v6896
    %v6905 = vmul.f32 %v6893, %v6897
    %v6906 = vmul.f32 %v6894, %v6898
    %v6907 = vmul.f32 %v6895, %v6899
    %v6908 = vadd.f32 %v6900, %v6901
    %v6909 = vadd.f32 %v6908, %v6902
    %v6910 = vadd.f32 %v6909, %v6903
    %6911 = vadd.xlane.f32.xlu0 %v6910
    %v6912 = vpop.xlane.xlu0 %6911
    %v6913 = vadd.f32 %v6904, %v6905
    %v6914 = vadd.f32 %v6913, %v6906
    %v6915 = vadd.f32 %v6914, %v6907
    %6916 = vadd.xlane.f32.xlu0 %v6915
    %v6917 = vpop.xlane.xlu0 %6916
    %v6920 = vperm.slane %v6912, %v41
    %v6921 = vperm.slane %v6917, %v41
    %v6922 = vsel %vm1211, %v6921, %v6920
    %vm6924 = vcmask 58368
    %v6925 = vsel %vm6924, %v6922, -inf
    %6926 = vmax.xlane.f32.xlu0 %v6925
    %v6927 = vpop.xlane.xlu0 %6926
    %v6929 = vperm.slane %v6927, 0
    %v6930 = vperm.slane %v6927, 1
    %v6933 = vsub.f32 %v6912, %v6929
    %v6934 = vsub.f32 %v6917, %v6930
    %v6935 = vmul.f32 %v6933, 1.442695
    %v6936 = vpow.pop %v6935
    %v6937 = vmul.f32 %v6934, 1.442695
    %v6938 = vpow.pop %v6937
    %6941 = vset.pattern.permute.xlu0 0
    %6942 = vperm.xlu0 %6941, %v6936
    %v6943 = vpop.permute.xlu0 %6942
    %6944 = vset.pattern.permute.xlu0 0
    %6945 = vperm.xlu0 %6944, %v6938
    %v6946 = vpop.permute.xlu0 %6945
    %v6947 = vperm.slane %v6943, %v41
    %v6948 = vperm.slane %v6946, %v41
    %v6949 = vsel %vm1211, %v6948, %v6947
    %v6951 = vsel %vm6924, %v6949, 0.0
    %6952 = vadd.xlane.f32.xlu0 %v6951
    %v6953 = vpop.xlane.xlu0 %6952
    %v6954 = vrcp.pop %v6953
    %v6956 = vperm.slane %v6954, 0
    %v6957 = vperm.slane %v6954, 1
    %v6960 = vmul.f32 %v6936, %v6956
    %v6961 = vmul.f32 %v6938, %v6957
    %6963 = vset.pattern.permute.xlu0 0
    %6964 = vperm.xlu0 %6963, %v6960
    %v6965 = vpop.permute.xlu0 %6964
    %6968 = vset.pattern.permute.xlu0 0
    %6969 = vperm.xlu0 %6968, %v6961
    %v6970 = vpop.permute.xlu0 %6969
    %v6972 = vmul.f32 %v6965, %v6767
    %v6973 = vmul.f32 %v6970, %v6768
    %v6974 = vsel %vm95, %v6972, 0.0
    %v6975 = vrot.slane %v6974, 4
    %v6976 = vadd.f32 %v6974, %v6975
    %v6977 = vrot.slane %v6976, 2
    %v6978 = vadd.f32 %v6976, %v6977
    %v6979 = vrot.slane %v6978, 1
    %v6980 = vadd.f32 %v6978, %v6979
    %v6981 = vsel %vm95, %v6973, 0.0
    %v6982 = vrot.slane %v6981, 4
    %v6983 = vadd.f32 %v6981, %v6982
    %v6984 = vrot.slane %v6983, 2
    %v6985 = vadd.f32 %v6983, %v6984
    %v6986 = vrot.slane %v6985, 1
    %v6987 = vadd.f32 %v6985, %v6986
    %v6988 = vld [vmem:[%s4 + $0x82] sm:$0x1]
    %v6989 = vperm.slane %v6988, 0
    %v6990 = vmul.f32 %v6980, %v6989
    %v6991 = vmul.f32 %v6987, %v6989
    %v6994 = vrot.slane %v6991, 7
    %v6995 = vsel %vm1211, %v6994, %v6990
    %vm6997 = vcmask 254976
    %v6998 = vsel %vm6997, %v6995, 0.0
    %6999 = vadd.xlane.f32.xlu0 %v6998
    %v7000 = vpop.xlane.xlu0 %6999
    %v7001 = vld [vmem:[%s4 + $0x83] sm:$0x1]
    %v7002 = vperm.slane %v7001, 0
    %v7003 = vadd.f32 %v7000, %v7002
    %vm7004 = vcmp.eq.s32.totalorder %v41, 0
    %7006 = vset.pattern.permute.xlu0 0
    %7007 = vperm.xlu0 %7006, %v7003
    %v7008 = vpop.permute.xlu0 %7007
    %v7010 = vsel %vm7004, %v7008, 0.0
    %7011 = vst [vmem:[#allocation5] sm:$0x3] %v7010
    // Predicated region
    $region26: #{tpu_custom_call.1} parent=1 // pred_check
      _
    $region27: #{tpu_custom_call.1} parent=1 // pred_check_branch
      %7013 = sbr.rel (0) target = $region29
    $region28: #{tpu_custom_call.1} parent=1 // pred_region
      %7015 = vsyncadd [#allocation4], 0
      %s7017 = sshll.u32 [#allocation5], 4
      %s7018 = int_to_ptr.vmem [resolvable:$true] %s7017
      %s7019 = sshll.u32 %s5, 4
      %s7020 = int_to_ptr.hbm [resolvable:$true] %s7019
      %7022 = dma.vmem_to_hbm [thread:$0]  %s7018, 32, %s7020, [#allocation4]
    $region29: #{tpu_custom_call.1} parent=1 // pred_fallthru
      _
    // Predicated region
    $region30: #{tpu_custom_call.1} parent=1 // pred_check
      _
    $region31: #{tpu_custom_call.1} parent=1 // pred_check_branch
      %7024 = sbr.rel (0) target = $region33
    $region32: #{tpu_custom_call.1} parent=1 // pred_region
      %7026 = dma.done [#allocation4], 32
    $region33: #{tpu_custom_call.1} parent=1 // pred_fallthru
      _
    %7027 = vsyncpa [#allocation3], 1
    %7028 = vsyncpa [#allocation4], 1

</llo_original>
